<compile_context>
chip_gen: v7x
topology: tpu7x:2x2x1
jax: 0.10.0
libtpu: 0.0.40
codegen_flags: <defaults>
</compile_context>

<pallas_src>
import numpy as np
import jax
import jax.numpy as jnp
from jax import lax
from jax.experimental import pallas as pl
from jax.experimental.pallas import tpu as pltpu


TB = 16  # images per grid step (per-step work is linear in TB now)


# ----------------------------------------------------------------------------
# The fused Pallas kernel
# ----------------------------------------------------------------------------
def _mnist3_fused_kernel(s_ref, bcat_ref, b1_ref, c_ref, b2_ref,
                         wf1_ref, bf1_ref, wf2_ref, bf2_ref, o_ref):
    tb = o_ref.shape[0]
    rows = tb * 16                            # 16 H-slots per image (9 real)

    # ---- conv1 + avgpool(3x3/3) + bias + ReLU -------------------------------
    # H-direction taps/row-pooling were folded into the input layout by the
    # wrapper; W-direction taps/col-pooling/weights live in bcat.
    acc1 = jnp.dot(s_ref[...], bcat_ref[...], preferred_element_type=jnp.float32)
    a1 = jnp.maximum(acc1 + b1_ref[...], 0.0)          # (rows, 128): lanes = ow*10+co

    # Zero the per-image H-pad rows (oh = 9..15) so the conv2 row shifts below
    # may wrap across image boundaries without leaking relu(bias) garbage.
    oh = lax.broadcasted_iota(jnp.int32, (rows, 128), 0) & 15
    a1 = jnp.where(oh < 9, a1, 0.0)

    # ---- conv2 (zero padding folded into row shifts + C) + bias -------------
    acc2 = jnp.dot(a1, c_ref[2], preferred_element_type=jnp.float32)   # dh = 2: no shift
    for dh in (0, 1, 3, 4):
        shifted = pltpu.roll(a1, shift=(2 - dh) % rows, axis=0)        # row r <- a1[r+dh-2]
        acc2 = acc2 + jnp.dot(shifted, c_ref[dh], preferred_element_type=jnp.float32)
    y2 = acc2 + b2_ref[...]                             # (rows, 256): lanes = ow2*20+co
    # TODO(synk): F.dropout(p=0.5) defaults to training=True in the functional
    # API; PyTorch RNG masking is not reproducible here -> identity (eval).

    # ---- maxpool(2x2/2) + ReLU via sublane/lane rolls (XLU) ------------------
    ymax = jnp.maximum(y2, pltpu.roll(y2, shift=rows - 1, axis=0))      # row r: max(r, r+1)
    hmax = jnp.maximum(ymax, pltpu.roll(ymax, shift=256 - 20, axis=1))  # lane l: max(l, l+20)
    f = jnp.maximum(hmax, 0.0).reshape(tb, 16, 256)

    # ---- flatten (torch NCHW order folded into wf1) -> fc1 -> ReLU -----------
    feat = jnp.concatenate([f[:, 0, :], f[:, 2, :], f[:, 4, :], f[:, 6, :]],
                           axis=-1)                     # (tb, 1024); unused lanes hit zero rows
    h = jnp.maximum(
        jnp.dot(feat, wf1_ref[...], preferred_element_type=jnp.float32) + bf1_ref[...],
        0.0)                                            # (tb, 128)

    # ---- fc2 -> log_softmax (classes padded to 128 with -1e30 bias) ----------
    z = jnp.dot(h, wf2_ref[...], preferred_element_type=jnp.float32) + bf2_ref[...]
    z = z - jnp.max(z, axis=-1, keepdims=True)
    o_ref[...] = z - jnp.log(jnp.sum(jnp.exp(z), axis=-1, keepdims=True))


# ----------------------------------------------------------------------------
# Wrapper
# ----------------------------------------------------------------------------
@jax.jit
def mnist_net3_forward(x, consts):
    """x: (N, 1, 28, 28) float32  ->  (N, 10) log-probabilities."""
    n = x.shape[0]
    npad = ((n + TB - 1) // TB) * TB

    # conv1 pad=2 plus its H-direction conv taps + 3-row avg-pool sums are
    # folded into a lane-dense input layout: rows = image*16 + oh (oh<9 real),
    # lanes = dh*32 + w.  Cheap memory-bound relayout in XLA; removes the
    # O(TB^2) block-diagonal selector matmul from the kernel.
    xp = jnp.pad(x[:, 0, :, :], ((0, npad - n), (2, 2), (2, 2)))     # (Npad, 32, 32)
    taps = [xp[:, dh:dh + 27, :].reshape(npad, 9, 3, 32).sum(axis=2)
            for dh in range(5)]                                      # 5 x (Npad, 9, 32)
    s = jnp.stack(taps, axis=2)                                      # (Npad, 9, 5, 32)
    s = jnp.pad(s, ((0, 0), (0, 7), (0, 0), (0, 0)))                 # (Npad, 16, 5, 32)
    s = s.reshape(npad * 16, 160)

    out = pl.pallas_call(
        _mnist3_fused_kernel,
        out_shape=jax.ShapeDtypeStruct((npad, 128), jnp.float32),
        grid=(npad // TB,),
        in_specs=[
            pl.BlockSpec((TB * 16, 160), lambda i: (i, 0)),
            pl.BlockSpec(consts["bcat"].shape, lambda i: (0, 0)),
            pl.BlockSpec(consts["bias1"].shape, lambda i: (0, 0)),
            pl.BlockSpec(consts["C"].shape, lambda i: (0, 0, 0)),
            pl.BlockSpec(consts["bias2"].shape, lambda i: (0, 0)),
            pl.BlockSpec(consts["wf1"].shape, lambda i: (0, 0)),
            pl.BlockSpec(consts["bf1"].shape, lambda i: (0, 0)),
            pl.BlockSpec(consts["wf2"].shape, lambda i: (0, 0)),
            pl.BlockSpec(consts["bf2"].shape, lambda i: (0, 0)),
        ],
        out_specs=pl.BlockSpec((TB, 128), lambda i: (i, 0)),
        compiler_params=pltpu.CompilerParams(
            dimension_semantics=("parallel",)),
    )(s, consts["bcat"], consts["bias1"], consts["C"], consts["bias2"],
      consts["wf1"], consts["bf1"], consts["wf2"], consts["bf2"])

    return out[:n, :10]


# ----------------------------------------------------------------------------
# Host-side constant construction (folds conv-W windows/pooling, zero padding
# and the torch flatten order into VMEM-resident matrices; numpy, one-time).
# ----------------------------------------------------------------------------
def build_constants(params):
    w1 = np.asarray(params["w1"], np.float32)      # (10, 1, 5, 5)  OIHW
    b1 = np.asarray(params["b1"], np.float32)      # (10,)
    w2 = np.asarray(params["w2"], np.float32)      # (20, 10, 5, 5)
    b2 = np.asarray(params["b2"], np.float32)      # (20,)
    wf1 = np.asarray(params["wfc1"], np.float32)   # (50, 320)
    bf1 = np.asarray(params["bfc1"], np.float32)   # (50,)
    wf2 = np.asarray(params["wfc2"], np.float32)   # (10, 50)
    bf2 = np.asarray(params["bfc2"], np.float32)   # (10,)

    # conv1 W direction: taps dw + pool cols + weights + 1/9; rows = dh*32 + w_in,
    # lanes = ow*10 + co (90 real, padded to 128).
    bcat = np.zeros((5, 32, 128), np.float32)
    for dh in range(5):
        for ow in range(9):
            for dw in range(5):
                for pw in range(3):
                    w_in = 3 * ow + pw + dw
                    bcat[dh, w_in, ow * 10:ow * 10 + 10] += w1[:, 0, dh, dw] / 9.0
    bcat = bcat.reshape(160, 128)
    bias1 = np.zeros((1, 128), np.float32)
    for ow in range(9):
        bias1[0, ow * 10:ow * 10 + 10] = b1

    # conv2 W direction: rows = ow1*10+ci, cols = ow2*20+co, weight w2[.,.,dh,dw].
    C = np.zeros((5, 128, 256), np.float32)
    for dh in range(5):
        for ow2 in range(9):
            for dw in range(5):
                ow1 = ow2 + dw - 2
                if 0 <= ow1 < 9:
                    for ci in range(10):
                        C[dh, ow1 * 10 + ci, ow2 * 20:ow2 * 20 + 20] = w2[:, ci, dh, dw]
    bias2 = np.zeros((1, 256), np.float32)
    for ow2 in range(9):
        bias2[0, ow2 * 20:ow2 * 20 + 20] = b2

    # FC head: feature for pooled (h=r, w, c) sits at kernel lane r*256 + 40*w + c;
    # fold torch.flatten NCHW order (c*16 + h*4 + w) into wf1's rows.
    wf1_big = np.zeros((1024, 128), np.float32)
    for r in range(4):
        for w in range(4):
            for c in range(20):
                wf1_big[r * 256 + 40 * w + c, :50] = wf1[:, c * 16 + r * 4 + w]
    bf1p = np.zeros((1, 128), np.float32)
    bf1p[0, :50] = bf1

    wf2p = np.zeros((128, 128), np.float32)
    wf2p[:50, :10] = wf2.T
    bf2p = np.full((1, 128), -1e30, np.float32)    # padded classes -> exp() == 0
    bf2p[0, :10] = bf2

    return {"bcat": jnp.asarray(bcat), "bias1": jnp.asarray(bias1),
            "C": jnp.asarray(C), "bias2": jnp.asarray(bias2),
            "wf1": jnp.asarray(wf1_big), "bf1": jnp.asarray(bf1p),
            "wf2": jnp.asarray(wf2p), "bf2": jnp.asarray(bf2p)}


# ----------------------------------------------------------------------------
# Parameters (deterministic synthetic, PyTorch-style uniform init)
# ----------------------------------------------------------------------------
def init_params(key):
    ks = jax.random.split(key, 8)

    def u(k, shape, fan_in):
        bound = 1.0 / np.sqrt(fan_in)
        return jax.random.uniform(k, shape, jnp.float32, -bound, bound)

    return {
        "w1": u(ks[0], (10, 1, 5, 5), 25),
        "b1": u(ks[1], (10,), 25),
        "w2": u(ks[2], (20, 10, 5, 5), 250),
        "b2": u(ks[3], (20,), 250),
        "wfc1": u(ks[4], (50, 320), 320),
        "bfc1": u(ks[5], (50,), 320),
        "wfc2": u(ks[6], (10, 50), 50),
        "bfc2": u(ks[7], (10,), 50),
    }


# ----------------------------------------------------------------------------
# Pure-JAX reference (for correctness check only)
# ----------------------------------------------------------------------------
def reference_forward(x, p):
    dn = ("NCHW", "OIHW", "NCHW")
    y = lax.conv_general_dilated(x, p["w1"], (1, 1), ((2, 2), (2, 2)),
                                 dimension_numbers=dn)
    y = y + p["b1"][None, :, None, None]
    y = lax.reduce_window(y, 0.0, lax.add, (1, 1, 3, 3), (1, 1, 3, 3), "VALID") / 9.0
    y = jnp.maximum(y, 0.0)
    y = lax.conv_general_dilated(y, p["w2"], (1, 1), ((2, 2), (2, 2)),
                                 dimension_numbers=dn)
    y = y + p["b2"][None, :, None, None]
    y = lax.reduce_window(y, -jnp.inf, lax.max, (1, 1, 2, 2), (1, 1, 2, 2), "VALID")
    y = jnp.maximum(y, 0.0)
    y = y.reshape(y.shape[0], -1)
    y = jnp.maximum(y @ p["wfc1"].T + p["bfc1"], 0.0)
    y = y @ p["wfc2"].T + p["bfc2"]
    return jax.nn.log_softmax(y, axis=1)


# ----------------------------------------------------------------------------
if __name__ == "__main__":
    key = jax.random.PRNGKey(0)
    k_x, k_p, k_x2 = jax.random.split(key, 3)

    params = init_params(k_p)
    consts = build_constants(params)

    # Small batch (2 -> padded to 16, grid=(1,)).  28x28 input is required by
    # the module (flatten -> 20*4*4 = 320 features).
    x = jax.random.normal(k_x, (2, 1, 28, 28), dtype=jnp.float32)
    out = jax.block_until_ready(mnist_net3_forward(x, consts))
    assert out.shape == (2, 10), out.shape
    ref = reference_forward(x, params)
    assert np.allclose(np.asarray(out), np.asarray(ref), rtol=5e-3, atol=5e-3), (
        float(np.max(np.abs(np.asarray(out) - np.asarray(ref)))))

    # Batch needing >1 grid step plus batch padding (40 -> 48, grid=(3,)).
    x2 = jax.random.normal(k_x2, (40, 1, 28, 28), dtype=jnp.float32)
    out2 = jax.block_until_ready(mnist_net3_forward(x2, consts))
    assert out2.shape == (40, 10), out2.shape
    ref2 = reference_forward(x2, params)
    assert np.allclose(np.asarray(out2), np.asarray(ref2), rtol=5e-3, atol=5e-3), (
        float(np.max(np.abs(np.asarray(out2) - np.asarray(ref2)))))

    print("KERNEL_OK")
</pallas_src>

<mosaic_0001>
module attributes {stable_mosaic.version = 11 : i64} {
  func.func @_mnist3_fused_kernel(%arg0: i32, %arg1: memref<256x160xf32, #tpu.memory_space<vmem>>, %arg2: memref<160x128xf32, #tpu.memory_space<vmem>>, %arg3: memref<1x128xf32, #tpu.memory_space<vmem>>, %arg4: memref<5x128x256xf32, #tpu.memory_space<vmem>>, %arg5: memref<1x256xf32, #tpu.memory_space<vmem>>, %arg6: memref<1024x128xf32, #tpu.memory_space<vmem>>, %arg7: memref<1x128xf32, #tpu.memory_space<vmem>>, %arg8: memref<128x128xf32, #tpu.memory_space<vmem>>, %arg9: memref<1x128xf32, #tpu.memory_space<vmem>>, %arg10: memref<16x128xf32, #tpu.memory_space<vmem>>) attributes {dimension_semantics = [#tpu.dimension_semantics<parallel>], iteration_bounds = array<i64: 1>, scalar_prefetch = 0 : i64, scratch_operands = 0 : i64, tpu.core_type = #tpu.core_type<tc>, window_params = [{transform_indices = @transform_0, window_bounds = array<i64: 256, 160>}, {pipeline_mode = #tpu.pipeline_mode<synchronous>, transform_indices = @transform_1, window_bounds = array<i64: 160, 128>}, {pipeline_mode = #tpu.pipeline_mode<synchronous>, transform_indices = @transform_2, window_bounds = array<i64: 1, 128>}, {pipeline_mode = #tpu.pipeline_mode<synchronous>, transform_indices = @transform_3, window_bounds = array<i64: 5, 128, 256>}, {pipeline_mode = #tpu.pipeline_mode<synchronous>, transform_indices = @transform_4, window_bounds = array<i64: 1, 256>}, {pipeline_mode = #tpu.pipeline_mode<synchronous>, transform_indices = @transform_5, window_bounds = array<i64: 1024, 128>}, {pipeline_mode = #tpu.pipeline_mode<synchronous>, transform_indices = @transform_6, window_bounds = array<i64: 1, 128>}, {pipeline_mode = #tpu.pipeline_mode<synchronous>, transform_indices = @transform_7, window_bounds = array<i64: 128, 128>}, {pipeline_mode = #tpu.pipeline_mode<synchronous>, transform_indices = @transform_8, window_bounds = array<i64: 1, 128>}, {transform_indices = @transform_9, window_bounds = array<i64: 16, 128>}]} {
    %c0 = arith.constant 0 : index
    %c0_0 = arith.constant 0 : index
    %0 = vector.load %arg1[%c0, %c0_0] : memref<256x160xf32, #tpu.memory_space<vmem>>, vector<256x160xf32>
    %c0_1 = arith.constant 0 : index
    %c0_2 = arith.constant 0 : index
    %1 = vector.load %arg2[%c0_1, %c0_2] : memref<160x128xf32, #tpu.memory_space<vmem>>, vector<160x128xf32>
    %cst = arith.constant dense<0.000000e+00> : vector<256x128xf32>
    %2 = tpu.matmul %0, %1, %cst {dimension_numbers = #tpu.dot_dimension_numbers<[1], [0], [0], [1], [0, 0, 1, 1], [], []>} : vector<256x160xf32>, vector<160x128xf32>, vector<256x128xf32> -> vector<256x128xf32>
    %c0_3 = arith.constant 0 : index
    %c0_4 = arith.constant 0 : index
    %3 = vector.load %arg3[%c0_3, %c0_4] : memref<1x128xf32, #tpu.memory_space<vmem>>, vector<1x128xf32>
    %4 = vector.broadcast %3 : vector<1x128xf32> to vector<256x128xf32>
    %5 = arith.addf %2, %4 : vector<256x128xf32>
    %cst_5 = arith.constant 0.000000e+00 : f32
    %6 = vector.broadcast %cst_5 : f32 to vector<256x128xf32>
    %7 = arith.maximumf %5, %6 : vector<256x128xf32>
    %8 = tpu.iota {dimensions = array<i32: 0>} : vector<256x128xi32>
    %c15_i32 = arith.constant 15 : i32
    %9 = vector.broadcast %c15_i32 : i32 to vector<256x128xi32>
    %10 = arith.andi %8, %9 : vector<256x128xi32>
    %c9_i32 = arith.constant 9 : i32
    %11 = vector.broadcast %c9_i32 : i32 to vector<256x128xi32>
    %12 = arith.cmpi slt, %10, %11 : vector<256x128xi32>
    %cst_6 = arith.constant 0.000000e+00 : f32
    %13 = vector.broadcast %cst_6 : f32 to vector<256x128xf32>
    %14 = arith.select %12, %7, %13 : vector<256x128xi1>, vector<256x128xf32>
    %c2 = arith.constant 2 : index
    %c0_7 = arith.constant 0 : index
    %c0_8 = arith.constant 0 : index
    %15 = vector.load %arg4[%c2, %c0_7, %c0_8] : memref<5x128x256xf32, #tpu.memory_space<vmem>>, vector<1x128x256xf32>
    %16 = vector.shape_cast %15 : vector<1x128x256xf32> to vector<128x256xf32>
    %cst_9 = arith.constant dense<0.000000e+00> : vector<256x256xf32>
    %17 = tpu.matmul %14, %16, %cst_9 {dimension_numbers = #tpu.dot_dimension_numbers<[1], [0], [0], [1], [0, 0, 1, 1], [], []>} : vector<256x128xf32>, vector<128x256xf32>, vector<256x256xf32> -> vector<256x256xf32>
    %c2_i32 = arith.constant 2 : i32
    %18 = tpu.dynamic_rotate %14 by %c2_i32 dim 0 : vector<256x128xf32>, i32 -> vector<256x128xf32>
    %c0_10 = arith.constant 0 : index
    %c0_11 = arith.constant 0 : index
    %c0_12 = arith.constant 0 : index
    %19 = vector.load %arg4[%c0_10, %c0_11, %c0_12] : memref<5x128x256xf32, #tpu.memory_space<vmem>>, vector<1x128x256xf32>
    %20 = vector.shape_cast %19 : vector<1x128x256xf32> to vector<128x256xf32>
    %cst_13 = arith.constant dense<0.000000e+00> : vector<256x256xf32>
    %21 = tpu.matmul %18, %20, %cst_13 {dimension_numbers = #tpu.dot_dimension_numbers<[1], [0], [0], [1], [0, 0, 1, 1], [], []>} : vector<256x128xf32>, vector<128x256xf32>, vector<256x256xf32> -> vector<256x256xf32>
    %22 = arith.addf %17, %21 : vector<256x256xf32>
    %c1_i32 = arith.constant 1 : i32
    %23 = tpu.dynamic_rotate %14 by %c1_i32 dim 0 : vector<256x128xf32>, i32 -> vector<256x128xf32>
    %c1 = arith.constant 1 : index
    %c0_14 = arith.constant 0 : index
    %c0_15 = arith.constant 0 : index
    %24 = vector.load %arg4[%c1, %c0_14, %c0_15] : memref<5x128x256xf32, #tpu.memory_space<vmem>>, vector<1x128x256xf32>
    %25 = vector.shape_cast %24 : vector<1x128x256xf32> to vector<128x256xf32>
    %cst_16 = arith.constant dense<0.000000e+00> : vector<256x256xf32>
    %26 = tpu.matmul %23, %25, %cst_16 {dimension_numbers = #tpu.dot_dimension_numbers<[1], [0], [0], [1], [0, 0, 1, 1], [], []>} : vector<256x128xf32>, vector<128x256xf32>, vector<256x256xf32> -> vector<256x256xf32>
    %27 = arith.addf %22, %26 : vector<256x256xf32>
    %c255_i32 = arith.constant 255 : i32
    %28 = tpu.dynamic_rotate %14 by %c255_i32 dim 0 : vector<256x128xf32>, i32 -> vector<256x128xf32>
    %c3 = arith.constant 3 : index
    %c0_17 = arith.constant 0 : index
    %c0_18 = arith.constant 0 : index
    %29 = vector.load %arg4[%c3, %c0_17, %c0_18] : memref<5x128x256xf32, #tpu.memory_space<vmem>>, vector<1x128x256xf32>
    %30 = vector.shape_cast %29 : vector<1x128x256xf32> to vector<128x256xf32>
    %cst_19 = arith.constant dense<0.000000e+00> : vector<256x256xf32>
    %31 = tpu.matmul %28, %30, %cst_19 {dimension_numbers = #tpu.dot_dimension_numbers<[1], [0], [0], [1], [0, 0, 1, 1], [], []>} : vector<256x128xf32>, vector<128x256xf32>, vector<256x256xf32> -> vector<256x256xf32>
    %32 = arith.addf %27, %31 : vector<256x256xf32>
    %c254_i32 = arith.constant 254 : i32
    %33 = tpu.dynamic_rotate %14 by %c254_i32 dim 0 : vector<256x128xf32>, i32 -> vector<256x128xf32>
    %c4 = arith.constant 4 : index
    %c0_20 = arith.constant 0 : index
    %c0_21 = arith.constant 0 : index
    %34 = vector.load %arg4[%c4, %c0_20, %c0_21] : memref<5x128x256xf32, #tpu.memory_space<vmem>>, vector<1x128x256xf32>
    %35 = vector.shape_cast %34 : vector<1x128x256xf32> to vector<128x256xf32>
    %cst_22 = arith.constant dense<0.000000e+00> : vector<256x256xf32>
    %36 = tpu.matmul %33, %35, %cst_22 {dimension_numbers = #tpu.dot_dimension_numbers<[1], [0], [0], [1], [0, 0, 1, 1], [], []>} : vector<256x128xf32>, vector<128x256xf32>, vector<256x256xf32> -> vector<256x256xf32>
    %37 = arith.addf %32, %36 : vector<256x256xf32>
    %c0_23 = arith.constant 0 : index
    %c0_24 = arith.constant 0 : index
    %38 = vector.load %arg5[%c0_23, %c0_24] : memref<1x256xf32, #tpu.memory_space<vmem>>, vector<1x256xf32>
    %39 = vector.broadcast %38 : vector<1x256xf32> to vector<256x256xf32>
    %40 = arith.addf %37, %39 : vector<256x256xf32>
    %c255_i32_25 = arith.constant 255 : i32
    %41 = tpu.dynamic_rotate %40 by %c255_i32_25 dim 0 : vector<256x256xf32>, i32 -> vector<256x256xf32>
    %42 = arith.maximumf %40, %41 : vector<256x256xf32>
    %c236_i32 = arith.constant 236 : i32
    %43 = tpu.dynamic_rotate %42 by %c236_i32 dim 1 : vector<256x256xf32>, i32 -> vector<256x256xf32>
    %44 = arith.maximumf %42, %43 : vector<256x256xf32>
    %cst_26 = arith.constant 0.000000e+00 : f32
    %45 = vector.broadcast %cst_26 : f32 to vector<256x256xf32>
    %46 = arith.maximumf %44, %45 : vector<256x256xf32>
    %47 = vector.shape_cast %46 : vector<256x256xf32> to vector<16x16x256xf32>
    %48 = vector.extract_strided_slice %47 {offsets = [0, 0, 0], sizes = [16, 1, 256], strides = [1, 1, 1]} : vector<16x16x256xf32> to vector<16x1x256xf32>
    %49 = vector.shape_cast %48 : vector<16x1x256xf32> to vector<16x256xf32>
    %50 = vector.extract_strided_slice %47 {offsets = [0, 2, 0], sizes = [16, 1, 256], strides = [1, 1, 1]} : vector<16x16x256xf32> to vector<16x1x256xf32>
    %51 = vector.shape_cast %50 : vector<16x1x256xf32> to vector<16x256xf32>
    %52 = vector.extract_strided_slice %47 {offsets = [0, 4, 0], sizes = [16, 1, 256], strides = [1, 1, 1]} : vector<16x16x256xf32> to vector<16x1x256xf32>
    %53 = vector.shape_cast %52 : vector<16x1x256xf32> to vector<16x256xf32>
    %54 = vector.extract_strided_slice %47 {offsets = [0, 6, 0], sizes = [16, 1, 256], strides = [1, 1, 1]} : vector<16x16x256xf32> to vector<16x1x256xf32>
    %55 = vector.shape_cast %54 : vector<16x1x256xf32> to vector<16x256xf32>
    %56 = tpu.concatenate %49, %51, %53, %55 in 1 : vector<16x256xf32>, vector<16x256xf32>, vector<16x256xf32>, vector<16x256xf32> -> vector<16x1024xf32>
    %c0_27 = arith.constant 0 : index
    %c0_28 = arith.constant 0 : index
    %57 = vector.load %arg6[%c0_27, %c0_28] : memref<1024x128xf32, #tpu.memory_space<vmem>>, vector<1024x128xf32>
    %cst_29 = arith.constant dense<0.000000e+00> : vector<16x128xf32>
    %58 = tpu.matmul %56, %57, %cst_29 {dimension_numbers = #tpu.dot_dimension_numbers<[1], [0], [0], [1], [0, 0, 1, 1], [], []>} : vector<16x1024xf32>, vector<1024x128xf32>, vector<16x128xf32> -> vector<16x128xf32>
    %c0_30 = arith.constant 0 : index
    %c0_31 = arith.constant 0 : index
    %59 = vector.load %arg7[%c0_30, %c0_31] : memref<1x128xf32, #tpu.memory_space<vmem>>, vector<1x128xf32>
    %60 = vector.broadcast %59 : vector<1x128xf32> to vector<16x128xf32>
    %61 = arith.addf %58, %60 : vector<16x128xf32>
    %cst_32 = arith.constant 0.000000e+00 : f32
    %62 = vector.broadcast %cst_32 : f32 to vector<16x128xf32>
    %63 = arith.maximumf %61, %62 : vector<16x128xf32>
    %c0_33 = arith.constant 0 : index
    %c0_34 = arith.constant 0 : index
    %64 = vector.load %arg8[%c0_33, %c0_34] : memref<128x128xf32, #tpu.memory_space<vmem>>, vector<128x128xf32>
    %cst_35 = arith.constant dense<0.000000e+00> : vector<16x128xf32>
    %65 = tpu.matmul %63, %64, %cst_35 {dimension_numbers = #tpu.dot_dimension_numbers<[1], [0], [0], [1], [0, 0, 1, 1], [], []>} : vector<16x128xf32>, vector<128x128xf32>, vector<16x128xf32> -> vector<16x128xf32>
    %c0_36 = arith.constant 0 : index
    %c0_37 = arith.constant 0 : index
    %66 = vector.load %arg9[%c0_36, %c0_37] : memref<1x128xf32, #tpu.memory_space<vmem>>, vector<1x128xf32>
    %67 = vector.broadcast %66 : vector<1x128xf32> to vector<16x128xf32>
    %68 = arith.addf %65, %67 : vector<16x128xf32>
    %cst_38 = arith.constant dense<0xFF800000> : vector<16xf32>
    %69 = vector.multi_reduction <maximumf>, %68, %cst_38 [1] : vector<16x128xf32> to vector<16xf32>
    %70 = vector.shape_cast %69 : vector<16xf32> to vector<16x1xf32>
    %71 = vector.broadcast %70 : vector<16x1xf32> to vector<16x128xf32>
    %72 = arith.subf %68, %71 : vector<16x128xf32>
    %73 = math.exp %72 : vector<16x128xf32>
    %cst_39 = arith.constant dense<0.000000e+00> : vector<16xf32>
    %74 = vector.multi_reduction <add>, %73, %cst_39 [1] : vector<16x128xf32> to vector<16xf32>
    %75 = vector.shape_cast %74 : vector<16xf32> to vector<16x1xf32>
    %76 = math.log %75 : vector<16x1xf32>
    %77 = vector.broadcast %76 : vector<16x1xf32> to vector<16x128xf32>
    %78 = arith.subf %72, %77 : vector<16x128xf32>
    %c0_40 = arith.constant 0 : index
    %c0_41 = arith.constant 0 : index
    %79 = vector.load %arg10[%c0_40, %c0_41] : memref<16x128xf32, #tpu.memory_space<vmem>>, vector<16x128xf32>
    tpu.vector_store %arg10[%c0_40, %c0_41], %78 {strides = array<i32>} : memref<16x128xf32, #tpu.memory_space<vmem>>, vector<16x128xf32>,
    return
  }
  func.func @transform_0(%arg0: i32) -> (i32, i32) {
    %c0_i32 = arith.constant 0 : i32
    %c0_i32_0 = arith.constant 0 : i32
    return %arg0, %c0_i32 : i32, i32
  }
  func.func @transform_1(%arg0: i32) -> (i32, i32) {
    %c0_i32 = arith.constant 0 : i32
    %c0_i32_0 = arith.constant 0 : i32
    %c0_i32_1 = arith.constant 0 : i32
    return %c0_i32, %c0_i32_0 : i32, i32
  }
  func.func @transform_2(%arg0: i32) -> (i32, i32) {
    %c0_i32 = arith.constant 0 : i32
    %c0_i32_0 = arith.constant 0 : i32
    %c0_i32_1 = arith.constant 0 : i32
    return %c0_i32, %c0_i32_0 : i32, i32
  }
  func.func @transform_3(%arg0: i32) -> (i32, i32, i32) {
    %c0_i32 = arith.constant 0 : i32
    %c0_i32_0 = arith.constant 0 : i32
    %c0_i32_1 = arith.constant 0 : i32
    %c0_i32_2 = arith.constant 0 : i32
    return %c0_i32, %c0_i32_0, %c0_i32_1 : i32, i32, i32
  }
  func.func @transform_4(%arg0: i32) -> (i32, i32) {
    %c0_i32 = arith.constant 0 : i32
    %c0_i32_0 = arith.constant 0 : i32
    %c0_i32_1 = arith.constant 0 : i32
    return %c0_i32, %c0_i32_0 : i32, i32
  }
  func.func @transform_5(%arg0: i32) -> (i32, i32) {
    %c0_i32 = arith.constant 0 : i32
    %c0_i32_0 = arith.constant 0 : i32
    %c0_i32_1 = arith.constant 0 : i32
    return %c0_i32, %c0_i32_0 : i32, i32
  }
  func.func @transform_6(%arg0: i32) -> (i32, i32) {
    %c0_i32 = arith.constant 0 : i32
    %c0_i32_0 = arith.constant 0 : i32
    %c0_i32_1 = arith.constant 0 : i32
    return %c0_i32, %c0_i32_0 : i32, i32
  }
  func.func @transform_7(%arg0: i32) -> (i32, i32) {
    %c0_i32 = arith.constant 0 : i32
    %c0_i32_0 = arith.constant 0 : i32
    %c0_i32_1 = arith.constant 0 : i32
    return %c0_i32, %c0_i32_0 : i32, i32
  }
  func.func @transform_8(%arg0: i32) -> (i32, i32) {
    %c0_i32 = arith.constant 0 : i32
    %c0_i32_0 = arith.constant 0 : i32
    %c0_i32_1 = arith.constant 0 : i32
    return %c0_i32, %c0_i32_0 : i32, i32
  }
  func.func @transform_9(%arg0: i32) -> (i32, i32) {
    %c0_i32 = arith.constant 0 : i32
    %c0_i32_0 = arith.constant 0 : i32
    return %arg0, %c0_i32 : i32, i32
  }
}

</mosaic_0001>

<llo_original>
// kernel: mnist_net3_forward.1
$region0: #{mnist_net3_forward.1}
  #allocation0 [shape = 'u32[]', space=smem, size = 0x4, offset = 0x4, fixed_abs, tag = 'smem constant byte address 0x4 - core index']
  #allocation1 [shape = 'u32[144,128]{1,0:T(1,128)}', space=vmem, size = 0x12000, scoped, tag = 'internal scratch']
  %s0 = inlined_call_operand.vmem [shape: f32[256,160], index: 0, kind: input, shape index: {}]
  %s1 = inlined_call_operand.vmem [shape: f32[160,128], index: 1, kind: input, shape index: {}]
  %s2 = inlined_call_operand.vmem [shape: f32[1,128], index: 2, kind: input, shape index: {}]
  %s3 = inlined_call_operand.vmem [shape: f32[5,128,256], index: 3, kind: input, shape index: {}]
  %s4 = inlined_call_operand.vmem [shape: f32[1,256], index: 4, kind: input, shape index: {}]
  %s5 = inlined_call_operand.vmem [shape: f32[1024,128], index: 5, kind: input, shape index: {}]
  %s6 = inlined_call_operand.vmem [shape: f32[1,128], index: 6, kind: input, shape index: {}]
  %s7 = inlined_call_operand.vmem [shape: f32[128,128], index: 7, kind: input, shape index: {}]
  %s8 = inlined_call_operand.vmem [shape: f32[1,128], index: 8, kind: input, shape index: {}]
  %s9 = inlined_call_operand.vmem [shape: f32[16,128], index: 9, kind: output, shape index: {}]
  %s10 = sld [smem:[#allocation0]]
  $region46: #{mnist_net3_forward.1} parent=0
    _
  %s12 = ssub.s32 1, %s10
  %s13 = scalar_select 0, %s12, %s10
  // Predicated region
  $region2: #{mnist_net3_forward.1} parent=0 // pred_check
    _
  $region3: #{mnist_net3_forward.1} parent=0 // pred_check_branch
    %15 = sbr.rel (0) target = $region5
  $region4: #{mnist_net3_forward.1} parent=0 // pred_region
    _
  $region5: #{mnist_net3_forward.1} parent=0 // pred_fallthru
    _
  // Predicated region
  $region6: #{mnist_net3_forward.1} parent=0 // pred_check
    _
  $region7: #{mnist_net3_forward.1} parent=0 // pred_check_branch
    %17 = sbr.rel (0) target = $region9
  $region8: #{mnist_net3_forward.1} parent=0 // pred_region
    _
  $region9: #{mnist_net3_forward.1} parent=0 // pred_fallthru
    _
  // Predicated region
  $region10: #{mnist_net3_forward.1} parent=0 // pred_check
    _
  $region11: #{mnist_net3_forward.1} parent=0 // pred_check_branch
    %19 = sbr.rel (0) target = $region13
  $region12: #{mnist_net3_forward.1} parent=0 // pred_region
    _
  $region13: #{mnist_net3_forward.1} parent=0 // pred_fallthru
    _
  // Predicated region
  $region14: #{mnist_net3_forward.1} parent=0 // pred_check
    _
  $region15: #{mnist_net3_forward.1} parent=0 // pred_check_branch
    %21 = sbr.rel (0) target = $region17
  $region16: #{mnist_net3_forward.1} parent=0 // pred_region
    _
  $region17: #{mnist_net3_forward.1} parent=0 // pred_fallthru
    _
  // Predicated region
  $region18: #{mnist_net3_forward.1} parent=0 // pred_check
    _
  $region19: #{mnist_net3_forward.1} parent=0 // pred_check_branch
    %23 = sbr.rel (0) target = $region21
  $region20: #{mnist_net3_forward.1} parent=0 // pred_region
    _
  $region21: #{mnist_net3_forward.1} parent=0 // pred_fallthru
    _
  // Predicated region
  $region22: #{mnist_net3_forward.1} parent=0 // pred_check
    _
  $region23: #{mnist_net3_forward.1} parent=0 // pred_check_branch
    %25 = sbr.rel (0) target = $region25
  $region24: #{mnist_net3_forward.1} parent=0 // pred_region
    _
  $region25: #{mnist_net3_forward.1} parent=0 // pred_fallthru
    _
  // Predicated region
  $region26: #{mnist_net3_forward.1} parent=0 // pred_check
    _
  $region27: #{mnist_net3_forward.1} parent=0 // pred_check_branch
    %27 = sbr.rel (0) target = $region29
  $region28: #{mnist_net3_forward.1} parent=0 // pred_region
    _
  $region29: #{mnist_net3_forward.1} parent=0 // pred_fallthru
    _
  // Predicated region
  $region30: #{mnist_net3_forward.1} parent=0 // pred_check
    _
  $region31: #{mnist_net3_forward.1} parent=0 // pred_check_branch
    %29 = sbr.rel (0) target = $region33
  $region32: #{mnist_net3_forward.1} parent=0 // pred_region
    _
  $region33: #{mnist_net3_forward.1} parent=0 // pred_fallthru
    _
  // Predicated region
  $region34: #{mnist_net3_forward.1} parent=0 // pred_check
    _
  $region35: #{mnist_net3_forward.1} parent=0 // pred_check_branch
    %31 = sbr.rel (0) target = $region37
  $region36: #{mnist_net3_forward.1} parent=0 // pred_region
    _
  $region37: #{mnist_net3_forward.1} parent=0 // pred_fallthru
    _
  %v32 = vld [vmem:[%s0] sm:$0xff]
  %v33 = vld [vmem:[%s0 + $0x8] sm:$0xff]
  %v34 = vld [vmem:[%s0 + $0x10] sm:$0xff]
  %v35 = vld [vmem:[%s0 + $0x18] sm:$0xff]
  %v36 = vld [vmem:[%s0 + $0x20] sm:$0xff]
  %v37 = vld [vmem:[%s0 + $0x28] sm:$0xff]
  %v38 = vld [vmem:[%s0 + $0x30] sm:$0xff]
  %v39 = vld [vmem:[%s0 + $0x38] sm:$0xff]
  %v40 = vld [vmem:[%s0 + $0x40] sm:$0xff]
  %v41 = vld [vmem:[%s0 + $0x48] sm:$0xff]
  %v42 = vld [vmem:[%s0 + $0x50] sm:$0xff]
  %v43 = vld [vmem:[%s0 + $0x58] sm:$0xff]
  %v44 = vld [vmem:[%s0 + $0x60] sm:$0xff]
  %v45 = vld [vmem:[%s0 + $0x68] sm:$0xff]
  %v46 = vld [vmem:[%s0 + $0x70] sm:$0xff]
  %v47 = vld [vmem:[%s0 + $0x78] sm:$0xff]
  %v48 = vld [vmem:[%s0 + $0x80] sm:$0xff]
  %v49 = vld [vmem:[%s0 + $0x88] sm:$0xff]
  %v50 = vld [vmem:[%s0 + $0x90] sm:$0xff]
  %v51 = vld [vmem:[%s0 + $0x98] sm:$0xff]
  %v52 = vld [vmem:[%s0 + $0xa0] sm:$0xff]
  %v53 = vld [vmem:[%s0 + $0xa8] sm:$0xff]
  %v54 = vld [vmem:[%s0 + $0xb0] sm:$0xff]
  %v55 = vld [vmem:[%s0 + $0xb8] sm:$0xff]
  %v56 = vld [vmem:[%s0 + $0xc0] sm:$0xff]
  %v57 = vld [vmem:[%s0 + $0xc8] sm:$0xff]
  %v58 = vld [vmem:[%s0 + $0xd0] sm:$0xff]
  %v59 = vld [vmem:[%s0 + $0xd8] sm:$0xff]
  %v60 = vld [vmem:[%s0 + $0xe0] sm:$0xff]
  %v61 = vld [vmem:[%s0 + $0xe8] sm:$0xff]
  %v62 = vld [vmem:[%s0 + $0xf0] sm:$0xff]
  %v63 = vld [vmem:[%s0 + $0xf8] sm:$0xff]
  %v64 = vld [vmem:[%s0 + $0x100] sm:$0xff]
  %v65 = vld [vmem:[%s0 + $0x108] sm:$0xff]
  %v66 = vld [vmem:[%s0 + $0x110] sm:$0xff]
  %v67 = vld [vmem:[%s0 + $0x118] sm:$0xff]
  %v68 = vld [vmem:[%s0 + $0x120] sm:$0xff]
  %v69 = vld [vmem:[%s0 + $0x128] sm:$0xff]
  %v70 = vld [vmem:[%s0 + $0x130] sm:$0xff]
  %v71 = vld [vmem:[%s0 + $0x138] sm:$0xff]
  %v72 = vld [vmem:[%s0 + $0x140] sm:$0xff]
  %v73 = vld [vmem:[%s0 + $0x148] sm:$0xff]
  %v74 = vld [vmem:[%s0 + $0x150] sm:$0xff]
  %v75 = vld [vmem:[%s0 + $0x158] sm:$0xff]
  %v76 = vld [vmem:[%s0 + $0x160] sm:$0xff]
  %v77 = vld [vmem:[%s0 + $0x168] sm:$0xff]
  %v78 = vld [vmem:[%s0 + $0x170] sm:$0xff]
  %v79 = vld [vmem:[%s0 + $0x178] sm:$0xff]
  %v80 = vld [vmem:[%s0 + $0x180] sm:$0xff]
  %v81 = vld [vmem:[%s0 + $0x188] sm:$0xff]
  %v82 = vld [vmem:[%s0 + $0x190] sm:$0xff]
  %v83 = vld [vmem:[%s0 + $0x198] sm:$0xff]
  %v84 = vld [vmem:[%s0 + $0x1a0] sm:$0xff]
  %v85 = vld [vmem:[%s0 + $0x1a8] sm:$0xff]
  %v86 = vld [vmem:[%s0 + $0x1b0] sm:$0xff]
  %v87 = vld [vmem:[%s0 + $0x1b8] sm:$0xff]
  %v88 = vld [vmem:[%s0 + $0x1c0] sm:$0xff]
  %v89 = vld [vmem:[%s0 + $0x1c8] sm:$0xff]
  %v90 = vld [vmem:[%s0 + $0x1d0] sm:$0xff]
  %v91 = vld [vmem:[%s0 + $0x1d8] sm:$0xff]
  %v92 = vld [vmem:[%s0 + $0x1e0] sm:$0xff]
  %v93 = vld [vmem:[%s0 + $0x1e8] sm:$0xff]
  %v94 = vld [vmem:[%s0 + $0x1f0] sm:$0xff]
  %v95 = vld [vmem:[%s0 + $0x1f8] sm:$0xff]
  %v96 = vld [vmem:[%s1] sm:$0xff]
  %v97 = vld [vmem:[%s1 + $0x8] sm:$0xff]
  %v98 = vld [vmem:[%s1 + $0x10] sm:$0xff]
  %v99 = vld [vmem:[%s1 + $0x18] sm:$0xff]
  %v100 = vld [vmem:[%s1 + $0x20] sm:$0xff]
  %v101 = vld [vmem:[%s1 + $0x28] sm:$0xff]
  %v102 = vld [vmem:[%s1 + $0x30] sm:$0xff]
  %v103 = vld [vmem:[%s1 + $0x38] sm:$0xff]
  %v104 = vld [vmem:[%s1 + $0x40] sm:$0xff]
  %v105 = vld [vmem:[%s1 + $0x48] sm:$0xff]
  %v106 = vld [vmem:[%s1 + $0x50] sm:$0xff]
  %v107 = vld [vmem:[%s1 + $0x58] sm:$0xff]
  %v108 = vld [vmem:[%s1 + $0x60] sm:$0xff]
  %v109 = vld [vmem:[%s1 + $0x68] sm:$0xff]
  %v110 = vld [vmem:[%s1 + $0x70] sm:$0xff]
  %v111 = vld [vmem:[%s1 + $0x78] sm:$0xff]
  %v112 = vld [vmem:[%s1 + $0x80] sm:$0xff]
  %v113 = vld [vmem:[%s1 + $0x88] sm:$0xff]
  %v114 = vld [vmem:[%s1 + $0x90] sm:$0xff]
  %v115 = vld [vmem:[%s1 + $0x98] sm:$0xff]
  %v116 = vld [vmem:[%s2] sm:$0x1]
  %v118 = vlaneseq
  %v119 = vshrl.u32 %v118, 7
  %v120 = vsub.s32 0, %v119
  %v121 = vrot.slane %v116, %v120
  %vm123 = vcmask 261120
  %v125 = vsel %vm123, %v33, 0
  %v128 = vsel %vm123, %v35, 0
  %v131 = vsel %vm123, %v37, 0
  %v134 = vsel %vm123, %v39, 0
  %v137 = vsel %vm123, %v41, 0
  %v140 = vsel %vm123, %v43, 0
  %v143 = vsel %vm123, %v45, 0
  %v146 = vsel %vm123, %v47, 0
  %v149 = vsel %vm123, %v49, 0
  %v152 = vsel %vm123, %v51, 0
  %v155 = vsel %vm123, %v53, 0
  %v158 = vsel %vm123, %v55, 0
  %v161 = vsel %vm123, %v57, 0
  %v164 = vsel %vm123, %v59, 0
  %v167 = vsel %vm123, %v61, 0
  %v170 = vsel %vm123, %v63, 0
  %v173 = vsel %vm123, %v65, 0
  %v176 = vsel %vm123, %v67, 0
  %v179 = vsel %vm123, %v69, 0
  %v182 = vsel %vm123, %v71, 0
  %v185 = vsel %vm123, %v73, 0
  %v188 = vsel %vm123, %v75, 0
  %v191 = vsel %vm123, %v77, 0
  %v194 = vsel %vm123, %v79, 0
  %v197 = vsel %vm123, %v81, 0
  %v200 = vsel %vm123, %v83, 0
  %v203 = vsel %vm123, %v85, 0
  %v206 = vsel %vm123, %v87, 0
  %v209 = vsel %vm123, %v89, 0
  %v212 = vsel %vm123, %v91, 0
  %v215 = vsel %vm123, %v93, 0
  %v218 = vsel %vm123, %v95, 0
  %220 = vmatprep.subr.mxu0 0.0
  %221 = vmatpush1.msra.mxu0 %v96
  %222 = vmatprep.subr.mxu0 0.0
  %223 = vmatpush1.msra.mxu0 %v97
  %224 = vmatprep.subr.mxu0 0.0
  %225 = vmatpush1.msra.mxu0 %v98
  %226 = vmatprep.subr.mxu0 0.0
  %227 = vmatpush1.msra.mxu0 %v99
  %228 = vmatprep.subr.mxu0 0.0
  %229 = vmatpush1.msra.mxu0 %v100
  %230 = vmatprep.subr.mxu0 0.0
  %231 = vmatpush1.msra.mxu0 %v101
  %232 = vmatprep.subr.mxu0 0.0
  %233 = vmatpush1.msra.mxu0 %v102
  %234 = vmatprep.subr.mxu0 0.0
  %235 = vmatpush1.msra.mxu0 %v103
  %236 = vmatprep.subr.mxu0 0.0
  %237 = vmatpush1.msra.mxu0 %v104
  %238 = vmatprep.subr.mxu0 0.0
  %239 = vmatpush1.msra.mxu0 %v105
  %240 = vmatprep.subr.mxu0 0.0
  %241 = vmatpush1.msra.mxu0 %v106
  %242 = vmatprep.subr.mxu0 0.0
  %243 = vmatpush1.msra.mxu0 %v107
  %244 = vmatprep.subr.mxu0 0.0
  %245 = vmatpush1.msra.mxu0 %v108
  %246 = vmatprep.subr.mxu0 0.0
  %247 = vmatpush1.msra.mxu0 %v109
  %248 = vmatprep.subr.mxu0 0.0
  %249 = vmatpush1.msra.mxu0 %v110
  %250 = vmatprep.subr.mxu0 0.0
  %251 = vmatpush1.msra.mxu0 %v111
  %252 = vmatprep.subr.mxu0 0.0
  %253 = vmatpush1.msra.mxu0 %v112
  %254 = vmatprep.subr.mxu0 0.0
  %255 = vmatpush1.msra.mxu0 %v113
  %256 = vmatprep.subr.mxu0 0.0
  %257 = vmatpush1.msra.mxu0 %v114
  %258 = vmatprep.subr.mxu0 0.0
  %259 = vmatpush1.msra.mxu0 %v115
  %260 = vmatprep.subr.mxu0 0.0
  %261 = vmatpush1.msra.mxu0 0.0
  %262 = vmatprep.subr.mxu0 0.0
  %263 = vmatpush1.msra.mxu0 0.0
  %264 = vmatprep.subr.mxu0 0.0
  %265 = vmatpush1.msra.mxu0 0.0
  %266 = vmatprep.subr.mxu0 0.0
  %267 = vmatpush1.msra.mxu0 0.0
  %268 = vmatprep.subr.mxu0 0.0
  %269 = vmatpush1.msra.mxu0 0.0
  %270 = vmatprep.subr.mxu0 0.0
  %271 = vmatpush1.msra.mxu0 0.0
  %272 = vmatprep.subr.mxu0 0.0
  %273 = vmatpush1.msra.mxu0 0.0
  %274 = vmatprep.subr.mxu0 0.0
  %275 = vmatpush1.msra.mxu0 0.0
  %276 = vmatprep.subr.mxu0 0.0
  %277 = vmatpush1.msra.mxu0 0.0
  %278 = vmatprep.subr.mxu0 0.0
  %279 = vmatpush1.msra.mxu0 0.0
  %280 = vmatprep.subr.mxu0 0.0
  %281 = vmatpush1.msra.mxu0 0.0
  %282 = vmatprep.subr.mxu0 0.0
  %283 = vmatpush1.msra.mxu0 0.0
  %284 = vmatprep.mubr.f32.mxu0 %v125
  %285 = vmatmul.mubr.f32.gmra.mrb[0].mxu0 %v32
  %v286 = vpop.f32.mrb[0].mxu0
  %v287 = vadd.f32 %v121, %v286
  %v288 = vpop.f32.mrb[0].mxu0
  %289 = vmatprep.mubr.f32.mxu0 %v128
  %290 = vmatmul.mubr.f32.gmra.mrb[0].mxu0 %v34
  %v291 = vpop.f32.mrb[0].mxu0
  %v292 = vadd.f32 %v121, %v291
  %v293 = vpop.f32.mrb[0].mxu0
  %294 = vmatprep.mubr.f32.mxu0 %v131
  %295 = vmatmul.mubr.f32.gmra.mrb[0].mxu0 %v36
  %v296 = vpop.f32.mrb[0].mxu0
  %v297 = vadd.f32 %v121, %v296
  %v298 = vpop.f32.mrb[0].mxu0
  %299 = vmatprep.mubr.f32.mxu0 %v134
  %300 = vmatmul.mubr.f32.gmra.mrb[0].mxu0 %v38
  %v301 = vpop.f32.mrb[0].mxu0
  %v302 = vadd.f32 %v121, %v301
  %v303 = vpop.f32.mrb[0].mxu0
  %304 = vmatprep.mubr.f32.mxu0 %v137
  %305 = vmatmul.mubr.f32.gmra.mrb[0].mxu0 %v40
  %v306 = vpop.f32.mrb[0].mxu0
  %v307 = vadd.f32 %v121, %v306
  %v308 = vpop.f32.mrb[0].mxu0
  %309 = vmatprep.mubr.f32.mxu0 %v140
  %310 = vmatmul.mubr.f32.gmra.mrb[0].mxu0 %v42
  %v311 = vpop.f32.mrb[0].mxu0
  %v312 = vadd.f32 %v121, %v311
  %v313 = vpop.f32.mrb[0].mxu0
  %314 = vmatprep.mubr.f32.mxu0 %v143
  %315 = vmatmul.mubr.f32.gmra.mrb[0].mxu0 %v44
  %v316 = vpop.f32.mrb[0].mxu0
  %v317 = vadd.f32 %v121, %v316
  %v318 = vpop.f32.mrb[0].mxu0
  %319 = vmatprep.mubr.f32.mxu0 %v146
  %320 = vmatmul.mubr.f32.gmra.mrb[0].mxu0 %v46
  %v321 = vpop.f32.mrb[0].mxu0
  %v322 = vadd.f32 %v121, %v321
  %v323 = vpop.f32.mrb[0].mxu0
  %324 = vmatprep.mubr.f32.mxu0 %v149
  %325 = vmatmul.mubr.f32.gmra.mrb[0].mxu0 %v48
  %v326 = vpop.f32.mrb[0].mxu0
  %v327 = vadd.f32 %v121, %v326
  %v328 = vpop.f32.mrb[0].mxu0
  %329 = vmatprep.mubr.f32.mxu0 %v152
  %330 = vmatmul.mubr.f32.gmra.mrb[0].mxu0 %v50
  %v331 = vpop.f32.mrb[0].mxu0
  %v332 = vadd.f32 %v121, %v331
  %v333 = vpop.f32.mrb[0].mxu0
  %334 = vmatprep.mubr.f32.mxu0 %v155
  %335 = vmatmul.mubr.f32.gmra.mrb[0].mxu0 %v52
  %v336 = vpop.f32.mrb[0].mxu0
  %v337 = vadd.f32 %v121, %v336
  %v338 = vpop.f32.mrb[0].mxu0
  %339 = vmatprep.mubr.f32.mxu0 %v158
  %340 = vmatmul.mubr.f32.gmra.mrb[0].mxu0 %v54
  %v341 = vpop.f32.mrb[0].mxu0
  %v342 = vadd.f32 %v121, %v341
  %v343 = vpop.f32.mrb[0].mxu0
  %344 = vmatprep.mubr.f32.mxu0 %v161
  %345 = vmatmul.mubr.f32.gmra.mrb[0].mxu0 %v56
  %v346 = vpop.f32.mrb[0].mxu0
  %v347 = vadd.f32 %v121, %v346
  %v348 = vpop.f32.mrb[0].mxu0
  %349 = vmatprep.mubr.f32.mxu0 %v164
  %350 = vmatmul.mubr.f32.gmra.mrb[0].mxu0 %v58
  %v351 = vpop.f32.mrb[0].mxu0
  %v352 = vadd.f32 %v121, %v351
  %v353 = vpop.f32.mrb[0].mxu0
  %354 = vmatprep.mubr.f32.mxu0 %v167
  %355 = vmatmul.mubr.f32.gmra.mrb[0].mxu0 %v60
  %v356 = vpop.f32.mrb[0].mxu0
  %v357 = vadd.f32 %v121, %v356
  %v358 = vpop.f32.mrb[0].mxu0
  %359 = vmatprep.mubr.f32.mxu0 %v170
  %360 = vmatmul.mubr.f32.gmra.mrb[0].mxu0 %v62
  %v361 = vpop.f32.mrb[0].mxu0
  %v362 = vadd.f32 %v121, %v361
  %v363 = vpop.f32.mrb[0].mxu0
  %364 = vmatprep.mubr.f32.mxu0 %v173
  %365 = vmatmul.mubr.f32.gmra.mrb[0].mxu0 %v64
  %v366 = vpop.f32.mrb[0].mxu0
  %v367 = vadd.f32 %v121, %v366
  %v368 = vpop.f32.mrb[0].mxu0
  %369 = vmatprep.mubr.f32.mxu0 %v176
  %370 = vmatmul.mubr.f32.gmra.mrb[0].mxu0 %v66
  %v371 = vpop.f32.mrb[0].mxu0
  %v372 = vadd.f32 %v121, %v371
  %v373 = vpop.f32.mrb[0].mxu0
  %374 = vmatprep.mubr.f32.mxu0 %v179
  %375 = vmatmul.mubr.f32.gmra.mrb[0].mxu0 %v68
  %v376 = vpop.f32.mrb[0].mxu0
  %v377 = vadd.f32 %v121, %v376
  %v378 = vpop.f32.mrb[0].mxu0
  %379 = vmatprep.mubr.f32.mxu0 %v182
  %380 = vmatmul.mubr.f32.gmra.mrb[0].mxu0 %v70
  %v381 = vpop.f32.mrb[0].mxu0
  %v382 = vadd.f32 %v121, %v381
  %v383 = vpop.f32.mrb[0].mxu0
  %384 = vmatprep.mubr.f32.mxu0 %v185
  %385 = vmatmul.mubr.f32.gmra.mrb[0].mxu0 %v72
  %v386 = vpop.f32.mrb[0].mxu0
  %v387 = vadd.f32 %v121, %v386
  %v388 = vpop.f32.mrb[0].mxu0
  %389 = vmatprep.mubr.f32.mxu0 %v188
  %390 = vmatmul.mubr.f32.gmra.mrb[0].mxu0 %v74
  %v391 = vpop.f32.mrb[0].mxu0
  %v392 = vadd.f32 %v121, %v391
  %v393 = vpop.f32.mrb[0].mxu0
  %394 = vmatprep.mubr.f32.mxu0 %v191
  %395 = vmatmul.mubr.f32.gmra.mrb[0].mxu0 %v76
  %v396 = vpop.f32.mrb[0].mxu0
  %v397 = vadd.f32 %v121, %v396
  %v398 = vpop.f32.mrb[0].mxu0
  %399 = vmatprep.mubr.f32.mxu0 %v194
  %400 = vmatmul.mubr.f32.gmra.mrb[0].mxu0 %v78
  %v401 = vpop.f32.mrb[0].mxu0
  %v402 = vadd.f32 %v121, %v401
  %v403 = vpop.f32.mrb[0].mxu0
  %404 = vmatprep.mubr.f32.mxu0 %v197
  %405 = vmatmul.mubr.f32.gmra.mrb[0].mxu0 %v80
  %v406 = vpop.f32.mrb[0].mxu0
  %v407 = vadd.f32 %v121, %v406
  %v408 = vpop.f32.mrb[0].mxu0
  %409 = vmatprep.mubr.f32.mxu0 %v200
  %410 = vmatmul.mubr.f32.gmra.mrb[0].mxu0 %v82
  %v411 = vpop.f32.mrb[0].mxu0
  %v412 = vadd.f32 %v121, %v411
  %v413 = vpop.f32.mrb[0].mxu0
  %414 = vmatprep.mubr.f32.mxu0 %v203
  %415 = vmatmul.mubr.f32.gmra.mrb[0].mxu0 %v84
  %v416 = vpop.f32.mrb[0].mxu0
  %v417 = vadd.f32 %v121, %v416
  %v418 = vpop.f32.mrb[0].mxu0
  %419 = vmatprep.mubr.f32.mxu0 %v206
  %420 = vmatmul.mubr.f32.gmra.mrb[0].mxu0 %v86
  %v421 = vpop.f32.mrb[0].mxu0
  %v422 = vadd.f32 %v121, %v421
  %v423 = vpop.f32.mrb[0].mxu0
  %424 = vmatprep.mubr.f32.mxu0 %v209
  %425 = vmatmul.mubr.f32.gmra.mrb[0].mxu0 %v88
  %v426 = vpop.f32.mrb[0].mxu0
  %v427 = vadd.f32 %v121, %v426
  %v428 = vpop.f32.mrb[0].mxu0
  %429 = vmatprep.mubr.f32.mxu0 %v212
  %430 = vmatmul.mubr.f32.gmra.mrb[0].mxu0 %v90
  %v431 = vpop.f32.mrb[0].mxu0
  %v432 = vadd.f32 %v121, %v431
  %v433 = vpop.f32.mrb[0].mxu0
  %434 = vmatprep.mubr.f32.mxu0 %v215
  %435 = vmatmul.mubr.f32.gmra.mrb[0].mxu0 %v92
  %v436 = vpop.f32.mrb[0].mxu0
  %v437 = vadd.f32 %v121, %v436
  %v438 = vpop.f32.mrb[0].mxu0
  %439 = vmatprep.mubr.f32.mxu0 %v218
  %440 = vmatmul.mubr.f32.gmra.mrb[0].mxu0 %v94
  %v441 = vpop.f32.mrb[0].mxu0
  %v442 = vadd.f32 %v121, %v441
  %v443 = vpop.f32.mrb[0].mxu0
  %444 = vdwg.mxu0
  %v445 = vmax.f32 %v287, 0.0
  %v446 = vmax.f32 %v292, 0.0
  %v447 = vmax.f32 %v297, 0.0
  %v448 = vmax.f32 %v302, 0.0
  %v449 = vmax.f32 %v307, 0.0
  %v450 = vmax.f32 %v312, 0.0
  %v451 = vmax.f32 %v317, 0.0
  %v452 = vmax.f32 %v322, 0.0
  %v453 = vmax.f32 %v327, 0.0
  %v454 = vmax.f32 %v332, 0.0
  %v455 = vmax.f32 %v337, 0.0
  %v456 = vmax.f32 %v342, 0.0
  %v457 = vmax.f32 %v347, 0.0
  %v458 = vmax.f32 %v352, 0.0
  %v459 = vmax.f32 %v357, 0.0
  %v460 = vmax.f32 %v362, 0.0
  %v461 = vmax.f32 %v367, 0.0
  %v462 = vmax.f32 %v372, 0.0
  %v463 = vmax.f32 %v377, 0.0
  %v464 = vmax.f32 %v382, 0.0
  %v465 = vmax.f32 %v387, 0.0
  %v466 = vmax.f32 %v392, 0.0
  %v467 = vmax.f32 %v397, 0.0
  %v468 = vmax.f32 %v402, 0.0
  %v469 = vmax.f32 %v407, 0.0
  %v470 = vmax.f32 %v412, 0.0
  %v471 = vmax.f32 %v417, 0.0
  %v472 = vmax.f32 %v422, 0.0
  %v473 = vmax.f32 %v427, 0.0
  %v474 = vmax.f32 %v432, 0.0
  %v475 = vmax.f32 %v437, 0.0
  %v476 = vmax.f32 %v442, 0.0
  %v477 = vlaneseq
  %v478 = vshrl.u32 %v477, 7
  %v479 = vadd.s32 %v478, 8
  %v480 = vadd.s32 %v478, 16
  %v481 = vadd.s32 %v478, 24
  %v482 = vadd.s32 %v478, 32
  %v483 = vadd.s32 %v478, 40
  %v484 = vadd.s32 %v478, 48
  %v485 = vadd.s32 %v478, 56
  %v486 = vadd.s32 %v478, 64
  %v487 = vadd.s32 %v478, 72
  %v488 = vadd.s32 %v478, 80
  %v489 = vadd.s32 %v478, 88
  %v490 = vadd.s32 %v478, 96
  %v491 = vadd.s32 %v478, 104
  %v492 = vadd.s32 %v478, 112
  %v493 = vadd.s32 %v478, 120
  %v494 = vadd.s32 %v478, 128
  %v495 = vadd.s32 %v478, 136
  %v496 = vadd.s32 %v478, 144
  %v497 = vadd.s32 %v478, 152
  %v498 = vadd.s32 %v478, 160
  %v499 = vadd.s32 %v478, 168
  %v500 = vadd.s32 %v478, 176
  %v501 = vadd.s32 %v478, 184
  %v502 = vadd.s32 %v478, 192
  %v503 = vadd.s32 %v478, 200
  %v504 = vadd.s32 %v478, 208
  %v505 = vadd.s32 %v478, 216
  %v506 = vadd.s32 %v478, 224
  %v507 = vadd.s32 %v478, 232
  %v508 = vadd.s32 %v478, 240
  %v509 = vadd.s32 %v478, 248
  %v510 = vand.u32 %v478, 15
  %v511 = vand.u32 %v479, 15
  %v512 = vand.u32 %v480, 15
  %v513 = vand.u32 %v481, 15
  %v514 = vand.u32 %v482, 15
  %v515 = vand.u32 %v483, 15
  %v516 = vand.u32 %v484, 15
  %v517 = vand.u32 %v485, 15
  %v518 = vand.u32 %v486, 15
  %v519 = vand.u32 %v487, 15
  %v520 = vand.u32 %v488, 15
  %v521 = vand.u32 %v489, 15
  %v522 = vand.u32 %v490, 15
  %v523 = vand.u32 %v491, 15
  %v524 = vand.u32 %v492, 15
  %v525 = vand.u32 %v493, 15
  %v526 = vand.u32 %v494, 15
  %v527 = vand.u32 %v495, 15
  %v528 = vand.u32 %v496, 15
  %v529 = vand.u32 %v497, 15
  %v530 = vand.u32 %v498, 15
  %v531 = vand.u32 %v499, 15
  %v532 = vand.u32 %v500, 15
  %v533 = vand.u32 %v501, 15
  %v534 = vand.u32 %v502, 15
  %v535 = vand.u32 %v503, 15
  %v536 = vand.u32 %v504, 15
  %v537 = vand.u32 %v505, 15
  %v538 = vand.u32 %v506, 15
  %v539 = vand.u32 %v507, 15
  %v540 = vand.u32 %v508, 15
  %v541 = vand.u32 %v509, 15
  %vm542 = vcmp.lt.s32.totalorder %v510, 9
  %vm543 = vcmp.lt.s32.totalorder %v511, 9
  %vm544 = vcmp.lt.s32.totalorder %v512, 9
  %vm545 = vcmp.lt.s32.totalorder %v513, 9
  %vm546 = vcmp.lt.s32.totalorder %v514, 9
  %vm547 = vcmp.lt.s32.totalorder %v515, 9
  %vm548 = vcmp.lt.s32.totalorder %v516, 9
  %vm549 = vcmp.lt.s32.totalorder %v517, 9
  %vm550 = vcmp.lt.s32.totalorder %v518, 9
  %vm551 = vcmp.lt.s32.totalorder %v519, 9
  %vm552 = vcmp.lt.s32.totalorder %v520, 9
  %vm553 = vcmp.lt.s32.totalorder %v521, 9
  %vm554 = vcmp.lt.s32.totalorder %v522, 9
  %vm555 = vcmp.lt.s32.totalorder %v523, 9
  %vm556 = vcmp.lt.s32.totalorder %v524, 9
  %vm557 = vcmp.lt.s32.totalorder %v525, 9
  %vm558 = vcmp.lt.s32.totalorder %v526, 9
  %vm559 = vcmp.lt.s32.totalorder %v527, 9
  %vm560 = vcmp.lt.s32.totalorder %v528, 9
  %vm561 = vcmp.lt.s32.totalorder %v529, 9
  %vm562 = vcmp.lt.s32.totalorder %v530, 9
  %vm563 = vcmp.lt.s32.totalorder %v531, 9
  %vm564 = vcmp.lt.s32.totalorder %v532, 9
  %vm565 = vcmp.lt.s32.totalorder %v533, 9
  %vm566 = vcmp.lt.s32.totalorder %v534, 9
  %vm567 = vcmp.lt.s32.totalorder %v535, 9
  %vm568 = vcmp.lt.s32.totalorder %v536, 9
  %vm569 = vcmp.lt.s32.totalorder %v537, 9
  %vm570 = vcmp.lt.s32.totalorder %v538, 9
  %vm571 = vcmp.lt.s32.totalorder %v539, 9
  %vm572 = vcmp.lt.s32.totalorder %v540, 9
  %vm573 = vcmp.lt.s32.totalorder %v541, 9
  %v574 = vsel %vm542, %v445, 0.0
  %v575 = vsel %vm543, %v446, 0.0
  %v576 = vsel %vm544, %v447, 0.0
  %v577 = vsel %vm545, %v448, 0.0
  %v578 = vsel %vm546, %v449, 0.0
  %v579 = vsel %vm547, %v450, 0.0
  %v580 = vsel %vm548, %v451, 0.0
  %v581 = vsel %vm549, %v452, 0.0
  %v582 = vsel %vm550, %v453, 0.0
  %v583 = vsel %vm551, %v454, 0.0
  %v584 = vsel %vm552, %v455, 0.0
  %v585 = vsel %vm553, %v456, 0.0
  %v586 = vsel %vm554, %v457, 0.0
  %v587 = vsel %vm555, %v458, 0.0
  %v588 = vsel %vm556, %v459, 0.0
  %v589 = vsel %vm557, %v460, 0.0
  %v590 = vsel %vm558, %v461, 0.0
  %v591 = vsel %vm559, %v462, 0.0
  %v592 = vsel %vm560, %v463, 0.0
  %v593 = vsel %vm561, %v464, 0.0
  %v594 = vsel %vm562, %v465, 0.0
  %v595 = vsel %vm563, %v466, 0.0
  %v596 = vsel %vm564, %v467, 0.0
  %v597 = vsel %vm565, %v468, 0.0
  %v598 = vsel %vm566, %v469, 0.0
  %v599 = vsel %vm567, %v470, 0.0
  %v600 = vsel %vm568, %v471, 0.0
  %v601 = vsel %vm569, %v472, 0.0
  %v602 = vsel %vm570, %v473, 0.0
  %v603 = vsel %vm571, %v474, 0.0
  %v604 = vsel %vm572, %v475, 0.0
  %v605 = vsel %vm573, %v476, 0.0
  %s606 = scalar_lea.vmem %s3, 512
  %v607 = vld [vmem:[%s606] sm:$0xff]
  %v608 = vld [vmem:[%s606 + $0x8] sm:$0xff]
  %v609 = vld [vmem:[%s606 + $0x10] sm:$0xff]
  %v610 = vld [vmem:[%s606 + $0x18] sm:$0xff]
  %v611 = vld [vmem:[%s606 + $0x20] sm:$0xff]
  %v612 = vld [vmem:[%s606 + $0x28] sm:$0xff]
  %v613 = vld [vmem:[%s606 + $0x30] sm:$0xff]
  %v614 = vld [vmem:[%s606 + $0x38] sm:$0xff]
  %v615 = vld [vmem:[%s606 + $0x40] sm:$0xff]
  %v616 = vld [vmem:[%s606 + $0x48] sm:$0xff]
  %v617 = vld [vmem:[%s606 + $0x50] sm:$0xff]
  %v618 = vld [vmem:[%s606 + $0x58] sm:$0xff]
  %v619 = vld [vmem:[%s606 + $0x60] sm:$0xff]
  %v620 = vld [vmem:[%s606 + $0x68] sm:$0xff]
  %v621 = vld [vmem:[%s606 + $0x70] sm:$0xff]
  %v622 = vld [vmem:[%s606 + $0x78] sm:$0xff]
  %v623 = vld [vmem:[%s606 + $0x80] sm:$0xff]
  %v624 = vld [vmem:[%s606 + $0x88] sm:$0xff]
  %v625 = vld [vmem:[%s606 + $0x90] sm:$0xff]
  %v626 = vld [vmem:[%s606 + $0x98] sm:$0xff]
  %v627 = vld [vmem:[%s606 + $0xa0] sm:$0xff]
  %v628 = vld [vmem:[%s606 + $0xa8] sm:$0xff]
  %v629 = vld [vmem:[%s606 + $0xb0] sm:$0xff]
  %v630 = vld [vmem:[%s606 + $0xb8] sm:$0xff]
  %v631 = vld [vmem:[%s606 + $0xc0] sm:$0xff]
  %v632 = vld [vmem:[%s606 + $0xc8] sm:$0xff]
  %v633 = vld [vmem:[%s606 + $0xd0] sm:$0xff]
  %v634 = vld [vmem:[%s606 + $0xd8] sm:$0xff]
  %v635 = vld [vmem:[%s606 + $0xe0] sm:$0xff]
  %v636 = vld [vmem:[%s606 + $0xe8] sm:$0xff]
  %v637 = vld [vmem:[%s606 + $0xf0] sm:$0xff]
  %v638 = vld [vmem:[%s606 + $0xf8] sm:$0xff]
  %v639 = vrot.slane %v574, 6
  %v640 = vrot.slane %v575, 6
  %v641 = vrot.slane %v576, 6
  %v642 = vrot.slane %v577, 6
  %v643 = vrot.slane %v578, 6
  %v644 = vrot.slane %v579, 6
  %v645 = vrot.slane %v580, 6
  %v646 = vrot.slane %v581, 6
  %v647 = vrot.slane %v582, 6
  %v648 = vrot.slane %v583, 6
  %v649 = vrot.slane %v584, 6
  %v650 = vrot.slane %v585, 6
  %v651 = vrot.slane %v586, 6
  %v652 = vrot.slane %v587, 6
  %v653 = vrot.slane %v588, 6
  %v654 = vrot.slane %v589, 6
  %v655 = vrot.slane %v590, 6
  %v656 = vrot.slane %v591, 6
  %v657 = vrot.slane %v592, 6
  %v658 = vrot.slane %v593, 6
  %v659 = vrot.slane %v594, 6
  %v660 = vrot.slane %v595, 6
  %v661 = vrot.slane %v596, 6
  %v662 = vrot.slane %v597, 6
  %v663 = vrot.slane %v598, 6
  %v664 = vrot.slane %v599, 6
  %v665 = vrot.slane %v600, 6
  %v666 = vrot.slane %v601, 6
  %v667 = vrot.slane %v602, 6
  %v668 = vrot.slane %v603, 6
  %v669 = vrot.slane %v604, 6
  %v670 = vrot.slane %v605, 6
  %vm671 = vcmp.lt.s32.totalorder %v478, 2
  %v672 = vsel %vm671, %v669, %v670
  %v673 = vsel %vm671, %v668, %v669
  %v674 = vsel %vm671, %v667, %v668
  %v675 = vsel %vm671, %v666, %v667
  %v676 = vsel %vm671, %v665, %v666
  %v677 = vsel %vm671, %v664, %v665
  %v678 = vsel %vm671, %v663, %v664
  %v679 = vsel %vm671, %v662, %v663
  %v680 = vsel %vm671, %v661, %v662
  %v681 = vsel %vm671, %v660, %v661
  %v682 = vsel %vm671, %v659, %v660
  %v683 = vsel %vm671, %v658, %v659
  %v684 = vsel %vm671, %v657, %v658
  %v685 = vsel %vm671, %v656, %v657
  %v686 = vsel %vm671, %v655, %v656
  %v687 = vsel %vm671, %v654, %v655
  %v688 = vsel %vm671, %v653, %v654
  %v689 = vsel %vm671, %v652, %v653
  %v690 = vsel %vm671, %v651, %v652
  %v691 = vsel %vm671, %v650, %v651
  %v692 = vsel %vm671, %v649, %v650
  %v693 = vsel %vm671, %v648, %v649
  %v694 = vsel %vm671, %v647, %v648
  %v695 = vsel %vm671, %v646, %v647
  %v696 = vsel %vm671, %v645, %v646
  %v697 = vsel %vm671, %v644, %v645
  %v698 = vsel %vm671, %v643, %v644
  %v699 = vsel %vm671, %v642, %v643
  %v700 = vsel %vm671, %v641, %v642
  %v701 = vsel %vm671, %v640, %v641
  %v702 = vsel %vm671, %v639, %v640
  %v703 = vsel %vm671, %v670, %v639
  %v704 = vld [vmem:[%s3] sm:$0xff]
  %v705 = vld [vmem:[%s3 + $0x8] sm:$0xff]
  %v706 = vld [vmem:[%s3 + $0x10] sm:$0xff]
  %v707 = vld [vmem:[%s3 + $0x18] sm:$0xff]
  %v708 = vld [vmem:[%s3 + $0x20] sm:$0xff]
  %v709 = vld [vmem:[%s3 + $0x28] sm:$0xff]
  %v710 = vld [vmem:[%s3 + $0x30] sm:$0xff]
  %v711 = vld [vmem:[%s3 + $0x38] sm:$0xff]
  %v712 = vld [vmem:[%s3 + $0x40] sm:$0xff]
  %v713 = vld [vmem:[%s3 + $0x48] sm:$0xff]
  %v714 = vld [vmem:[%s3 + $0x50] sm:$0xff]
  %v715 = vld [vmem:[%s3 + $0x58] sm:$0xff]
  %v716 = vld [vmem:[%s3 + $0x60] sm:$0xff]
  %v717 = vld [vmem:[%s3 + $0x68] sm:$0xff]
  %v718 = vld [vmem:[%s3 + $0x70] sm:$0xff]
  %v719 = vld [vmem:[%s3 + $0x78] sm:$0xff]
  %v720 = vld [vmem:[%s3 + $0x80] sm:$0xff]
  %v721 = vld [vmem:[%s3 + $0x88] sm:$0xff]
  %v722 = vld [vmem:[%s3 + $0x90] sm:$0xff]
  %v723 = vld [vmem:[%s3 + $0x98] sm:$0xff]
  %v724 = vld [vmem:[%s3 + $0xa0] sm:$0xff]
  %v725 = vld [vmem:[%s3 + $0xa8] sm:$0xff]
  %v726 = vld [vmem:[%s3 + $0xb0] sm:$0xff]
  %v727 = vld [vmem:[%s3 + $0xb8] sm:$0xff]
  %v728 = vld [vmem:[%s3 + $0xc0] sm:$0xff]
  %v729 = vld [vmem:[%s3 + $0xc8] sm:$0xff]
  %v730 = vld [vmem:[%s3 + $0xd0] sm:$0xff]
  %v731 = vld [vmem:[%s3 + $0xd8] sm:$0xff]
  %v732 = vld [vmem:[%s3 + $0xe0] sm:$0xff]
  %v733 = vld [vmem:[%s3 + $0xe8] sm:$0xff]
  %v734 = vld [vmem:[%s3 + $0xf0] sm:$0xff]
  %v735 = vld [vmem:[%s3 + $0xf8] sm:$0xff]
  %736 = vmatprep.subr.mxu0 %v705
  %737 = vmatpush1.msra.mxu0 %v704
  %738 = vmatprep.subr.mxu0 %v707
  %739 = vmatpush1.msra.mxu0 %v706
  %740 = vmatprep.subr.mxu0 %v709
  %741 = vmatpush1.msra.mxu0 %v708
  %742 = vmatprep.subr.mxu0 %v711
  %743 = vmatpush1.msra.mxu0 %v710
  %744 = vmatprep.subr.mxu0 %v713
  %745 = vmatpush1.msra.mxu0 %v712
  %746 = vmatprep.subr.mxu0 %v715
  %747 = vmatpush1.msra.mxu0 %v714
  %748 = vmatprep.subr.mxu0 %v717
  %749 = vmatpush1.msra.mxu0 %v716
  %750 = vmatprep.subr.mxu0 %v719
  %751 = vmatpush1.msra.mxu0 %v718
  %752 = vmatprep.subr.mxu0 %v721
  %753 = vmatpush1.msra.mxu0 %v720
  %754 = vmatprep.subr.mxu0 %v723
  %755 = vmatpush1.msra.mxu0 %v722
  %756 = vmatprep.subr.mxu0 %v725
  %757 = vmatpush1.msra.mxu0 %v724
  %758 = vmatprep.subr.mxu0 %v727
  %759 = vmatpush1.msra.mxu0 %v726
  %760 = vmatprep.subr.mxu0 %v729
  %761 = vmatpush1.msra.mxu0 %v728
  %762 = vmatprep.subr.mxu0 %v731
  %763 = vmatpush1.msra.mxu0 %v730
  %764 = vmatprep.subr.mxu0 %v733
  %765 = vmatpush1.msra.mxu0 %v732
  %766 = vmatprep.subr.mxu0 %v735
  %767 = vmatpush1.msra.mxu0 %v734
  %768 = vmatprep.subr.mxu0 0.0
  %769 = vmatpush1.msra.mxu0 0.0
  %770 = vmatprep.subr.mxu0 0.0
  %771 = vmatpush1.msra.mxu0 0.0
  %772 = vmatprep.subr.mxu0 0.0
  %773 = vmatpush1.msra.mxu0 0.0
  %774 = vmatprep.subr.mxu0 0.0
  %775 = vmatpush1.msra.mxu0 0.0
  %776 = vmatprep.subr.mxu0 0.0
  %777 = vmatpush1.msra.mxu0 0.0
  %778 = vmatprep.subr.mxu0 0.0
  %779 = vmatpush1.msra.mxu0 0.0
  %780 = vmatprep.subr.mxu0 0.0
  %781 = vmatpush1.msra.mxu0 0.0
  %782 = vmatprep.subr.mxu0 0.0
  %783 = vmatpush1.msra.mxu0 0.0
  %784 = vmatprep.subr.mxu0 0.0
  %785 = vmatpush1.msra.mxu0 0.0
  %786 = vmatprep.subr.mxu0 0.0
  %787 = vmatpush1.msra.mxu0 0.0
  %788 = vmatprep.subr.mxu0 0.0
  %789 = vmatpush1.msra.mxu0 0.0
  %790 = vmatprep.subr.mxu0 0.0
  %791 = vmatpush1.msra.mxu0 0.0
  %792 = vmatprep.subr.mxu0 0.0
  %793 = vmatpush1.msra.mxu0 0.0
  %794 = vmatprep.subr.mxu0 0.0
  %795 = vmatpush1.msra.mxu0 0.0
  %796 = vmatprep.subr.mxu0 0.0
  %797 = vmatpush1.msra.mxu0 0.0
  %798 = vmatprep.subr.mxu0 0.0
  %799 = vmatpush1.msra.mxu0 0.0
  %800 = vmatprep.mubr.f32.mxu0 0.0
  %801 = vmatmul.mubr.f32.gmra.mrb[0].mxu0 %v703
  %v802 = vpop.f32.mrb[0].mxu0
  %v803 = vadd.f32 0.0, %v802
  %v804 = vpop.f32.mrb[0].mxu0
  %v805 = vadd.f32 0.0, %v804
  %806 = vmatprep.mubr.f32.mxu0 0.0
  %807 = vmatmul.mubr.f32.gmra.mrb[0].mxu0 %v702
  %v808 = vpop.f32.mrb[0].mxu0
  %v809 = vadd.f32 0.0, %v808
  %v810 = vpop.f32.mrb[0].mxu0
  %v811 = vadd.f32 0.0, %v810
  %812 = vmatprep.mubr.f32.mxu0 0.0
  %813 = vmatmul.mubr.f32.gmra.mrb[0].mxu0 %v701
  %v814 = vpop.f32.mrb[0].mxu0
  %v815 = vadd.f32 0.0, %v814
  %v816 = vpop.f32.mrb[0].mxu0
  %v817 = vadd.f32 0.0, %v816
  %818 = vmatprep.mubr.f32.mxu0 0.0
  %819 = vmatmul.mubr.f32.gmra.mrb[0].mxu0 %v700
  %v820 = vpop.f32.mrb[0].mxu0
  %v821 = vadd.f32 0.0, %v820
  %v822 = vpop.f32.mrb[0].mxu0
  %v823 = vadd.f32 0.0, %v822
  %824 = vmatprep.mubr.f32.mxu0 0.0
  %825 = vmatmul.mubr.f32.gmra.mrb[0].mxu0 %v699
  %v826 = vpop.f32.mrb[0].mxu0
  %v827 = vadd.f32 0.0, %v826
  %v828 = vpop.f32.mrb[0].mxu0
  %v829 = vadd.f32 0.0, %v828
  %830 = vmatprep.mubr.f32.mxu0 0.0
  %831 = vmatmul.mubr.f32.gmra.mrb[0].mxu0 %v698
  %v832 = vpop.f32.mrb[0].mxu0
  %v833 = vadd.f32 0.0, %v832
  %v834 = vpop.f32.mrb[0].mxu0
  %v835 = vadd.f32 0.0, %v834
  %836 = vmatprep.mubr.f32.mxu0 0.0
  %837 = vmatmul.mubr.f32.gmra.mrb[0].mxu0 %v697
  %v838 = vpop.f32.mrb[0].mxu0
  %v839 = vadd.f32 0.0, %v838
  %v840 = vpop.f32.mrb[0].mxu0
  %v841 = vadd.f32 0.0, %v840
  %842 = vmatprep.mubr.f32.mxu0 0.0
  %843 = vmatmul.mubr.f32.gmra.mrb[0].mxu0 %v696
  %v844 = vpop.f32.mrb[0].mxu0
  %v845 = vadd.f32 0.0, %v844
  %v846 = vpop.f32.mrb[0].mxu0
  %v847 = vadd.f32 0.0, %v846
  %848 = vmatprep.mubr.f32.mxu0 0.0
  %849 = vmatmul.mubr.f32.gmra.mrb[0].mxu0 %v695
  %v850 = vpop.f32.mrb[0].mxu0
  %v851 = vadd.f32 0.0, %v850
  %v852 = vpop.f32.mrb[0].mxu0
  %v853 = vadd.f32 0.0, %v852
  %854 = vmatprep.mubr.f32.mxu0 0.0
  %855 = vmatmul.mubr.f32.gmra.mrb[0].mxu0 %v694
  %v856 = vpop.f32.mrb[0].mxu0
  %v857 = vadd.f32 0.0, %v856
  %v858 = vpop.f32.mrb[0].mxu0
  %v859 = vadd.f32 0.0, %v858
  %860 = vmatprep.mubr.f32.mxu0 0.0
  %861 = vmatmul.mubr.f32.gmra.mrb[0].mxu0 %v693
  %v862 = vpop.f32.mrb[0].mxu0
  %v863 = vadd.f32 0.0, %v862
  %v864 = vpop.f32.mrb[0].mxu0
  %v865 = vadd.f32 0.0, %v864
  %866 = vmatprep.mubr.f32.mxu0 0.0
  %867 = vmatmul.mubr.f32.gmra.mrb[0].mxu0 %v692
  %v868 = vpop.f32.mrb[0].mxu0
  %v869 = vadd.f32 0.0, %v868
  %v870 = vpop.f32.mrb[0].mxu0
  %v871 = vadd.f32 0.0, %v870
  %872 = vmatprep.mubr.f32.mxu0 0.0
  %873 = vmatmul.mubr.f32.gmra.mrb[0].mxu0 %v691
  %v874 = vpop.f32.mrb[0].mxu0
  %v875 = vadd.f32 0.0, %v874
  %v876 = vpop.f32.mrb[0].mxu0
  %v877 = vadd.f32 0.0, %v876
  %878 = vmatprep.mubr.f32.mxu0 0.0
  %879 = vmatmul.mubr.f32.gmra.mrb[0].mxu0 %v690
  %v880 = vpop.f32.mrb[0].mxu0
  %v881 = vadd.f32 0.0, %v880
  %v882 = vpop.f32.mrb[0].mxu0
  %v883 = vadd.f32 0.0, %v882
  %884 = vmatprep.mubr.f32.mxu0 0.0
  %885 = vmatmul.mubr.f32.gmra.mrb[0].mxu0 %v689
  %v886 = vpop.f32.mrb[0].mxu0
  %v887 = vadd.f32 0.0, %v886
  %v888 = vpop.f32.mrb[0].mxu0
  %v889 = vadd.f32 0.0, %v888
  %890 = vmatprep.mubr.f32.mxu0 0.0
  %891 = vmatmul.mubr.f32.gmra.mrb[0].mxu0 %v688
  %v892 = vpop.f32.mrb[0].mxu0
  %v893 = vadd.f32 0.0, %v892
  %v894 = vpop.f32.mrb[0].mxu0
  %v895 = vadd.f32 0.0, %v894
  %896 = vmatprep.mubr.f32.mxu0 0.0
  %897 = vmatmul.mubr.f32.gmra.mrb[0].mxu0 %v687
  %v898 = vpop.f32.mrb[0].mxu0
  %v899 = vadd.f32 0.0, %v898
  %v900 = vpop.f32.mrb[0].mxu0
  %v901 = vadd.f32 0.0, %v900
  %902 = vmatprep.mubr.f32.mxu0 0.0
  %903 = vmatmul.mubr.f32.gmra.mrb[0].mxu0 %v686
  %v904 = vpop.f32.mrb[0].mxu0
  %v905 = vadd.f32 0.0, %v904
  %v906 = vpop.f32.mrb[0].mxu0
  %v907 = vadd.f32 0.0, %v906
  %908 = vmatprep.mubr.f32.mxu0 0.0
  %909 = vmatmul.mubr.f32.gmra.mrb[0].mxu0 %v685
  %v910 = vpop.f32.mrb[0].mxu0
  %v911 = vadd.f32 0.0, %v910
  %v912 = vpop.f32.mrb[0].mxu0
  %v913 = vadd.f32 0.0, %v912
  %914 = vmatprep.mubr.f32.mxu0 0.0
  %915 = vmatmul.mubr.f32.gmra.mrb[0].mxu0 %v684
  %v916 = vpop.f32.mrb[0].mxu0
  %v917 = vadd.f32 0.0, %v916
  %v918 = vpop.f32.mrb[0].mxu0
  %v919 = vadd.f32 0.0, %v918
  %920 = vmatprep.mubr.f32.mxu0 0.0
  %921 = vmatmul.mubr.f32.gmra.mrb[0].mxu0 %v683
  %v922 = vpop.f32.mrb[0].mxu0
  %v923 = vadd.f32 0.0, %v922
  %v924 = vpop.f32.mrb[0].mxu0
  %v925 = vadd.f32 0.0, %v924
  %926 = vmatprep.mubr.f32.mxu0 0.0
  %927 = vmatmul.mubr.f32.gmra.mrb[0].mxu0 %v682
  %v928 = vpop.f32.mrb[0].mxu0
  %v929 = vadd.f32 0.0, %v928
  %v930 = vpop.f32.mrb[0].mxu0
  %v931 = vadd.f32 0.0, %v930
  %932 = vmatprep.mubr.f32.mxu0 0.0
  %933 = vmatmul.mubr.f32.gmra.mrb[0].mxu0 %v681
  %v934 = vpop.f32.mrb[0].mxu0
  %v935 = vadd.f32 0.0, %v934
  %v936 = vpop.f32.mrb[0].mxu0
  %v937 = vadd.f32 0.0, %v936
  %938 = vmatprep.mubr.f32.mxu0 0.0
  %939 = vmatmul.mubr.f32.gmra.mrb[0].mxu0 %v680
  %v940 = vpop.f32.mrb[0].mxu0
  %v941 = vadd.f32 0.0, %v940
  %v942 = vpop.f32.mrb[0].mxu0
  %v943 = vadd.f32 0.0, %v942
  %944 = vmatprep.mubr.f32.mxu0 0.0
  %945 = vmatmul.mubr.f32.gmra.mrb[0].mxu0 %v679
  %v946 = vpop.f32.mrb[0].mxu0
  %v947 = vadd.f32 0.0, %v946
  %v948 = vpop.f32.mrb[0].mxu0
  %v949 = vadd.f32 0.0, %v948
  %950 = vmatprep.mubr.f32.mxu0 0.0
  %951 = vmatmul.mubr.f32.gmra.mrb[0].mxu0 %v678
  %v952 = vpop.f32.mrb[0].mxu0
  %v953 = vadd.f32 0.0, %v952
  %v954 = vpop.f32.mrb[0].mxu0
  %v955 = vadd.f32 0.0, %v954
  %956 = vmatprep.mubr.f32.mxu0 0.0
  %957 = vmatmul.mubr.f32.gmra.mrb[0].mxu0 %v677
  %v958 = vpop.f32.mrb[0].mxu0
  %v959 = vadd.f32 0.0, %v958
  %v960 = vpop.f32.mrb[0].mxu0
  %v961 = vadd.f32 0.0, %v960
  %962 = vmatprep.mubr.f32.mxu0 0.0
  %963 = vmatmul.mubr.f32.gmra.mrb[0].mxu0 %v676
  %v964 = vpop.f32.mrb[0].mxu0
  %v965 = vadd.f32 0.0, %v964
  %v966 = vpop.f32.mrb[0].mxu0
  %v967 = vadd.f32 0.0, %v966
  %968 = vmatprep.mubr.f32.mxu0 0.0
  %969 = vmatmul.mubr.f32.gmra.mrb[0].mxu0 %v675
  %v970 = vpop.f32.mrb[0].mxu0
  %v971 = vadd.f32 0.0, %v970
  %v972 = vpop.f32.mrb[0].mxu0
  %v973 = vadd.f32 0.0, %v972
  %974 = vmatprep.mubr.f32.mxu0 0.0
  %975 = vmatmul.mubr.f32.gmra.mrb[0].mxu0 %v674
  %v976 = vpop.f32.mrb[0].mxu0
  %v977 = vadd.f32 0.0, %v976
  %v978 = vpop.f32.mrb[0].mxu0
  %v979 = vadd.f32 0.0, %v978
  %980 = vmatprep.mubr.f32.mxu0 0.0
  %981 = vmatmul.mubr.f32.gmra.mrb[0].mxu0 %v673
  %v982 = vpop.f32.mrb[0].mxu0
  %v983 = vadd.f32 0.0, %v982
  %v984 = vpop.f32.mrb[0].mxu0
  %v985 = vadd.f32 0.0, %v984
  %986 = vmatprep.mubr.f32.mxu0 0.0
  %987 = vmatmul.mubr.f32.gmra.mrb[0].mxu0 %v672
  %v988 = vpop.f32.mrb[0].mxu0
  %v989 = vadd.f32 0.0, %v988
  %v990 = vpop.f32.mrb[0].mxu0
  %v991 = vadd.f32 0.0, %v990
  %992 = vdwg.mxu0
  %993 = vmatprep.subr.mxu0 %v608
  %994 = vmatpush1.msra.mxu0 %v607
  %995 = vmatprep.subr.mxu0 %v610
  %996 = vmatpush1.msra.mxu0 %v609
  %997 = vmatprep.subr.mxu0 %v612
  %998 = vmatpush1.msra.mxu0 %v611
  %999 = vmatprep.subr.mxu0 %v614
  %1000 = vmatpush1.msra.mxu0 %v613
  %1001 = vmatprep.subr.mxu0 %v616
  %1002 = vmatpush1.msra.mxu0 %v615
  %1003 = vmatprep.subr.mxu0 %v618
  %1004 = vmatpush1.msra.mxu0 %v617
  %1005 = vmatprep.subr.mxu0 %v620
  %1006 = vmatpush1.msra.mxu0 %v619
  %1007 = vmatprep.subr.mxu0 %v622
  %1008 = vmatpush1.msra.mxu0 %v621
  %1009 = vmatprep.subr.mxu0 %v624
  %1010 = vmatpush1.msra.mxu0 %v623
  %1011 = vmatprep.subr.mxu0 %v626
  %1012 = vmatpush1.msra.mxu0 %v625
  %1013 = vmatprep.subr.mxu0 %v628
  %1014 = vmatpush1.msra.mxu0 %v627
  %1015 = vmatprep.subr.mxu0 %v630
  %1016 = vmatpush1.msra.mxu0 %v629
  %1017 = vmatprep.subr.mxu0 %v632
  %1018 = vmatpush1.msra.mxu0 %v631
  %1019 = vmatprep.subr.mxu0 %v634
  %1020 = vmatpush1.msra.mxu0 %v633
  %1021 = vmatprep.subr.mxu0 %v636
  %1022 = vmatpush1.msra.mxu0 %v635
  %1023 = vmatprep.subr.mxu0 %v638
  %1024 = vmatpush1.msra.mxu0 %v637
  %1025 = vmatprep.subr.mxu0 0.0
  %1026 = vmatpush1.msra.mxu0 0.0
  %1027 = vmatprep.subr.mxu0 0.0
  %1028 = vmatpush1.msra.mxu0 0.0
  %1029 = vmatprep.subr.mxu0 0.0
  %1030 = vmatpush1.msra.mxu0 0.0
  %1031 = vmatprep.subr.mxu0 0.0
  %1032 = vmatpush1.msra.mxu0 0.0
  %1033 = vmatprep.subr.mxu0 0.0
  %1034 = vmatpush1.msra.mxu0 0.0
  %1035 = vmatprep.subr.mxu0 0.0
  %1036 = vmatpush1.msra.mxu0 0.0
  %1037 = vmatprep.subr.mxu0 0.0
  %1038 = vmatpush1.msra.mxu0 0.0
  %1039 = vmatprep.subr.mxu0 0.0
  %1040 = vmatpush1.msra.mxu0 0.0
  %1041 = vmatprep.subr.mxu0 0.0
  %1042 = vmatpush1.msra.mxu0 0.0
  %1043 = vmatprep.subr.mxu0 0.0
  %1044 = vmatpush1.msra.mxu0 0.0
  %1045 = vmatprep.subr.mxu0 0.0
  %1046 = vmatpush1.msra.mxu0 0.0
  %1047 = vmatprep.subr.mxu0 0.0
  %1048 = vmatpush1.msra.mxu0 0.0
  %1049 = vmatprep.subr.mxu0 0.0
  %1050 = vmatpush1.msra.mxu0 0.0
  %1051 = vmatprep.subr.mxu0 0.0
  %1052 = vmatpush1.msra.mxu0 0.0
  %1053 = vmatprep.subr.mxu0 0.0
  %1054 = vmatpush1.msra.mxu0 0.0
  %1055 = vmatprep.subr.mxu0 0.0
  %1056 = vmatpush1.msra.mxu0 0.0
  %1057 = vmatprep.mubr.f32.mxu0 0.0
  %1058 = vmatmul.mubr.f32.gmra.mrb[0].mxu0 %v574
  %v1059 = vpop.f32.mrb[0].mxu0
  %v1060 = vadd.f32 %v803, %v1059
  %v1061 = vpop.f32.mrb[0].mxu0
  %v1062 = vadd.f32 %v805, %v1061
  %1063 = vmatprep.mubr.f32.mxu0 0.0
  %1064 = vmatmul.mubr.f32.gmra.mrb[0].mxu0 %v575
  %v1065 = vpop.f32.mrb[0].mxu0
  %v1066 = vadd.f32 %v809, %v1065
  %v1067 = vpop.f32.mrb[0].mxu0
  %v1068 = vadd.f32 %v811, %v1067
  %1069 = vmatprep.mubr.f32.mxu0 0.0
  %1070 = vmatmul.mubr.f32.gmra.mrb[0].mxu0 %v576
  %v1071 = vpop.f32.mrb[0].mxu0
  %v1072 = vadd.f32 %v815, %v1071
  %v1073 = vpop.f32.mrb[0].mxu0
  %v1074 = vadd.f32 %v817, %v1073
  %1075 = vmatprep.mubr.f32.mxu0 0.0
  %1076 = vmatmul.mubr.f32.gmra.mrb[0].mxu0 %v577
  %v1077 = vpop.f32.mrb[0].mxu0
  %v1078 = vadd.f32 %v821, %v1077
  %v1079 = vpop.f32.mrb[0].mxu0
  %v1080 = vadd.f32 %v823, %v1079
  %1081 = vmatprep.mubr.f32.mxu0 0.0
  %1082 = vmatmul.mubr.f32.gmra.mrb[0].mxu0 %v578
  %v1083 = vpop.f32.mrb[0].mxu0
  %v1084 = vadd.f32 %v827, %v1083
  %v1085 = vpop.f32.mrb[0].mxu0
  %v1086 = vadd.f32 %v829, %v1085
  %1087 = vmatprep.mubr.f32.mxu0 0.0
  %1088 = vmatmul.mubr.f32.gmra.mrb[0].mxu0 %v579
  %v1089 = vpop.f32.mrb[0].mxu0
  %v1090 = vadd.f32 %v833, %v1089
  %v1091 = vpop.f32.mrb[0].mxu0
  %v1092 = vadd.f32 %v835, %v1091
  %1093 = vmatprep.mubr.f32.mxu0 0.0
  %1094 = vmatmul.mubr.f32.gmra.mrb[0].mxu0 %v580
  %v1095 = vpop.f32.mrb[0].mxu0
  %v1096 = vadd.f32 %v839, %v1095
  %v1097 = vpop.f32.mrb[0].mxu0
  %v1098 = vadd.f32 %v841, %v1097
  %1099 = vmatprep.mubr.f32.mxu0 0.0
  %1100 = vmatmul.mubr.f32.gmra.mrb[0].mxu0 %v581
  %v1101 = vpop.f32.mrb[0].mxu0
  %v1102 = vadd.f32 %v845, %v1101
  %v1103 = vpop.f32.mrb[0].mxu0
  %v1104 = vadd.f32 %v847, %v1103
  %1105 = vmatprep.mubr.f32.mxu0 0.0
  %1106 = vmatmul.mubr.f32.gmra.mrb[0].mxu0 %v582
  %v1107 = vpop.f32.mrb[0].mxu0
  %v1108 = vadd.f32 %v851, %v1107
  %v1109 = vpop.f32.mrb[0].mxu0
  %v1110 = vadd.f32 %v853, %v1109
  %1111 = vmatprep.mubr.f32.mxu0 0.0
  %1112 = vmatmul.mubr.f32.gmra.mrb[0].mxu0 %v583
  %v1113 = vpop.f32.mrb[0].mxu0
  %v1114 = vadd.f32 %v857, %v1113
  %v1115 = vpop.f32.mrb[0].mxu0
  %v1116 = vadd.f32 %v859, %v1115
  %1117 = vmatprep.mubr.f32.mxu0 0.0
  %1118 = vmatmul.mubr.f32.gmra.mrb[0].mxu0 %v584
  %v1119 = vpop.f32.mrb[0].mxu0
  %v1120 = vadd.f32 %v863, %v1119
  %v1121 = vpop.f32.mrb[0].mxu0
  %v1122 = vadd.f32 %v865, %v1121
  %1123 = vmatprep.mubr.f32.mxu0 0.0
  %1124 = vmatmul.mubr.f32.gmra.mrb[0].mxu0 %v585
  %v1125 = vpop.f32.mrb[0].mxu0
  %v1126 = vadd.f32 %v869, %v1125
  %v1127 = vpop.f32.mrb[0].mxu0
  %v1128 = vadd.f32 %v871, %v1127
  %1129 = vmatprep.mubr.f32.mxu0 0.0
  %1130 = vmatmul.mubr.f32.gmra.mrb[0].mxu0 %v586
  %v1131 = vpop.f32.mrb[0].mxu0
  %v1132 = vadd.f32 %v875, %v1131
  %v1133 = vpop.f32.mrb[0].mxu0
  %v1134 = vadd.f32 %v877, %v1133
  %1135 = vmatprep.mubr.f32.mxu0 0.0
  %1136 = vmatmul.mubr.f32.gmra.mrb[0].mxu0 %v587
  %v1137 = vpop.f32.mrb[0].mxu0
  %v1138 = vadd.f32 %v881, %v1137
  %v1139 = vpop.f32.mrb[0].mxu0
  %v1140 = vadd.f32 %v883, %v1139
  %1141 = vmatprep.mubr.f32.mxu0 0.0
  %1142 = vmatmul.mubr.f32.gmra.mrb[0].mxu0 %v588
  %v1143 = vpop.f32.mrb[0].mxu0
  %v1144 = vadd.f32 %v887, %v1143
  %v1145 = vpop.f32.mrb[0].mxu0
  %v1146 = vadd.f32 %v889, %v1145
  %1147 = vmatprep.mubr.f32.mxu0 0.0
  %1148 = vmatmul.mubr.f32.gmra.mrb[0].mxu0 %v589
  %v1149 = vpop.f32.mrb[0].mxu0
  %v1150 = vadd.f32 %v893, %v1149
  %v1151 = vpop.f32.mrb[0].mxu0
  %v1152 = vadd.f32 %v895, %v1151
  %1153 = vmatprep.mubr.f32.mxu0 0.0
  %1154 = vmatmul.mubr.f32.gmra.mrb[0].mxu0 %v590
  %v1155 = vpop.f32.mrb[0].mxu0
  %v1156 = vadd.f32 %v899, %v1155
  %v1157 = vpop.f32.mrb[0].mxu0
  %v1158 = vadd.f32 %v901, %v1157
  %1159 = vmatprep.mubr.f32.mxu0 0.0
  %1160 = vmatmul.mubr.f32.gmra.mrb[0].mxu0 %v591
  %v1161 = vpop.f32.mrb[0].mxu0
  %v1162 = vadd.f32 %v905, %v1161
  %v1163 = vpop.f32.mrb[0].mxu0
  %v1164 = vadd.f32 %v907, %v1163
  %1165 = vmatprep.mubr.f32.mxu0 0.0
  %1166 = vmatmul.mubr.f32.gmra.mrb[0].mxu0 %v592
  %v1167 = vpop.f32.mrb[0].mxu0
  %v1168 = vadd.f32 %v911, %v1167
  %v1169 = vpop.f32.mrb[0].mxu0
  %v1170 = vadd.f32 %v913, %v1169
  %1171 = vmatprep.mubr.f32.mxu0 0.0
  %1172 = vmatmul.mubr.f32.gmra.mrb[0].mxu0 %v593
  %v1173 = vpop.f32.mrb[0].mxu0
  %v1174 = vadd.f32 %v917, %v1173
  %v1175 = vpop.f32.mrb[0].mxu0
  %v1176 = vadd.f32 %v919, %v1175
  %1177 = vmatprep.mubr.f32.mxu0 0.0
  %1178 = vmatmul.mubr.f32.gmra.mrb[0].mxu0 %v594
  %v1179 = vpop.f32.mrb[0].mxu0
  %v1180 = vadd.f32 %v923, %v1179
  %v1181 = vpop.f32.mrb[0].mxu0
  %v1182 = vadd.f32 %v925, %v1181
  %1183 = vmatprep.mubr.f32.mxu0 0.0
  %1184 = vmatmul.mubr.f32.gmra.mrb[0].mxu0 %v595
  %v1185 = vpop.f32.mrb[0].mxu0
  %v1186 = vadd.f32 %v929, %v1185
  %v1187 = vpop.f32.mrb[0].mxu0
  %v1188 = vadd.f32 %v931, %v1187
  %1189 = vmatprep.mubr.f32.mxu0 0.0
  %1190 = vmatmul.mubr.f32.gmra.mrb[0].mxu0 %v596
  %v1191 = vpop.f32.mrb[0].mxu0
  %v1192 = vadd.f32 %v935, %v1191
  %v1193 = vpop.f32.mrb[0].mxu0
  %v1194 = vadd.f32 %v937, %v1193
  %1195 = vmatprep.mubr.f32.mxu0 0.0
  %1196 = vmatmul.mubr.f32.gmra.mrb[0].mxu0 %v597
  %v1197 = vpop.f32.mrb[0].mxu0
  %v1198 = vadd.f32 %v941, %v1197
  %v1199 = vpop.f32.mrb[0].mxu0
  %v1200 = vadd.f32 %v943, %v1199
  %1201 = vmatprep.mubr.f32.mxu0 0.0
  %1202 = vmatmul.mubr.f32.gmra.mrb[0].mxu0 %v598
  %v1203 = vpop.f32.mrb[0].mxu0
  %v1204 = vadd.f32 %v947, %v1203
  %v1205 = vpop.f32.mrb[0].mxu0
  %v1206 = vadd.f32 %v949, %v1205
  %1207 = vmatprep.mubr.f32.mxu0 0.0
  %1208 = vmatmul.mubr.f32.gmra.mrb[0].mxu0 %v599
  %v1209 = vpop.f32.mrb[0].mxu0
  %v1210 = vadd.f32 %v953, %v1209
  %v1211 = vpop.f32.mrb[0].mxu0
  %v1212 = vadd.f32 %v955, %v1211
  %1213 = vmatprep.mubr.f32.mxu0 0.0
  %1214 = vmatmul.mubr.f32.gmra.mrb[0].mxu0 %v600
  %v1215 = vpop.f32.mrb[0].mxu0
  %v1216 = vadd.f32 %v959, %v1215
  %v1217 = vpop.f32.mrb[0].mxu0
  %v1218 = vadd.f32 %v961, %v1217
  %1219 = vmatprep.mubr.f32.mxu0 0.0
  %1220 = vmatmul.mubr.f32.gmra.mrb[0].mxu0 %v601
  %v1221 = vpop.f32.mrb[0].mxu0
  %v1222 = vadd.f32 %v965, %v1221
  %v1223 = vpop.f32.mrb[0].mxu0
  %v1224 = vadd.f32 %v967, %v1223
  %1225 = vmatprep.mubr.f32.mxu0 0.0
  %1226 = vmatmul.mubr.f32.gmra.mrb[0].mxu0 %v602
  %v1227 = vpop.f32.mrb[0].mxu0
  %v1228 = vadd.f32 %v971, %v1227
  %v1229 = vpop.f32.mrb[0].mxu0
  %v1230 = vadd.f32 %v973, %v1229
  %1231 = vmatprep.mubr.f32.mxu0 0.0
  %1232 = vmatmul.mubr.f32.gmra.mrb[0].mxu0 %v603
  %v1233 = vpop.f32.mrb[0].mxu0
  %v1234 = vadd.f32 %v977, %v1233
  %v1235 = vpop.f32.mrb[0].mxu0
  %v1236 = vadd.f32 %v979, %v1235
  %1237 = vmatprep.mubr.f32.mxu0 0.0
  %1238 = vmatmul.mubr.f32.gmra.mrb[0].mxu0 %v604
  %v1239 = vpop.f32.mrb[0].mxu0
  %v1240 = vadd.f32 %v983, %v1239
  %v1241 = vpop.f32.mrb[0].mxu0
  %v1242 = vadd.f32 %v985, %v1241
  %1243 = vmatprep.mubr.f32.mxu0 0.0
  %1244 = vmatmul.mubr.f32.gmra.mrb[0].mxu0 %v605
  %v1245 = vpop.f32.mrb[0].mxu0
  %v1246 = vadd.f32 %v989, %v1245
  %v1247 = vpop.f32.mrb[0].mxu0
  %v1248 = vadd.f32 %v991, %v1247
  %1249 = vdwg.mxu0
  %v1250 = vrot.slane %v574, 7
  %v1251 = vrot.slane %v575, 7
  %v1252 = vrot.slane %v576, 7
  %v1253 = vrot.slane %v577, 7
  %v1254 = vrot.slane %v578, 7
  %v1255 = vrot.slane %v579, 7
  %v1256 = vrot.slane %v580, 7
  %v1257 = vrot.slane %v581, 7
  %v1258 = vrot.slane %v582, 7
  %v1259 = vrot.slane %v583, 7
  %v1260 = vrot.slane %v584, 7
  %v1261 = vrot.slane %v585, 7
  %v1262 = vrot.slane %v586, 7
  %v1263 = vrot.slane %v587, 7
  %v1264 = vrot.slane %v588, 7
  %v1265 = vrot.slane %v589, 7
  %v1266 = vrot.slane %v590, 7
  %v1267 = vrot.slane %v591, 7
  %v1268 = vrot.slane %v592, 7
  %v1269 = vrot.slane %v593, 7
  %v1270 = vrot.slane %v594, 7
  %v1271 = vrot.slane %v595, 7
  %v1272 = vrot.slane %v596, 7
  %v1273 = vrot.slane %v597, 7
  %v1274 = vrot.slane %v598, 7
  %v1275 = vrot.slane %v599, 7
  %v1276 = vrot.slane %v600, 7
  %v1277 = vrot.slane %v601, 7
  %v1278 = vrot.slane %v602, 7
  %v1279 = vrot.slane %v603, 7
  %v1280 = vrot.slane %v604, 7
  %v1281 = vrot.slane %v605, 7
  %vm1282 = vcmp.lt.s32.totalorder %v478, 1
  %v1283 = vsel %vm1282, %v1280, %v1281
  %v1284 = vsel %vm1282, %v1279, %v1280
  %v1285 = vsel %vm1282, %v1278, %v1279
  %v1286 = vsel %vm1282, %v1277, %v1278
  %v1287 = vsel %vm1282, %v1276, %v1277
  %v1288 = vsel %vm1282, %v1275, %v1276
  %v1289 = vsel %vm1282, %v1274, %v1275
  %v1290 = vsel %vm1282, %v1273, %v1274
  %v1291 = vsel %vm1282, %v1272, %v1273
  %v1292 = vsel %vm1282, %v1271, %v1272
  %v1293 = vsel %vm1282, %v1270, %v1271
  %v1294 = vsel %vm1282, %v1269, %v1270
  %v1295 = vsel %vm1282, %v1268, %v1269
  %v1296 = vsel %vm1282, %v1267, %v1268
  %v1297 = vsel %vm1282, %v1266, %v1267
  %v1298 = vsel %vm1282, %v1265, %v1266
  %v1299 = vsel %vm1282, %v1264, %v1265
  %v1300 = vsel %vm1282, %v1263, %v1264
  %v1301 = vsel %vm1282, %v1262, %v1263
  %v1302 = vsel %vm1282, %v1261, %v1262
  %v1303 = vsel %vm1282, %v1260, %v1261
  %v1304 = vsel %vm1282, %v1259, %v1260
  %v1305 = vsel %vm1282, %v1258, %v1259
  %v1306 = vsel %vm1282, %v1257, %v1258
  %v1307 = vsel %vm1282, %v1256, %v1257
  %v1308 = vsel %vm1282, %v1255, %v1256
  %v1309 = vsel %vm1282, %v1254, %v1255
  %v1310 = vsel %vm1282, %v1253, %v1254
  %v1311 = vsel %vm1282, %v1252, %v1253
  %v1312 = vsel %vm1282, %v1251, %v1252
  %v1313 = vsel %vm1282, %v1250, %v1251
  %v1314 = vsel %vm1282, %v1281, %v1250
  %s1315 = scalar_lea.vmem %s3, 256
  %v1316 = vld [vmem:[%s1315] sm:$0xff]
  %v1317 = vld [vmem:[%s1315 + $0x8] sm:$0xff]
  %v1318 = vld [vmem:[%s1315 + $0x10] sm:$0xff]
  %v1319 = vld [vmem:[%s1315 + $0x18] sm:$0xff]
  %v1320 = vld [vmem:[%s1315 + $0x20] sm:$0xff]
  %v1321 = vld [vmem:[%s1315 + $0x28] sm:$0xff]
  %v1322 = vld [vmem:[%s1315 + $0x30] sm:$0xff]
  %v1323 = vld [vmem:[%s1315 + $0x38] sm:$0xff]
  %v1324 = vld [vmem:[%s1315 + $0x40] sm:$0xff]
  %v1325 = vld [vmem:[%s1315 + $0x48] sm:$0xff]
  %v1326 = vld [vmem:[%s1315 + $0x50] sm:$0xff]
  %v1327 = vld [vmem:[%s1315 + $0x58] sm:$0xff]
  %v1328 = vld [vmem:[%s1315 + $0x60] sm:$0xff]
  %v1329 = vld [vmem:[%s1315 + $0x68] sm:$0xff]
  %v1330 = vld [vmem:[%s1315 + $0x70] sm:$0xff]
  %v1331 = vld [vmem:[%s1315 + $0x78] sm:$0xff]
  %v1332 = vld [vmem:[%s1315 + $0x80] sm:$0xff]
  %v1333 = vld [vmem:[%s1315 + $0x88] sm:$0xff]
  %v1334 = vld [vmem:[%s1315 + $0x90] sm:$0xff]
  %v1335 = vld [vmem:[%s1315 + $0x98] sm:$0xff]
  %v1336 = vld [vmem:[%s1315 + $0xa0] sm:$0xff]
  %v1337 = vld [vmem:[%s1315 + $0xa8] sm:$0xff]
  %v1338 = vld [vmem:[%s1315 + $0xb0] sm:$0xff]
  %v1339 = vld [vmem:[%s1315 + $0xb8] sm:$0xff]
  %v1340 = vld [vmem:[%s1315 + $0xc0] sm:$0xff]
  %v1341 = vld [vmem:[%s1315 + $0xc8] sm:$0xff]
  %v1342 = vld [vmem:[%s1315 + $0xd0] sm:$0xff]
  %v1343 = vld [vmem:[%s1315 + $0xd8] sm:$0xff]
  %v1344 = vld [vmem:[%s1315 + $0xe0] sm:$0xff]
  %v1345 = vld [vmem:[%s1315 + $0xe8] sm:$0xff]
  %v1346 = vld [vmem:[%s1315 + $0xf0] sm:$0xff]
  %v1347 = vld [vmem:[%s1315 + $0xf8] sm:$0xff]
  %1348 = vmatprep.subr.mxu0 %v1317
  %1349 = vmatpush1.msra.mxu0 %v1316
  %1350 = vmatprep.subr.mxu0 %v1319
  %1351 = vmatpush1.msra.mxu0 %v1318
  %1352 = vmatprep.subr.mxu0 %v1321
  %1353 = vmatpush1.msra.mxu0 %v1320
  %1354 = vmatprep.subr.mxu0 %v1323
  %1355 = vmatpush1.msra.mxu0 %v1322
  %1356 = vmatprep.subr.mxu0 %v1325
  %1357 = vmatpush1.msra.mxu0 %v1324
  %1358 = vmatprep.subr.mxu0 %v1327
  %1359 = vmatpush1.msra.mxu0 %v1326
  %1360 = vmatprep.subr.mxu0 %v1329
  %1361 = vmatpush1.msra.mxu0 %v1328
  %1362 = vmatprep.subr.mxu0 %v1331
  %1363 = vmatpush1.msra.mxu0 %v1330
  %1364 = vmatprep.subr.mxu0 %v1333
  %1365 = vmatpush1.msra.mxu0 %v1332
  %1366 = vmatprep.subr.mxu0 %v1335
  %1367 = vmatpush1.msra.mxu0 %v1334
  %1368 = vmatprep.subr.mxu0 %v1337
  %1369 = vmatpush1.msra.mxu0 %v1336
  %1370 = vmatprep.subr.mxu0 %v1339
  %1371 = vmatpush1.msra.mxu0 %v1338
  %1372 = vmatprep.subr.mxu0 %v1341
  %1373 = vmatpush1.msra.mxu0 %v1340
  %1374 = vmatprep.subr.mxu0 %v1343
  %1375 = vmatpush1.msra.mxu0 %v1342
  %1376 = vmatprep.subr.mxu0 %v1345
  %1377 = vmatpush1.msra.mxu0 %v1344
  %1378 = vmatprep.subr.mxu0 %v1347
  %1379 = vmatpush1.msra.mxu0 %v1346
  %1380 = vmatprep.subr.mxu0 0.0
  %1381 = vmatpush1.msra.mxu0 0.0
  %1382 = vmatprep.subr.mxu0 0.0
  %1383 = vmatpush1.msra.mxu0 0.0
  %1384 = vmatprep.subr.mxu0 0.0
  %1385 = vmatpush1.msra.mxu0 0.0
  %1386 = vmatprep.subr.mxu0 0.0
  %1387 = vmatpush1.msra.mxu0 0.0
  %1388 = vmatprep.subr.mxu0 0.0
  %1389 = vmatpush1.msra.mxu0 0.0
  %1390 = vmatprep.subr.mxu0 0.0
  %1391 = vmatpush1.msra.mxu0 0.0
  %1392 = vmatprep.subr.mxu0 0.0
  %1393 = vmatpush1.msra.mxu0 0.0
  %1394 = vmatprep.subr.mxu0 0.0
  %1395 = vmatpush1.msra.mxu0 0.0
  %1396 = vmatprep.subr.mxu0 0.0
  %1397 = vmatpush1.msra.mxu0 0.0
  %1398 = vmatprep.subr.mxu0 0.0
  %1399 = vmatpush1.msra.mxu0 0.0
  %1400 = vmatprep.subr.mxu0 0.0
  %1401 = vmatpush1.msra.mxu0 0.0
  %1402 = vmatprep.subr.mxu0 0.0
  %1403 = vmatpush1.msra.mxu0 0.0
  %1404 = vmatprep.subr.mxu0 0.0
  %1405 = vmatpush1.msra.mxu0 0.0
  %1406 = vmatprep.subr.mxu0 0.0
  %1407 = vmatpush1.msra.mxu0 0.0
  %1408 = vmatprep.subr.mxu0 0.0
  %1409 = vmatpush1.msra.mxu0 0.0
  %1410 = vmatprep.subr.mxu0 0.0
  %1411 = vmatpush1.msra.mxu0 0.0
  %1412 = vmatprep.mubr.f32.mxu0 0.0
  %1413 = vmatmul.mubr.f32.gmra.mrb[0].mxu0 %v1314
  %v1414 = vpop.f32.mrb[0].mxu0
  %v1415 = vadd.f32 0.0, %v1414
  %v1416 = vpop.f32.mrb[0].mxu0
  %v1417 = vadd.f32 0.0, %v1416
  %1418 = vmatprep.mubr.f32.mxu0 0.0
  %1419 = vmatmul.mubr.f32.gmra.mrb[0].mxu0 %v1313
  %v1420 = vpop.f32.mrb[0].mxu0
  %v1421 = vadd.f32 0.0, %v1420
  %v1422 = vpop.f32.mrb[0].mxu0
  %v1423 = vadd.f32 0.0, %v1422
  %1424 = vmatprep.mubr.f32.mxu0 0.0
  %1425 = vmatmul.mubr.f32.gmra.mrb[0].mxu0 %v1312
  %v1426 = vpop.f32.mrb[0].mxu0
  %v1427 = vadd.f32 0.0, %v1426
  %v1428 = vpop.f32.mrb[0].mxu0
  %v1429 = vadd.f32 0.0, %v1428
  %1430 = vmatprep.mubr.f32.mxu0 0.0
  %1431 = vmatmul.mubr.f32.gmra.mrb[0].mxu0 %v1311
  %v1432 = vpop.f32.mrb[0].mxu0
  %v1433 = vadd.f32 0.0, %v1432
  %v1434 = vpop.f32.mrb[0].mxu0
  %v1435 = vadd.f32 0.0, %v1434
  %1436 = vmatprep.mubr.f32.mxu0 0.0
  %1437 = vmatmul.mubr.f32.gmra.mrb[0].mxu0 %v1310
  %v1438 = vpop.f32.mrb[0].mxu0
  %v1439 = vadd.f32 0.0, %v1438
  %v1440 = vpop.f32.mrb[0].mxu0
  %v1441 = vadd.f32 0.0, %v1440
  %1442 = vmatprep.mubr.f32.mxu0 0.0
  %1443 = vmatmul.mubr.f32.gmra.mrb[0].mxu0 %v1309
  %v1444 = vpop.f32.mrb[0].mxu0
  %v1445 = vadd.f32 0.0, %v1444
  %v1446 = vpop.f32.mrb[0].mxu0
  %v1447 = vadd.f32 0.0, %v1446
  %1448 = vmatprep.mubr.f32.mxu0 0.0
  %1449 = vmatmul.mubr.f32.gmra.mrb[0].mxu0 %v1308
  %v1450 = vpop.f32.mrb[0].mxu0
  %v1451 = vadd.f32 0.0, %v1450
  %v1452 = vpop.f32.mrb[0].mxu0
  %v1453 = vadd.f32 0.0, %v1452
  %1454 = vmatprep.mubr.f32.mxu0 0.0
  %1455 = vmatmul.mubr.f32.gmra.mrb[0].mxu0 %v1307
  %v1456 = vpop.f32.mrb[0].mxu0
  %v1457 = vadd.f32 0.0, %v1456
  %v1458 = vpop.f32.mrb[0].mxu0
  %v1459 = vadd.f32 0.0, %v1458
  %1460 = vmatprep.mubr.f32.mxu0 0.0
  %1461 = vmatmul.mubr.f32.gmra.mrb[0].mxu0 %v1306
  %v1462 = vpop.f32.mrb[0].mxu0
  %v1463 = vadd.f32 0.0, %v1462
  %v1464 = vpop.f32.mrb[0].mxu0
  %v1465 = vadd.f32 0.0, %v1464
  %1466 = vmatprep.mubr.f32.mxu0 0.0
  %1467 = vmatmul.mubr.f32.gmra.mrb[0].mxu0 %v1305
  %v1468 = vpop.f32.mrb[0].mxu0
  %v1469 = vadd.f32 0.0, %v1468
  %v1470 = vpop.f32.mrb[0].mxu0
  %v1471 = vadd.f32 0.0, %v1470
  %1472 = vmatprep.mubr.f32.mxu0 0.0
  %1473 = vmatmul.mubr.f32.gmra.mrb[0].mxu0 %v1304
  %v1474 = vpop.f32.mrb[0].mxu0
  %v1475 = vadd.f32 0.0, %v1474
  %v1476 = vpop.f32.mrb[0].mxu0
  %v1477 = vadd.f32 0.0, %v1476
  %1478 = vmatprep.mubr.f32.mxu0 0.0
  %1479 = vmatmul.mubr.f32.gmra.mrb[0].mxu0 %v1303
  %v1480 = vpop.f32.mrb[0].mxu0
  %v1481 = vadd.f32 0.0, %v1480
  %v1482 = vpop.f32.mrb[0].mxu0
  %v1483 = vadd.f32 0.0, %v1482
  %1484 = vmatprep.mubr.f32.mxu0 0.0
  %1485 = vmatmul.mubr.f32.gmra.mrb[0].mxu0 %v1302
  %v1486 = vpop.f32.mrb[0].mxu0
  %v1487 = vadd.f32 0.0, %v1486
  %v1488 = vpop.f32.mrb[0].mxu0
  %v1489 = vadd.f32 0.0, %v1488
  %1490 = vmatprep.mubr.f32.mxu0 0.0
  %1491 = vmatmul.mubr.f32.gmra.mrb[0].mxu0 %v1301
  %v1492 = vpop.f32.mrb[0].mxu0
  %v1493 = vadd.f32 0.0, %v1492
  %v1494 = vpop.f32.mrb[0].mxu0
  %v1495 = vadd.f32 0.0, %v1494
  %1496 = vmatprep.mubr.f32.mxu0 0.0
  %1497 = vmatmul.mubr.f32.gmra.mrb[0].mxu0 %v1300
  %v1498 = vpop.f32.mrb[0].mxu0
  %v1499 = vadd.f32 0.0, %v1498
  %v1500 = vpop.f32.mrb[0].mxu0
  %v1501 = vadd.f32 0.0, %v1500
  %1502 = vmatprep.mubr.f32.mxu0 0.0
  %1503 = vmatmul.mubr.f32.gmra.mrb[0].mxu0 %v1299
  %v1504 = vpop.f32.mrb[0].mxu0
  %v1505 = vadd.f32 0.0, %v1504
  %v1506 = vpop.f32.mrb[0].mxu0
  %v1507 = vadd.f32 0.0, %v1506
  %1508 = vmatprep.mubr.f32.mxu0 0.0
  %1509 = vmatmul.mubr.f32.gmra.mrb[0].mxu0 %v1298
  %v1510 = vpop.f32.mrb[0].mxu0
  %v1511 = vadd.f32 0.0, %v1510
  %v1512 = vpop.f32.mrb[0].mxu0
  %v1513 = vadd.f32 0.0, %v1512
  %1514 = vmatprep.mubr.f32.mxu0 0.0
  %1515 = vmatmul.mubr.f32.gmra.mrb[0].mxu0 %v1297
  %v1516 = vpop.f32.mrb[0].mxu0
  %v1517 = vadd.f32 0.0, %v1516
  %v1518 = vpop.f32.mrb[0].mxu0
  %v1519 = vadd.f32 0.0, %v1518
  %1520 = vmatprep.mubr.f32.mxu0 0.0
  %1521 = vmatmul.mubr.f32.gmra.mrb[0].mxu0 %v1296
  %v1522 = vpop.f32.mrb[0].mxu0
  %v1523 = vadd.f32 0.0, %v1522
  %v1524 = vpop.f32.mrb[0].mxu0
  %v1525 = vadd.f32 0.0, %v1524
  %1526 = vmatprep.mubr.f32.mxu0 0.0
  %1527 = vmatmul.mubr.f32.gmra.mrb[0].mxu0 %v1295
  %v1528 = vpop.f32.mrb[0].mxu0
  %v1529 = vadd.f32 0.0, %v1528
  %v1530 = vpop.f32.mrb[0].mxu0
  %v1531 = vadd.f32 0.0, %v1530
  %1532 = vmatprep.mubr.f32.mxu0 0.0
  %1533 = vmatmul.mubr.f32.gmra.mrb[0].mxu0 %v1294
  %v1534 = vpop.f32.mrb[0].mxu0
  %v1535 = vadd.f32 0.0, %v1534
  %v1536 = vpop.f32.mrb[0].mxu0
  %v1537 = vadd.f32 0.0, %v1536
  %1538 = vmatprep.mubr.f32.mxu0 0.0
  %1539 = vmatmul.mubr.f32.gmra.mrb[0].mxu0 %v1293
  %v1540 = vpop.f32.mrb[0].mxu0
  %v1541 = vadd.f32 0.0, %v1540
  %v1542 = vpop.f32.mrb[0].mxu0
  %v1543 = vadd.f32 0.0, %v1542
  %1544 = vmatprep.mubr.f32.mxu0 0.0
  %1545 = vmatmul.mubr.f32.gmra.mrb[0].mxu0 %v1292
  %v1546 = vpop.f32.mrb[0].mxu0
  %v1547 = vadd.f32 0.0, %v1546
  %v1548 = vpop.f32.mrb[0].mxu0
  %v1549 = vadd.f32 0.0, %v1548
  %1550 = vmatprep.mubr.f32.mxu0 0.0
  %1551 = vmatmul.mubr.f32.gmra.mrb[0].mxu0 %v1291
  %v1552 = vpop.f32.mrb[0].mxu0
  %v1553 = vadd.f32 0.0, %v1552
  %v1554 = vpop.f32.mrb[0].mxu0
  %v1555 = vadd.f32 0.0, %v1554
  %1556 = vmatprep.mubr.f32.mxu0 0.0
  %1557 = vmatmul.mubr.f32.gmra.mrb[0].mxu0 %v1290
  %v1558 = vpop.f32.mrb[0].mxu0
  %v1559 = vadd.f32 0.0, %v1558
  %v1560 = vpop.f32.mrb[0].mxu0
  %v1561 = vadd.f32 0.0, %v1560
  %1562 = vmatprep.mubr.f32.mxu0 0.0
  %1563 = vmatmul.mubr.f32.gmra.mrb[0].mxu0 %v1289
  %v1564 = vpop.f32.mrb[0].mxu0
  %v1565 = vadd.f32 0.0, %v1564
  %v1566 = vpop.f32.mrb[0].mxu0
  %v1567 = vadd.f32 0.0, %v1566
  %1568 = vmatprep.mubr.f32.mxu0 0.0
  %1569 = vmatmul.mubr.f32.gmra.mrb[0].mxu0 %v1288
  %v1570 = vpop.f32.mrb[0].mxu0
  %v1571 = vadd.f32 0.0, %v1570
  %v1572 = vpop.f32.mrb[0].mxu0
  %v1573 = vadd.f32 0.0, %v1572
  %1574 = vmatprep.mubr.f32.mxu0 0.0
  %1575 = vmatmul.mubr.f32.gmra.mrb[0].mxu0 %v1287
  %v1576 = vpop.f32.mrb[0].mxu0
  %v1577 = vadd.f32 0.0, %v1576
  %v1578 = vpop.f32.mrb[0].mxu0
  %v1579 = vadd.f32 0.0, %v1578
  %1580 = vmatprep.mubr.f32.mxu0 0.0
  %1581 = vmatmul.mubr.f32.gmra.mrb[0].mxu0 %v1286
  %v1582 = vpop.f32.mrb[0].mxu0
  %v1583 = vadd.f32 0.0, %v1582
  %v1584 = vpop.f32.mrb[0].mxu0
  %v1585 = vadd.f32 0.0, %v1584
  %1586 = vmatprep.mubr.f32.mxu0 0.0
  %1587 = vmatmul.mubr.f32.gmra.mrb[0].mxu0 %v1285
  %v1588 = vpop.f32.mrb[0].mxu0
  %v1589 = vadd.f32 0.0, %v1588
  %v1590 = vpop.f32.mrb[0].mxu0
  %v1591 = vadd.f32 0.0, %v1590
  %1592 = vmatprep.mubr.f32.mxu0 0.0
  %1593 = vmatmul.mubr.f32.gmra.mrb[0].mxu0 %v1284
  %v1594 = vpop.f32.mrb[0].mxu0
  %v1595 = vadd.f32 0.0, %v1594
  %v1596 = vpop.f32.mrb[0].mxu0
  %v1597 = vadd.f32 0.0, %v1596
  %1598 = vmatprep.mubr.f32.mxu0 0.0
  %1599 = vmatmul.mubr.f32.gmra.mrb[0].mxu0 %v1283
  %v1600 = vpop.f32.mrb[0].mxu0
  %v1601 = vadd.f32 0.0, %v1600
  %v1602 = vpop.f32.mrb[0].mxu0
  %v1603 = vadd.f32 0.0, %v1602
  %1604 = vdwg.mxu0
  %v1605 = vadd.f32 %v1060, %v1415
  %v1606 = vadd.f32 %v1062, %v1417
  %v1607 = vadd.f32 %v1066, %v1421
  %v1608 = vadd.f32 %v1068, %v1423
  %v1609 = vadd.f32 %v1072, %v1427
  %v1610 = vadd.f32 %v1074, %v1429
  %v1611 = vadd.f32 %v1078, %v1433
  %v1612 = vadd.f32 %v1080, %v1435
  %v1613 = vadd.f32 %v1084, %v1439
  %v1614 = vadd.f32 %v1086, %v1441
  %v1615 = vadd.f32 %v1090, %v1445
  %v1616 = vadd.f32 %v1092, %v1447
  %v1617 = vadd.f32 %v1096, %v1451
  %v1618 = vadd.f32 %v1098, %v1453
  %v1619 = vadd.f32 %v1102, %v1457
  %v1620 = vadd.f32 %v1104, %v1459
  %v1621 = vadd.f32 %v1108, %v1463
  %v1622 = vadd.f32 %v1110, %v1465
  %v1623 = vadd.f32 %v1114, %v1469
  %v1624 = vadd.f32 %v1116, %v1471
  %v1625 = vadd.f32 %v1120, %v1475
  %v1626 = vadd.f32 %v1122, %v1477
  %v1627 = vadd.f32 %v1126, %v1481
  %v1628 = vadd.f32 %v1128, %v1483
  %v1629 = vadd.f32 %v1132, %v1487
  %v1630 = vadd.f32 %v1134, %v1489
  %v1631 = vadd.f32 %v1138, %v1493
  %v1632 = vadd.f32 %v1140, %v1495
  %v1633 = vadd.f32 %v1144, %v1499
  %v1634 = vadd.f32 %v1146, %v1501
  %v1635 = vadd.f32 %v1150, %v1505
  %v1636 = vadd.f32 %v1152, %v1507
  %v1637 = vadd.f32 %v1156, %v1511
  %v1638 = vadd.f32 %v1158, %v1513
  %v1639 = vadd.f32 %v1162, %v1517
  %v1640 = vadd.f32 %v1164, %v1519
  %v1641 = vadd.f32 %v1168, %v1523
  %v1642 = vadd.f32 %v1170, %v1525
  %v1643 = vadd.f32 %v1174, %v1529
  %v1644 = vadd.f32 %v1176, %v1531
  %v1645 = vadd.f32 %v1180, %v1535
  %v1646 = vadd.f32 %v1182, %v1537
  %v1647 = vadd.f32 %v1186, %v1541
  %v1648 = vadd.f32 %v1188, %v1543
  %v1649 = vadd.f32 %v1192, %v1547
  %v1650 = vadd.f32 %v1194, %v1549
  %v1651 = vadd.f32 %v1198, %v1553
  %v1652 = vadd.f32 %v1200, %v1555
  %v1653 = vadd.f32 %v1204, %v1559
  %v1654 = vadd.f32 %v1206, %v1561
  %v1655 = vadd.f32 %v1210, %v1565
  %v1656 = vadd.f32 %v1212, %v1567
  %v1657 = vadd.f32 %v1216, %v1571
  %v1658 = vadd.f32 %v1218, %v1573
  %v1659 = vadd.f32 %v1222, %v1577
  %v1660 = vadd.f32 %v1224, %v1579
  %v1661 = vadd.f32 %v1228, %v1583
  %v1662 = vadd.f32 %v1230, %v1585
  %v1663 = vadd.f32 %v1234, %v1589
  %v1664 = vadd.f32 %v1236, %v1591
  %v1665 = vadd.f32 %v1240, %v1595
  %v1666 = vadd.f32 %v1242, %v1597
  %v1667 = vadd.f32 %v1246, %v1601
  %v1668 = vadd.f32 %v1248, %v1603
  %v1669 = vrot.slane %v574, 1
  %v1670 = vrot.slane %v575, 1
  %v1671 = vrot.slane %v576, 1
  %v1672 = vrot.slane %v577, 1
  %v1673 = vrot.slane %v578, 1
  %v1674 = vrot.slane %v579, 1
  %v1675 = vrot.slane %v580, 1
  %v1676 = vrot.slane %v581, 1
  %v1677 = vrot.slane %v582, 1
  %v1678 = vrot.slane %v583, 1
  %v1679 = vrot.slane %v584, 1
  %v1680 = vrot.slane %v585, 1
  %v1681 = vrot.slane %v586, 1
  %v1682 = vrot.slane %v587, 1
  %v1683 = vrot.slane %v588, 1
  %v1684 = vrot.slane %v589, 1
  %v1685 = vrot.slane %v590, 1
  %v1686 = vrot.slane %v591, 1
  %v1687 = vrot.slane %v592, 1
  %v1688 = vrot.slane %v593, 1
  %v1689 = vrot.slane %v594, 1
  %v1690 = vrot.slane %v595, 1
  %v1691 = vrot.slane %v596, 1
  %v1692 = vrot.slane %v597, 1
  %v1693 = vrot.slane %v598, 1
  %v1694 = vrot.slane %v599, 1
  %v1695 = vrot.slane %v600, 1
  %v1696 = vrot.slane %v601, 1
  %v1697 = vrot.slane %v602, 1
  %v1698 = vrot.slane %v603, 1
  %v1699 = vrot.slane %v604, 1
  %v1700 = vrot.slane %v605, 1
  %vm1701 = vcmp.lt.s32.totalorder %v478, 7
  %v1702 = vsel %vm1701, %v1699, %v1700
  %v1703 = vsel %vm1701, %v1698, %v1699
  %v1704 = vsel %vm1701, %v1697, %v1698
  %v1705 = vsel %vm1701, %v1696, %v1697
  %v1706 = vsel %vm1701, %v1695, %v1696
  %v1707 = vsel %vm1701, %v1694, %v1695
  %v1708 = vsel %vm1701, %v1693, %v1694
  %v1709 = vsel %vm1701, %v1692, %v1693
  %v1710 = vsel %vm1701, %v1691, %v1692
  %v1711 = vsel %vm1701, %v1690, %v1691
  %v1712 = vsel %vm1701, %v1689, %v1690
  %v1713 = vsel %vm1701, %v1688, %v1689
  %v1714 = vsel %vm1701, %v1687, %v1688
  %v1715 = vsel %vm1701, %v1686, %v1687
  %v1716 = vsel %vm1701, %v1685, %v1686
  %v1717 = vsel %vm1701, %v1684, %v1685
  %v1718 = vsel %vm1701, %v1683, %v1684
  %v1719 = vsel %vm1701, %v1682, %v1683
  %v1720 = vsel %vm1701, %v1681, %v1682
  %v1721 = vsel %vm1701, %v1680, %v1681
  %v1722 = vsel %vm1701, %v1679, %v1680
  %v1723 = vsel %vm1701, %v1678, %v1679
  %v1724 = vsel %vm1701, %v1677, %v1678
  %v1725 = vsel %vm1701, %v1676, %v1677
  %v1726 = vsel %vm1701, %v1675, %v1676
  %v1727 = vsel %vm1701, %v1674, %v1675
  %v1728 = vsel %vm1701, %v1673, %v1674
  %v1729 = vsel %vm1701, %v1672, %v1673
  %v1730 = vsel %vm1701, %v1671, %v1672
  %v1731 = vsel %vm1701, %v1670, %v1671
  %v1732 = vsel %vm1701, %v1669, %v1670
  %v1733 = vsel %vm1701, %v1700, %v1669
  %s1734 = scalar_lea.vmem %s3, 768
  %v1735 = vld [vmem:[%s1734] sm:$0xff]
  %v1736 = vld [vmem:[%s1734 + $0x8] sm:$0xff]
  %v1737 = vld [vmem:[%s1734 + $0x10] sm:$0xff]
  %v1738 = vld [vmem:[%s1734 + $0x18] sm:$0xff]
  %v1739 = vld [vmem:[%s1734 + $0x20] sm:$0xff]
  %v1740 = vld [vmem:[%s1734 + $0x28] sm:$0xff]
  %v1741 = vld [vmem:[%s1734 + $0x30] sm:$0xff]
  %v1742 = vld [vmem:[%s1734 + $0x38] sm:$0xff]
  %v1743 = vld [vmem:[%s1734 + $0x40] sm:$0xff]
  %v1744 = vld [vmem:[%s1734 + $0x48] sm:$0xff]
  %v1745 = vld [vmem:[%s1734 + $0x50] sm:$0xff]
  %v1746 = vld [vmem:[%s1734 + $0x58] sm:$0xff]
  %v1747 = vld [vmem:[%s1734 + $0x60] sm:$0xff]
  %v1748 = vld [vmem:[%s1734 + $0x68] sm:$0xff]
  %v1749 = vld [vmem:[%s1734 + $0x70] sm:$0xff]
  %v1750 = vld [vmem:[%s1734 + $0x78] sm:$0xff]
  %v1751 = vld [vmem:[%s1734 + $0x80] sm:$0xff]
  %v1752 = vld [vmem:[%s1734 + $0x88] sm:$0xff]
  %v1753 = vld [vmem:[%s1734 + $0x90] sm:$0xff]
  %v1754 = vld [vmem:[%s1734 + $0x98] sm:$0xff]
  %v1755 = vld [vmem:[%s1734 + $0xa0] sm:$0xff]
  %v1756 = vld [vmem:[%s1734 + $0xa8] sm:$0xff]
  %v1757 = vld [vmem:[%s1734 + $0xb0] sm:$0xff]
  %v1758 = vld [vmem:[%s1734 + $0xb8] sm:$0xff]
  %v1759 = vld [vmem:[%s1734 + $0xc0] sm:$0xff]
  %v1760 = vld [vmem:[%s1734 + $0xc8] sm:$0xff]
  %v1761 = vld [vmem:[%s1734 + $0xd0] sm:$0xff]
  %v1762 = vld [vmem:[%s1734 + $0xd8] sm:$0xff]
  %v1763 = vld [vmem:[%s1734 + $0xe0] sm:$0xff]
  %v1764 = vld [vmem:[%s1734 + $0xe8] sm:$0xff]
  %v1765 = vld [vmem:[%s1734 + $0xf0] sm:$0xff]
  %v1766 = vld [vmem:[%s1734 + $0xf8] sm:$0xff]
  %1767 = vmatprep.subr.mxu0 %v1736
  %1768 = vmatpush1.msra.mxu0 %v1735
  %1769 = vmatprep.subr.mxu0 %v1738
  %1770 = vmatpush1.msra.mxu0 %v1737
  %1771 = vmatprep.subr.mxu0 %v1740
  %1772 = vmatpush1.msra.mxu0 %v1739
  %1773 = vmatprep.subr.mxu0 %v1742
  %1774 = vmatpush1.msra.mxu0 %v1741
  %1775 = vmatprep.subr.mxu0 %v1744
  %1776 = vmatpush1.msra.mxu0 %v1743
  %1777 = vmatprep.subr.mxu0 %v1746
  %1778 = vmatpush1.msra.mxu0 %v1745
  %1779 = vmatprep.subr.mxu0 %v1748
  %1780 = vmatpush1.msra.mxu0 %v1747
  %1781 = vmatprep.subr.mxu0 %v1750
  %1782 = vmatpush1.msra.mxu0 %v1749
  %1783 = vmatprep.subr.mxu0 %v1752
  %1784 = vmatpush1.msra.mxu0 %v1751
  %1785 = vmatprep.subr.mxu0 %v1754
  %1786 = vmatpush1.msra.mxu0 %v1753
  %1787 = vmatprep.subr.mxu0 %v1756
  %1788 = vmatpush1.msra.mxu0 %v1755
  %1789 = vmatprep.subr.mxu0 %v1758
  %1790 = vmatpush1.msra.mxu0 %v1757
  %1791 = vmatprep.subr.mxu0 %v1760
  %1792 = vmatpush1.msra.mxu0 %v1759
  %1793 = vmatprep.subr.mxu0 %v1762
  %1794 = vmatpush1.msra.mxu0 %v1761
  %1795 = vmatprep.subr.mxu0 %v1764
  %1796 = vmatpush1.msra.mxu0 %v1763
  %1797 = vmatprep.subr.mxu0 %v1766
  %1798 = vmatpush1.msra.mxu0 %v1765
  %1799 = vmatprep.subr.mxu0 0.0
  %1800 = vmatpush1.msra.mxu0 0.0
  %1801 = vmatprep.subr.mxu0 0.0
  %1802 = vmatpush1.msra.mxu0 0.0
  %1803 = vmatprep.subr.mxu0 0.0
  %1804 = vmatpush1.msra.mxu0 0.0
  %1805 = vmatprep.subr.mxu0 0.0
  %1806 = vmatpush1.msra.mxu0 0.0
  %1807 = vmatprep.subr.mxu0 0.0
  %1808 = vmatpush1.msra.mxu0 0.0
  %1809 = vmatprep.subr.mxu0 0.0
  %1810 = vmatpush1.msra.mxu0 0.0
  %1811 = vmatprep.subr.mxu0 0.0
  %1812 = vmatpush1.msra.mxu0 0.0
  %1813 = vmatprep.subr.mxu0 0.0
  %1814 = vmatpush1.msra.mxu0 0.0
  %1815 = vmatprep.subr.mxu0 0.0
  %1816 = vmatpush1.msra.mxu0 0.0
  %1817 = vmatprep.subr.mxu0 0.0
  %1818 = vmatpush1.msra.mxu0 0.0
  %1819 = vmatprep.subr.mxu0 0.0
  %1820 = vmatpush1.msra.mxu0 0.0
  %1821 = vmatprep.subr.mxu0 0.0
  %1822 = vmatpush1.msra.mxu0 0.0
  %1823 = vmatprep.subr.mxu0 0.0
  %1824 = vmatpush1.msra.mxu0 0.0
  %1825 = vmatprep.subr.mxu0 0.0
  %1826 = vmatpush1.msra.mxu0 0.0
  %1827 = vmatprep.subr.mxu0 0.0
  %1828 = vmatpush1.msra.mxu0 0.0
  %1829 = vmatprep.subr.mxu0 0.0
  %1830 = vmatpush1.msra.mxu0 0.0
  %1831 = vmatprep.mubr.f32.mxu0 0.0
  %1832 = vmatmul.mubr.f32.gmra.mrb[0].mxu0 %v1732
  %v1833 = vpop.f32.mrb[0].mxu0
  %v1834 = vadd.f32 0.0, %v1833
  %v1835 = vpop.f32.mrb[0].mxu0
  %v1836 = vadd.f32 0.0, %v1835
  %1837 = vmatprep.mubr.f32.mxu0 0.0
  %1838 = vmatmul.mubr.f32.gmra.mrb[0].mxu0 %v1731
  %v1839 = vpop.f32.mrb[0].mxu0
  %v1840 = vadd.f32 0.0, %v1839
  %v1841 = vpop.f32.mrb[0].mxu0
  %v1842 = vadd.f32 0.0, %v1841
  %1843 = vmatprep.mubr.f32.mxu0 0.0
  %1844 = vmatmul.mubr.f32.gmra.mrb[0].mxu0 %v1730
  %v1845 = vpop.f32.mrb[0].mxu0
  %v1846 = vadd.f32 0.0, %v1845
  %v1847 = vpop.f32.mrb[0].mxu0
  %v1848 = vadd.f32 0.0, %v1847
  %1849 = vmatprep.mubr.f32.mxu0 0.0
  %1850 = vmatmul.mubr.f32.gmra.mrb[0].mxu0 %v1729
  %v1851 = vpop.f32.mrb[0].mxu0
  %v1852 = vadd.f32 0.0, %v1851
  %v1853 = vpop.f32.mrb[0].mxu0
  %v1854 = vadd.f32 0.0, %v1853
  %1855 = vmatprep.mubr.f32.mxu0 0.0
  %1856 = vmatmul.mubr.f32.gmra.mrb[0].mxu0 %v1728
  %v1857 = vpop.f32.mrb[0].mxu0
  %v1858 = vadd.f32 0.0, %v1857
  %v1859 = vpop.f32.mrb[0].mxu0
  %v1860 = vadd.f32 0.0, %v1859
  %1861 = vmatprep.mubr.f32.mxu0 0.0
  %1862 = vmatmul.mubr.f32.gmra.mrb[0].mxu0 %v1727
  %v1863 = vpop.f32.mrb[0].mxu0
  %v1864 = vadd.f32 0.0, %v1863
  %v1865 = vpop.f32.mrb[0].mxu0
  %v1866 = vadd.f32 0.0, %v1865
  %1867 = vmatprep.mubr.f32.mxu0 0.0
  %1868 = vmatmul.mubr.f32.gmra.mrb[0].mxu0 %v1726
  %v1869 = vpop.f32.mrb[0].mxu0
  %v1870 = vadd.f32 0.0, %v1869
  %v1871 = vpop.f32.mrb[0].mxu0
  %v1872 = vadd.f32 0.0, %v1871
  %1873 = vmatprep.mubr.f32.mxu0 0.0
  %1874 = vmatmul.mubr.f32.gmra.mrb[0].mxu0 %v1725
  %v1875 = vpop.f32.mrb[0].mxu0
  %v1876 = vadd.f32 0.0, %v1875
  %v1877 = vpop.f32.mrb[0].mxu0
  %v1878 = vadd.f32 0.0, %v1877
  %1879 = vmatprep.mubr.f32.mxu0 0.0
  %1880 = vmatmul.mubr.f32.gmra.mrb[0].mxu0 %v1724
  %v1881 = vpop.f32.mrb[0].mxu0
  %v1882 = vadd.f32 0.0, %v1881
  %v1883 = vpop.f32.mrb[0].mxu0
  %v1884 = vadd.f32 0.0, %v1883
  %1885 = vmatprep.mubr.f32.mxu0 0.0
  %1886 = vmatmul.mubr.f32.gmra.mrb[0].mxu0 %v1723
  %v1887 = vpop.f32.mrb[0].mxu0
  %v1888 = vadd.f32 0.0, %v1887
  %v1889 = vpop.f32.mrb[0].mxu0
  %v1890 = vadd.f32 0.0, %v1889
  %1891 = vmatprep.mubr.f32.mxu0 0.0
  %1892 = vmatmul.mubr.f32.gmra.mrb[0].mxu0 %v1722
  %v1893 = vpop.f32.mrb[0].mxu0
  %v1894 = vadd.f32 0.0, %v1893
  %v1895 = vpop.f32.mrb[0].mxu0
  %v1896 = vadd.f32 0.0, %v1895
  %1897 = vmatprep.mubr.f32.mxu0 0.0
  %1898 = vmatmul.mubr.f32.gmra.mrb[0].mxu0 %v1721
  %v1899 = vpop.f32.mrb[0].mxu0
  %v1900 = vadd.f32 0.0, %v1899
  %v1901 = vpop.f32.mrb[0].mxu0
  %v1902 = vadd.f32 0.0, %v1901
  %1903 = vmatprep.mubr.f32.mxu0 0.0
  %1904 = vmatmul.mubr.f32.gmra.mrb[0].mxu0 %v1720
  %v1905 = vpop.f32.mrb[0].mxu0
  %v1906 = vadd.f32 0.0, %v1905
  %v1907 = vpop.f32.mrb[0].mxu0
  %v1908 = vadd.f32 0.0, %v1907
  %1909 = vmatprep.mubr.f32.mxu0 0.0
  %1910 = vmatmul.mubr.f32.gmra.mrb[0].mxu0 %v1719
  %v1911 = vpop.f32.mrb[0].mxu0
  %v1912 = vadd.f32 0.0, %v1911
  %v1913 = vpop.f32.mrb[0].mxu0
  %v1914 = vadd.f32 0.0, %v1913
  %1915 = vmatprep.mubr.f32.mxu0 0.0
  %1916 = vmatmul.mubr.f32.gmra.mrb[0].mxu0 %v1718
  %v1917 = vpop.f32.mrb[0].mxu0
  %v1918 = vadd.f32 0.0, %v1917
  %v1919 = vpop.f32.mrb[0].mxu0
  %v1920 = vadd.f32 0.0, %v1919
  %1921 = vmatprep.mubr.f32.mxu0 0.0
  %1922 = vmatmul.mubr.f32.gmra.mrb[0].mxu0 %v1717
  %v1923 = vpop.f32.mrb[0].mxu0
  %v1924 = vadd.f32 0.0, %v1923
  %v1925 = vpop.f32.mrb[0].mxu0
  %v1926 = vadd.f32 0.0, %v1925
  %1927 = vmatprep.mubr.f32.mxu0 0.0
  %1928 = vmatmul.mubr.f32.gmra.mrb[0].mxu0 %v1716
  %v1929 = vpop.f32.mrb[0].mxu0
  %v1930 = vadd.f32 0.0, %v1929
  %v1931 = vpop.f32.mrb[0].mxu0
  %v1932 = vadd.f32 0.0, %v1931
  %1933 = vmatprep.mubr.f32.mxu0 0.0
  %1934 = vmatmul.mubr.f32.gmra.mrb[0].mxu0 %v1715
  %v1935 = vpop.f32.mrb[0].mxu0
  %v1936 = vadd.f32 0.0, %v1935
  %v1937 = vpop.f32.mrb[0].mxu0
  %v1938 = vadd.f32 0.0, %v1937
  %1939 = vmatprep.mubr.f32.mxu0 0.0
  %1940 = vmatmul.mubr.f32.gmra.mrb[0].mxu0 %v1714
  %v1941 = vpop.f32.mrb[0].mxu0
  %v1942 = vadd.f32 0.0, %v1941
  %v1943 = vpop.f32.mrb[0].mxu0
  %v1944 = vadd.f32 0.0, %v1943
  %1945 = vmatprep.mubr.f32.mxu0 0.0
  %1946 = vmatmul.mubr.f32.gmra.mrb[0].mxu0 %v1713
  %v1947 = vpop.f32.mrb[0].mxu0
  %v1948 = vadd.f32 0.0, %v1947
  %v1949 = vpop.f32.mrb[0].mxu0
  %v1950 = vadd.f32 0.0, %v1949
  %1951 = vmatprep.mubr.f32.mxu0 0.0
  %1952 = vmatmul.mubr.f32.gmra.mrb[0].mxu0 %v1712
  %v1953 = vpop.f32.mrb[0].mxu0
  %v1954 = vadd.f32 0.0, %v1953
  %v1955 = vpop.f32.mrb[0].mxu0
  %v1956 = vadd.f32 0.0, %v1955
  %1957 = vmatprep.mubr.f32.mxu0 0.0
  %1958 = vmatmul.mubr.f32.gmra.mrb[0].mxu0 %v1711
  %v1959 = vpop.f32.mrb[0].mxu0
  %v1960 = vadd.f32 0.0, %v1959
  %v1961 = vpop.f32.mrb[0].mxu0
  %v1962 = vadd.f32 0.0, %v1961
  %1963 = vmatprep.mubr.f32.mxu0 0.0
  %1964 = vmatmul.mubr.f32.gmra.mrb[0].mxu0 %v1710
  %v1965 = vpop.f32.mrb[0].mxu0
  %v1966 = vadd.f32 0.0, %v1965
  %v1967 = vpop.f32.mrb[0].mxu0
  %v1968 = vadd.f32 0.0, %v1967
  %1969 = vmatprep.mubr.f32.mxu0 0.0
  %1970 = vmatmul.mubr.f32.gmra.mrb[0].mxu0 %v1709
  %v1971 = vpop.f32.mrb[0].mxu0
  %v1972 = vadd.f32 0.0, %v1971
  %v1973 = vpop.f32.mrb[0].mxu0
  %v1974 = vadd.f32 0.0, %v1973
  %1975 = vmatprep.mubr.f32.mxu0 0.0
  %1976 = vmatmul.mubr.f32.gmra.mrb[0].mxu0 %v1708
  %v1977 = vpop.f32.mrb[0].mxu0
  %v1978 = vadd.f32 0.0, %v1977
  %v1979 = vpop.f32.mrb[0].mxu0
  %v1980 = vadd.f32 0.0, %v1979
  %1981 = vmatprep.mubr.f32.mxu0 0.0
  %1982 = vmatmul.mubr.f32.gmra.mrb[0].mxu0 %v1707
  %v1983 = vpop.f32.mrb[0].mxu0
  %v1984 = vadd.f32 0.0, %v1983
  %v1985 = vpop.f32.mrb[0].mxu0
  %v1986 = vadd.f32 0.0, %v1985
  %1987 = vmatprep.mubr.f32.mxu0 0.0
  %1988 = vmatmul.mubr.f32.gmra.mrb[0].mxu0 %v1706
  %v1989 = vpop.f32.mrb[0].mxu0
  %v1990 = vadd.f32 0.0, %v1989
  %v1991 = vpop.f32.mrb[0].mxu0
  %v1992 = vadd.f32 0.0, %v1991
  %1993 = vmatprep.mubr.f32.mxu0 0.0
  %1994 = vmatmul.mubr.f32.gmra.mrb[0].mxu0 %v1705
  %v1995 = vpop.f32.mrb[0].mxu0
  %v1996 = vadd.f32 0.0, %v1995
  %v1997 = vpop.f32.mrb[0].mxu0
  %v1998 = vadd.f32 0.0, %v1997
  %1999 = vmatprep.mubr.f32.mxu0 0.0
  %2000 = vmatmul.mubr.f32.gmra.mrb[0].mxu0 %v1704
  %v2001 = vpop.f32.mrb[0].mxu0
  %v2002 = vadd.f32 0.0, %v2001
  %v2003 = vpop.f32.mrb[0].mxu0
  %v2004 = vadd.f32 0.0, %v2003
  %2005 = vmatprep.mubr.f32.mxu0 0.0
  %2006 = vmatmul.mubr.f32.gmra.mrb[0].mxu0 %v1703
  %v2007 = vpop.f32.mrb[0].mxu0
  %v2008 = vadd.f32 0.0, %v2007
  %v2009 = vpop.f32.mrb[0].mxu0
  %v2010 = vadd.f32 0.0, %v2009
  %2011 = vmatprep.mubr.f32.mxu0 0.0
  %2012 = vmatmul.mubr.f32.gmra.mrb[0].mxu0 %v1702
  %v2013 = vpop.f32.mrb[0].mxu0
  %v2014 = vadd.f32 0.0, %v2013
  %v2015 = vpop.f32.mrb[0].mxu0
  %v2016 = vadd.f32 0.0, %v2015
  %2017 = vmatprep.mubr.f32.mxu0 0.0
  %2018 = vmatmul.mubr.f32.gmra.mrb[0].mxu0 %v1733
  %v2019 = vpop.f32.mrb[0].mxu0
  %v2020 = vadd.f32 0.0, %v2019
  %v2021 = vpop.f32.mrb[0].mxu0
  %v2022 = vadd.f32 0.0, %v2021
  %2023 = vdwg.mxu0
  %v2024 = vadd.f32 %v1605, %v1834
  %v2025 = vadd.f32 %v1606, %v1836
  %v2026 = vadd.f32 %v1607, %v1840
  %v2027 = vadd.f32 %v1608, %v1842
  %v2028 = vadd.f32 %v1609, %v1846
  %v2029 = vadd.f32 %v1610, %v1848
  %v2030 = vadd.f32 %v1611, %v1852
  %v2031 = vadd.f32 %v1612, %v1854
  %v2032 = vadd.f32 %v1613, %v1858
  %v2033 = vadd.f32 %v1614, %v1860
  %v2034 = vadd.f32 %v1615, %v1864
  %v2035 = vadd.f32 %v1616, %v1866
  %v2036 = vadd.f32 %v1617, %v1870
  %v2037 = vadd.f32 %v1618, %v1872
  %v2038 = vadd.f32 %v1619, %v1876
  %v2039 = vadd.f32 %v1620, %v1878
  %v2040 = vadd.f32 %v1621, %v1882
  %v2041 = vadd.f32 %v1622, %v1884
  %v2042 = vadd.f32 %v1623, %v1888
  %v2043 = vadd.f32 %v1624, %v1890
  %v2044 = vadd.f32 %v1625, %v1894
  %v2045 = vadd.f32 %v1626, %v1896
  %v2046 = vadd.f32 %v1627, %v1900
  %v2047 = vadd.f32 %v1628, %v1902
  %v2048 = vadd.f32 %v1629, %v1906
  %v2049 = vadd.f32 %v1630, %v1908
  %v2050 = vadd.f32 %v1631, %v1912
  %v2051 = vadd.f32 %v1632, %v1914
  %v2052 = vadd.f32 %v1633, %v1918
  %v2053 = vadd.f32 %v1634, %v1920
  %v2054 = vadd.f32 %v1635, %v1924
  %v2055 = vadd.f32 %v1636, %v1926
  %v2056 = vadd.f32 %v1637, %v1930
  %v2057 = vadd.f32 %v1638, %v1932
  %v2058 = vadd.f32 %v1639, %v1936
  %v2059 = vadd.f32 %v1640, %v1938
  %v2060 = vadd.f32 %v1641, %v1942
  %v2061 = vadd.f32 %v1642, %v1944
  %v2062 = vadd.f32 %v1643, %v1948
  %v2063 = vadd.f32 %v1644, %v1950
  %v2064 = vadd.f32 %v1645, %v1954
  %v2065 = vadd.f32 %v1646, %v1956
  %v2066 = vadd.f32 %v1647, %v1960
  %v2067 = vadd.f32 %v1648, %v1962
  %v2068 = vadd.f32 %v1649, %v1966
  %v2069 = vadd.f32 %v1650, %v1968
  %v2070 = vadd.f32 %v1651, %v1972
  %v2071 = vadd.f32 %v1652, %v1974
  %v2072 = vadd.f32 %v1653, %v1978
  %v2073 = vadd.f32 %v1654, %v1980
  %v2074 = vadd.f32 %v1655, %v1984
  %v2075 = vadd.f32 %v1656, %v1986
  %v2076 = vadd.f32 %v1657, %v1990
  %v2077 = vadd.f32 %v1658, %v1992
  %v2078 = vadd.f32 %v1659, %v1996
  %v2079 = vadd.f32 %v1660, %v1998
  %v2080 = vadd.f32 %v1661, %v2002
  %v2081 = vadd.f32 %v1662, %v2004
  %v2082 = vadd.f32 %v1663, %v2008
  %v2083 = vadd.f32 %v1664, %v2010
  %v2084 = vadd.f32 %v1665, %v2014
  %v2085 = vadd.f32 %v1666, %v2016
  %v2086 = vadd.f32 %v1667, %v2020
  %v2087 = vadd.f32 %v1668, %v2022
  %v2088 = vrot.slane %v574, 2
  %v2089 = vrot.slane %v575, 2
  %v2090 = vrot.slane %v576, 2
  %v2091 = vrot.slane %v577, 2
  %v2092 = vrot.slane %v578, 2
  %v2093 = vrot.slane %v579, 2
  %v2094 = vrot.slane %v580, 2
  %v2095 = vrot.slane %v581, 2
  %v2096 = vrot.slane %v582, 2
  %v2097 = vrot.slane %v583, 2
  %v2098 = vrot.slane %v584, 2
  %v2099 = vrot.slane %v585, 2
  %v2100 = vrot.slane %v586, 2
  %v2101 = vrot.slane %v587, 2
  %v2102 = vrot.slane %v588, 2
  %v2103 = vrot.slane %v589, 2
  %v2104 = vrot.slane %v590, 2
  %v2105 = vrot.slane %v591, 2
  %v2106 = vrot.slane %v592, 2
  %v2107 = vrot.slane %v593, 2
  %v2108 = vrot.slane %v594, 2
  %v2109 = vrot.slane %v595, 2
  %v2110 = vrot.slane %v596, 2
  %v2111 = vrot.slane %v597, 2
  %v2112 = vrot.slane %v598, 2
  %v2113 = vrot.slane %v599, 2
  %v2114 = vrot.slane %v600, 2
  %v2115 = vrot.slane %v601, 2
  %v2116 = vrot.slane %v602, 2
  %v2117 = vrot.slane %v603, 2
  %v2118 = vrot.slane %v604, 2
  %v2119 = vrot.slane %v605, 2
  %vm2120 = vcmp.lt.s32.totalorder %v478, 6
  %v2121 = vsel %vm2120, %v2118, %v2119
  %v2122 = vsel %vm2120, %v2117, %v2118
  %v2123 = vsel %vm2120, %v2116, %v2117
  %v2124 = vsel %vm2120, %v2115, %v2116
  %v2125 = vsel %vm2120, %v2114, %v2115
  %v2126 = vsel %vm2120, %v2113, %v2114
  %v2127 = vsel %vm2120, %v2112, %v2113
  %v2128 = vsel %vm2120, %v2111, %v2112
  %v2129 = vsel %vm2120, %v2110, %v2111
  %v2130 = vsel %vm2120, %v2109, %v2110
  %v2131 = vsel %vm2120, %v2108, %v2109
  %v2132 = vsel %vm2120, %v2107, %v2108
  %v2133 = vsel %vm2120, %v2106, %v2107
  %v2134 = vsel %vm2120, %v2105, %v2106
  %v2135 = vsel %vm2120, %v2104, %v2105
  %v2136 = vsel %vm2120, %v2103, %v2104
  %v2137 = vsel %vm2120, %v2102, %v2103
  %v2138 = vsel %vm2120, %v2101, %v2102
  %v2139 = vsel %vm2120, %v2100, %v2101
  %v2140 = vsel %vm2120, %v2099, %v2100
  %v2141 = vsel %vm2120, %v2098, %v2099
  %v2142 = vsel %vm2120, %v2097, %v2098
  %v2143 = vsel %vm2120, %v2096, %v2097
  %v2144 = vsel %vm2120, %v2095, %v2096
  %v2145 = vsel %vm2120, %v2094, %v2095
  %v2146 = vsel %vm2120, %v2093, %v2094
  %v2147 = vsel %vm2120, %v2092, %v2093
  %v2148 = vsel %vm2120, %v2091, %v2092
  %v2149 = vsel %vm2120, %v2090, %v2091
  %v2150 = vsel %vm2120, %v2089, %v2090
  %v2151 = vsel %vm2120, %v2088, %v2089
  %v2152 = vsel %vm2120, %v2119, %v2088
  %s2153 = scalar_lea.vmem %s3, 1024
  %v2154 = vld [vmem:[%s2153] sm:$0xff]
  %v2155 = vld [vmem:[%s2153 + $0x8] sm:$0xff]
  %v2156 = vld [vmem:[%s2153 + $0x10] sm:$0xff]
  %v2157 = vld [vmem:[%s2153 + $0x18] sm:$0xff]
  %v2158 = vld [vmem:[%s2153 + $0x20] sm:$0xff]
  %v2159 = vld [vmem:[%s2153 + $0x28] sm:$0xff]
  %v2160 = vld [vmem:[%s2153 + $0x30] sm:$0xff]
  %v2161 = vld [vmem:[%s2153 + $0x38] sm:$0xff]
  %v2162 = vld [vmem:[%s2153 + $0x40] sm:$0xff]
  %v2163 = vld [vmem:[%s2153 + $0x48] sm:$0xff]
  %v2164 = vld [vmem:[%s2153 + $0x50] sm:$0xff]
  %v2165 = vld [vmem:[%s2153 + $0x58] sm:$0xff]
  %v2166 = vld [vmem:[%s2153 + $0x60] sm:$0xff]
  %v2167 = vld [vmem:[%s2153 + $0x68] sm:$0xff]
  %v2168 = vld [vmem:[%s2153 + $0x70] sm:$0xff]
  %v2169 = vld [vmem:[%s2153 + $0x78] sm:$0xff]
  %v2170 = vld [vmem:[%s2153 + $0x80] sm:$0xff]
  %v2171 = vld [vmem:[%s2153 + $0x88] sm:$0xff]
  %v2172 = vld [vmem:[%s2153 + $0x90] sm:$0xff]
  %v2173 = vld [vmem:[%s2153 + $0x98] sm:$0xff]
  %v2174 = vld [vmem:[%s2153 + $0xa0] sm:$0xff]
  %v2175 = vld [vmem:[%s2153 + $0xa8] sm:$0xff]
  %v2176 = vld [vmem:[%s2153 + $0xb0] sm:$0xff]
  %v2177 = vld [vmem:[%s2153 + $0xb8] sm:$0xff]
  %v2178 = vld [vmem:[%s2153 + $0xc0] sm:$0xff]
  %v2179 = vld [vmem:[%s2153 + $0xc8] sm:$0xff]
  %v2180 = vld [vmem:[%s2153 + $0xd0] sm:$0xff]
  %v2181 = vld [vmem:[%s2153 + $0xd8] sm:$0xff]
  %v2182 = vld [vmem:[%s2153 + $0xe0] sm:$0xff]
  %v2183 = vld [vmem:[%s2153 + $0xe8] sm:$0xff]
  %v2184 = vld [vmem:[%s2153 + $0xf0] sm:$0xff]
  %v2185 = vld [vmem:[%s2153 + $0xf8] sm:$0xff]
  %2186 = vmatprep.subr.mxu0 %v2155
  %2187 = vmatpush1.msra.mxu0 %v2154
  %2188 = vmatprep.subr.mxu0 %v2157
  %2189 = vmatpush1.msra.mxu0 %v2156
  %2190 = vmatprep.subr.mxu0 %v2159
  %2191 = vmatpush1.msra.mxu0 %v2158
  %2192 = vmatprep.subr.mxu0 %v2161
  %2193 = vmatpush1.msra.mxu0 %v2160
  %2194 = vmatprep.subr.mxu0 %v2163
  %2195 = vmatpush1.msra.mxu0 %v2162
  %2196 = vmatprep.subr.mxu0 %v2165
  %2197 = vmatpush1.msra.mxu0 %v2164
  %2198 = vmatprep.subr.mxu0 %v2167
  %2199 = vmatpush1.msra.mxu0 %v2166
  %2200 = vmatprep.subr.mxu0 %v2169
  %2201 = vmatpush1.msra.mxu0 %v2168
  %2202 = vmatprep.subr.mxu0 %v2171
  %2203 = vmatpush1.msra.mxu0 %v2170
  %2204 = vmatprep.subr.mxu0 %v2173
  %2205 = vmatpush1.msra.mxu0 %v2172
  %2206 = vmatprep.subr.mxu0 %v2175
  %2207 = vmatpush1.msra.mxu0 %v2174
  %2208 = vmatprep.subr.mxu0 %v2177
  %2209 = vmatpush1.msra.mxu0 %v2176
  %2210 = vmatprep.subr.mxu0 %v2179
  %2211 = vmatpush1.msra.mxu0 %v2178
  %2212 = vmatprep.subr.mxu0 %v2181
  %2213 = vmatpush1.msra.mxu0 %v2180
  %2214 = vmatprep.subr.mxu0 %v2183
  %2215 = vmatpush1.msra.mxu0 %v2182
  %2216 = vmatprep.subr.mxu0 %v2185
  %2217 = vmatpush1.msra.mxu0 %v2184
  %2218 = vmatprep.subr.mxu0 0.0
  %2219 = vmatpush1.msra.mxu0 0.0
  %2220 = vmatprep.subr.mxu0 0.0
  %2221 = vmatpush1.msra.mxu0 0.0
  %2222 = vmatprep.subr.mxu0 0.0
  %2223 = vmatpush1.msra.mxu0 0.0
  %2224 = vmatprep.subr.mxu0 0.0
  %2225 = vmatpush1.msra.mxu0 0.0
  %2226 = vmatprep.subr.mxu0 0.0
  %2227 = vmatpush1.msra.mxu0 0.0
  %2228 = vmatprep.subr.mxu0 0.0
  %2229 = vmatpush1.msra.mxu0 0.0
  %2230 = vmatprep.subr.mxu0 0.0
  %2231 = vmatpush1.msra.mxu0 0.0
  %2232 = vmatprep.subr.mxu0 0.0
  %2233 = vmatpush1.msra.mxu0 0.0
  %2234 = vmatprep.subr.mxu0 0.0
  %2235 = vmatpush1.msra.mxu0 0.0
  %2236 = vmatprep.subr.mxu0 0.0
  %2237 = vmatpush1.msra.mxu0 0.0
  %2238 = vmatprep.subr.mxu0 0.0
  %2239 = vmatpush1.msra.mxu0 0.0
  %2240 = vmatprep.subr.mxu0 0.0
  %2241 = vmatpush1.msra.mxu0 0.0
  %2242 = vmatprep.subr.mxu0 0.0
  %2243 = vmatpush1.msra.mxu0 0.0
  %2244 = vmatprep.subr.mxu0 0.0
  %2245 = vmatpush1.msra.mxu0 0.0
  %2246 = vmatprep.subr.mxu0 0.0
  %2247 = vmatpush1.msra.mxu0 0.0
  %2248 = vmatprep.subr.mxu0 0.0
  %2249 = vmatpush1.msra.mxu0 0.0
  %2250 = vmatprep.mubr.f32.mxu0 0.0
  %2251 = vmatmul.mubr.f32.gmra.mrb[0].mxu0 %v2151
  %v2252 = vpop.f32.mrb[0].mxu0
  %v2253 = vadd.f32 0.0, %v2252
  %v2254 = vpop.f32.mrb[0].mxu0
  %v2255 = vadd.f32 0.0, %v2254
  %2256 = vmatprep.mubr.f32.mxu0 0.0
  %2257 = vmatmul.mubr.f32.gmra.mrb[0].mxu0 %v2150
  %v2258 = vpop.f32.mrb[0].mxu0
  %v2259 = vadd.f32 0.0, %v2258
  %v2260 = vpop.f32.mrb[0].mxu0
  %v2261 = vadd.f32 0.0, %v2260
  %2262 = vmatprep.mubr.f32.mxu0 0.0
  %2263 = vmatmul.mubr.f32.gmra.mrb[0].mxu0 %v2149
  %v2264 = vpop.f32.mrb[0].mxu0
  %v2265 = vadd.f32 0.0, %v2264
  %v2266 = vpop.f32.mrb[0].mxu0
  %v2267 = vadd.f32 0.0, %v2266
  %2268 = vmatprep.mubr.f32.mxu0 0.0
  %2269 = vmatmul.mubr.f32.gmra.mrb[0].mxu0 %v2148
  %v2270 = vpop.f32.mrb[0].mxu0
  %v2271 = vadd.f32 0.0, %v2270
  %v2272 = vpop.f32.mrb[0].mxu0
  %v2273 = vadd.f32 0.0, %v2272
  %2274 = vmatprep.mubr.f32.mxu0 0.0
  %2275 = vmatmul.mubr.f32.gmra.mrb[0].mxu0 %v2147
  %v2276 = vpop.f32.mrb[0].mxu0
  %v2277 = vadd.f32 0.0, %v2276
  %v2278 = vpop.f32.mrb[0].mxu0
  %v2279 = vadd.f32 0.0, %v2278
  %2280 = vmatprep.mubr.f32.mxu0 0.0
  %2281 = vmatmul.mubr.f32.gmra.mrb[0].mxu0 %v2146
  %v2282 = vpop.f32.mrb[0].mxu0
  %v2283 = vadd.f32 0.0, %v2282
  %v2284 = vpop.f32.mrb[0].mxu0
  %v2285 = vadd.f32 0.0, %v2284
  %2286 = vmatprep.mubr.f32.mxu0 0.0
  %2287 = vmatmul.mubr.f32.gmra.mrb[0].mxu0 %v2145
  %v2288 = vpop.f32.mrb[0].mxu0
  %v2289 = vadd.f32 0.0, %v2288
  %v2290 = vpop.f32.mrb[0].mxu0
  %v2291 = vadd.f32 0.0, %v2290
  %2292 = vmatprep.mubr.f32.mxu0 0.0
  %2293 = vmatmul.mubr.f32.gmra.mrb[0].mxu0 %v2144
  %v2294 = vpop.f32.mrb[0].mxu0
  %v2295 = vadd.f32 0.0, %v2294
  %v2296 = vpop.f32.mrb[0].mxu0
  %v2297 = vadd.f32 0.0, %v2296
  %2298 = vmatprep.mubr.f32.mxu0 0.0
  %2299 = vmatmul.mubr.f32.gmra.mrb[0].mxu0 %v2143
  %v2300 = vpop.f32.mrb[0].mxu0
  %v2301 = vadd.f32 0.0, %v2300
  %v2302 = vpop.f32.mrb[0].mxu0
  %v2303 = vadd.f32 0.0, %v2302
  %2304 = vmatprep.mubr.f32.mxu0 0.0
  %2305 = vmatmul.mubr.f32.gmra.mrb[0].mxu0 %v2142
  %v2306 = vpop.f32.mrb[0].mxu0
  %v2307 = vadd.f32 0.0, %v2306
  %v2308 = vpop.f32.mrb[0].mxu0
  %v2309 = vadd.f32 0.0, %v2308
  %2310 = vmatprep.mubr.f32.mxu0 0.0
  %2311 = vmatmul.mubr.f32.gmra.mrb[0].mxu0 %v2141
  %v2312 = vpop.f32.mrb[0].mxu0
  %v2313 = vadd.f32 0.0, %v2312
  %v2314 = vpop.f32.mrb[0].mxu0
  %v2315 = vadd.f32 0.0, %v2314
  %2316 = vmatprep.mubr.f32.mxu0 0.0
  %2317 = vmatmul.mubr.f32.gmra.mrb[0].mxu0 %v2140
  %v2318 = vpop.f32.mrb[0].mxu0
  %v2319 = vadd.f32 0.0, %v2318
  %v2320 = vpop.f32.mrb[0].mxu0
  %v2321 = vadd.f32 0.0, %v2320
  %2322 = vmatprep.mubr.f32.mxu0 0.0
  %2323 = vmatmul.mubr.f32.gmra.mrb[0].mxu0 %v2139
  %v2324 = vpop.f32.mrb[0].mxu0
  %v2325 = vadd.f32 0.0, %v2324
  %v2326 = vpop.f32.mrb[0].mxu0
  %v2327 = vadd.f32 0.0, %v2326
  %2328 = vmatprep.mubr.f32.mxu0 0.0
  %2329 = vmatmul.mubr.f32.gmra.mrb[0].mxu0 %v2138
  %v2330 = vpop.f32.mrb[0].mxu0
  %v2331 = vadd.f32 0.0, %v2330
  %v2332 = vpop.f32.mrb[0].mxu0
  %v2333 = vadd.f32 0.0, %v2332
  %2334 = vmatprep.mubr.f32.mxu0 0.0
  %2335 = vmatmul.mubr.f32.gmra.mrb[0].mxu0 %v2137
  %v2336 = vpop.f32.mrb[0].mxu0
  %v2337 = vadd.f32 0.0, %v2336
  %v2338 = vpop.f32.mrb[0].mxu0
  %v2339 = vadd.f32 0.0, %v2338
  %2340 = vmatprep.mubr.f32.mxu0 0.0
  %2341 = vmatmul.mubr.f32.gmra.mrb[0].mxu0 %v2136
  %v2342 = vpop.f32.mrb[0].mxu0
  %v2343 = vadd.f32 0.0, %v2342
  %v2344 = vpop.f32.mrb[0].mxu0
  %v2345 = vadd.f32 0.0, %v2344
  %2346 = vmatprep.mubr.f32.mxu0 0.0
  %2347 = vmatmul.mubr.f32.gmra.mrb[0].mxu0 %v2135
  %v2348 = vpop.f32.mrb[0].mxu0
  %v2349 = vadd.f32 0.0, %v2348
  %v2350 = vpop.f32.mrb[0].mxu0
  %v2351 = vadd.f32 0.0, %v2350
  %2352 = vmatprep.mubr.f32.mxu0 0.0
  %2353 = vmatmul.mubr.f32.gmra.mrb[0].mxu0 %v2134
  %v2354 = vpop.f32.mrb[0].mxu0
  %v2355 = vadd.f32 0.0, %v2354
  %v2356 = vpop.f32.mrb[0].mxu0
  %v2357 = vadd.f32 0.0, %v2356
  %2358 = vmatprep.mubr.f32.mxu0 0.0
  %2359 = vmatmul.mubr.f32.gmra.mrb[0].mxu0 %v2133
  %v2360 = vpop.f32.mrb[0].mxu0
  %v2361 = vadd.f32 0.0, %v2360
  %v2362 = vpop.f32.mrb[0].mxu0
  %v2363 = vadd.f32 0.0, %v2362
  %2364 = vmatprep.mubr.f32.mxu0 0.0
  %2365 = vmatmul.mubr.f32.gmra.mrb[0].mxu0 %v2132
  %v2366 = vpop.f32.mrb[0].mxu0
  %v2367 = vadd.f32 0.0, %v2366
  %v2368 = vpop.f32.mrb[0].mxu0
  %v2369 = vadd.f32 0.0, %v2368
  %2370 = vmatprep.mubr.f32.mxu0 0.0
  %2371 = vmatmul.mubr.f32.gmra.mrb[0].mxu0 %v2131
  %v2372 = vpop.f32.mrb[0].mxu0
  %v2373 = vadd.f32 0.0, %v2372
  %v2374 = vpop.f32.mrb[0].mxu0
  %v2375 = vadd.f32 0.0, %v2374
  %2376 = vmatprep.mubr.f32.mxu0 0.0
  %2377 = vmatmul.mubr.f32.gmra.mrb[0].mxu0 %v2130
  %v2378 = vpop.f32.mrb[0].mxu0
  %v2379 = vadd.f32 0.0, %v2378
  %v2380 = vpop.f32.mrb[0].mxu0
  %v2381 = vadd.f32 0.0, %v2380
  %2382 = vmatprep.mubr.f32.mxu0 0.0
  %2383 = vmatmul.mubr.f32.gmra.mrb[0].mxu0 %v2129
  %v2384 = vpop.f32.mrb[0].mxu0
  %v2385 = vadd.f32 0.0, %v2384
  %v2386 = vpop.f32.mrb[0].mxu0
  %v2387 = vadd.f32 0.0, %v2386
  %2388 = vmatprep.mubr.f32.mxu0 0.0
  %2389 = vmatmul.mubr.f32.gmra.mrb[0].mxu0 %v2128
  %v2390 = vpop.f32.mrb[0].mxu0
  %v2391 = vadd.f32 0.0, %v2390
  %v2392 = vpop.f32.mrb[0].mxu0
  %v2393 = vadd.f32 0.0, %v2392
  %2394 = vmatprep.mubr.f32.mxu0 0.0
  %2395 = vmatmul.mubr.f32.gmra.mrb[0].mxu0 %v2127
  %v2396 = vpop.f32.mrb[0].mxu0
  %v2397 = vadd.f32 0.0, %v2396
  %v2398 = vpop.f32.mrb[0].mxu0
  %v2399 = vadd.f32 0.0, %v2398
  %2400 = vmatprep.mubr.f32.mxu0 0.0
  %2401 = vmatmul.mubr.f32.gmra.mrb[0].mxu0 %v2126
  %v2402 = vpop.f32.mrb[0].mxu0
  %v2403 = vadd.f32 0.0, %v2402
  %v2404 = vpop.f32.mrb[0].mxu0
  %v2405 = vadd.f32 0.0, %v2404
  %2406 = vmatprep.mubr.f32.mxu0 0.0
  %2407 = vmatmul.mubr.f32.gmra.mrb[0].mxu0 %v2125
  %v2408 = vpop.f32.mrb[0].mxu0
  %v2409 = vadd.f32 0.0, %v2408
  %v2410 = vpop.f32.mrb[0].mxu0
  %v2411 = vadd.f32 0.0, %v2410
  %2412 = vmatprep.mubr.f32.mxu0 0.0
  %2413 = vmatmul.mubr.f32.gmra.mrb[0].mxu0 %v2124
  %v2414 = vpop.f32.mrb[0].mxu0
  %v2415 = vadd.f32 0.0, %v2414
  %v2416 = vpop.f32.mrb[0].mxu0
  %v2417 = vadd.f32 0.0, %v2416
  %2418 = vmatprep.mubr.f32.mxu0 0.0
  %2419 = vmatmul.mubr.f32.gmra.mrb[0].mxu0 %v2123
  %v2420 = vpop.f32.mrb[0].mxu0
  %v2421 = vadd.f32 0.0, %v2420
  %v2422 = vpop.f32.mrb[0].mxu0
  %v2423 = vadd.f32 0.0, %v2422
  %2424 = vmatprep.mubr.f32.mxu0 0.0
  %2425 = vmatmul.mubr.f32.gmra.mrb[0].mxu0 %v2122
  %v2426 = vpop.f32.mrb[0].mxu0
  %v2427 = vadd.f32 0.0, %v2426
  %v2428 = vpop.f32.mrb[0].mxu0
  %v2429 = vadd.f32 0.0, %v2428
  %2430 = vmatprep.mubr.f32.mxu0 0.0
  %2431 = vmatmul.mubr.f32.gmra.mrb[0].mxu0 %v2121
  %v2432 = vpop.f32.mrb[0].mxu0
  %v2433 = vadd.f32 0.0, %v2432
  %v2434 = vpop.f32.mrb[0].mxu0
  %v2435 = vadd.f32 0.0, %v2434
  %2436 = vmatprep.mubr.f32.mxu0 0.0
  %2437 = vmatmul.mubr.f32.gmra.mrb[0].mxu0 %v2152
  %v2438 = vpop.f32.mrb[0].mxu0
  %v2439 = vadd.f32 0.0, %v2438
  %v2440 = vpop.f32.mrb[0].mxu0
  %v2441 = vadd.f32 0.0, %v2440
  %2442 = vdwg.mxu0
  %v2443 = vadd.f32 %v2024, %v2253
  %v2444 = vadd.f32 %v2025, %v2255
  %v2445 = vadd.f32 %v2026, %v2259
  %v2446 = vadd.f32 %v2027, %v2261
  %v2447 = vadd.f32 %v2028, %v2265
  %v2448 = vadd.f32 %v2029, %v2267
  %v2449 = vadd.f32 %v2030, %v2271
  %v2450 = vadd.f32 %v2031, %v2273
  %v2451 = vadd.f32 %v2032, %v2277
  %v2452 = vadd.f32 %v2033, %v2279
  %v2453 = vadd.f32 %v2034, %v2283
  %v2454 = vadd.f32 %v2035, %v2285
  %v2455 = vadd.f32 %v2036, %v2289
  %v2456 = vadd.f32 %v2037, %v2291
  %v2457 = vadd.f32 %v2038, %v2295
  %v2458 = vadd.f32 %v2039, %v2297
  %v2459 = vadd.f32 %v2040, %v2301
  %v2460 = vadd.f32 %v2041, %v2303
  %v2461 = vadd.f32 %v2042, %v2307
  %v2462 = vadd.f32 %v2043, %v2309
  %v2463 = vadd.f32 %v2044, %v2313
  %v2464 = vadd.f32 %v2045, %v2315
  %v2465 = vadd.f32 %v2046, %v2319
  %v2466 = vadd.f32 %v2047, %v2321
  %v2467 = vadd.f32 %v2048, %v2325
  %v2468 = vadd.f32 %v2049, %v2327
  %v2469 = vadd.f32 %v2050, %v2331
  %v2470 = vadd.f32 %v2051, %v2333
  %v2471 = vadd.f32 %v2052, %v2337
  %v2472 = vadd.f32 %v2053, %v2339
  %v2473 = vadd.f32 %v2054, %v2343
  %v2474 = vadd.f32 %v2055, %v2345
  %v2475 = vadd.f32 %v2056, %v2349
  %v2476 = vadd.f32 %v2057, %v2351
  %v2477 = vadd.f32 %v2058, %v2355
  %v2478 = vadd.f32 %v2059, %v2357
  %v2479 = vadd.f32 %v2060, %v2361
  %v2480 = vadd.f32 %v2061, %v2363
  %v2481 = vadd.f32 %v2062, %v2367
  %v2482 = vadd.f32 %v2063, %v2369
  %v2483 = vadd.f32 %v2064, %v2373
  %v2484 = vadd.f32 %v2065, %v2375
  %v2485 = vadd.f32 %v2066, %v2379
  %v2486 = vadd.f32 %v2067, %v2381
  %v2487 = vadd.f32 %v2068, %v2385
  %v2488 = vadd.f32 %v2069, %v2387
  %v2489 = vadd.f32 %v2070, %v2391
  %v2490 = vadd.f32 %v2071, %v2393
  %v2491 = vadd.f32 %v2072, %v2397
  %v2492 = vadd.f32 %v2073, %v2399
  %v2493 = vadd.f32 %v2074, %v2403
  %v2494 = vadd.f32 %v2075, %v2405
  %v2495 = vadd.f32 %v2076, %v2409
  %v2496 = vadd.f32 %v2077, %v2411
  %v2497 = vadd.f32 %v2078, %v2415
  %v2498 = vadd.f32 %v2079, %v2417
  %v2499 = vadd.f32 %v2080, %v2421
  %v2500 = vadd.f32 %v2081, %v2423
  %v2501 = vadd.f32 %v2082, %v2427
  %v2502 = vadd.f32 %v2083, %v2429
  %v2503 = vadd.f32 %v2084, %v2433
  %v2504 = vadd.f32 %v2085, %v2435
  %v2505 = vadd.f32 %v2086, %v2439
  %v2506 = vadd.f32 %v2087, %v2441
  %v2507 = vld [vmem:[%s4] sm:$0x3]
  %v2509 = vlaneseq
  %v2510 = vshrl.u32 %v2509, 7
  %v2511 = vsub.s32 0, %v2510
  %v2512 = vrot.slane %v2507, %v2511
  %v2513 = vlaneseq
  %v2514 = vshrl.u32 %v2513, 7
  %v2515 = vsub.s32 1, %v2514
  %v2516 = vrot.slane %v2507, %v2515
  %v2519 = vadd.f32 %v2443, %v2512
  %v2520 = vadd.f32 %v2444, %v2516
  %v2521 = vadd.f32 %v2445, %v2512
  %v2522 = vadd.f32 %v2446, %v2516
  %v2523 = vadd.f32 %v2447, %v2512
  %v2524 = vadd.f32 %v2448, %v2516
  %v2525 = vadd.f32 %v2449, %v2512
  %v2526 = vadd.f32 %v2450, %v2516
  %v2527 = vadd.f32 %v2451, %v2512
  %v2528 = vadd.f32 %v2452, %v2516
  %v2529 = vadd.f32 %v2453, %v2512
  %v2530 = vadd.f32 %v2454, %v2516
  %v2531 = vadd.f32 %v2455, %v2512
  %v2532 = vadd.f32 %v2456, %v2516
  %v2533 = vadd.f32 %v2457, %v2512
  %v2534 = vadd.f32 %v2458, %v2516
  %v2535 = vadd.f32 %v2459, %v2512
  %v2536 = vadd.f32 %v2460, %v2516
  %v2537 = vadd.f32 %v2461, %v2512
  %v2538 = vadd.f32 %v2462, %v2516
  %v2539 = vadd.f32 %v2463, %v2512
  %v2540 = vadd.f32 %v2464, %v2516
  %v2541 = vadd.f32 %v2465, %v2512
  %v2542 = vadd.f32 %v2466, %v2516
  %v2543 = vadd.f32 %v2467, %v2512
  %v2544 = vadd.f32 %v2468, %v2516
  %v2545 = vadd.f32 %v2469, %v2512
  %v2546 = vadd.f32 %v2470, %v2516
  %v2547 = vadd.f32 %v2471, %v2512
  %v2548 = vadd.f32 %v2472, %v2516
  %v2549 = vadd.f32 %v2473, %v2512
  %v2550 = vadd.f32 %v2474, %v2516
  %v2551 = vadd.f32 %v2475, %v2512
  %v2552 = vadd.f32 %v2476, %v2516
  %v2553 = vadd.f32 %v2477, %v2512
  %v2554 = vadd.f32 %v2478, %v2516
  %v2555 = vadd.f32 %v2479, %v2512
  %v2556 = vadd.f32 %v2480, %v2516
  %v2557 = vadd.f32 %v2481, %v2512
  %v2558 = vadd.f32 %v2482, %v2516
  %v2559 = vadd.f32 %v2483, %v2512
  %v2560 = vadd.f32 %v2484, %v2516
  %v2561 = vadd.f32 %v2485, %v2512
  %v2562 = vadd.f32 %v2486, %v2516
  %v2563 = vadd.f32 %v2487, %v2512
  %v2564 = vadd.f32 %v2488, %v2516
  %v2565 = vadd.f32 %v2489, %v2512
  %v2566 = vadd.f32 %v2490, %v2516
  %v2567 = vadd.f32 %v2491, %v2512
  %v2568 = vadd.f32 %v2492, %v2516
  %v2569 = vadd.f32 %v2493, %v2512
  %v2570 = vadd.f32 %v2494, %v2516
  %v2571 = vadd.f32 %v2495, %v2512
  %v2572 = vadd.f32 %v2496, %v2516
  %v2573 = vadd.f32 %v2497, %v2512
  %v2574 = vadd.f32 %v2498, %v2516
  %v2575 = vadd.f32 %v2499, %v2512
  %v2576 = vadd.f32 %v2500, %v2516
  %v2577 = vadd.f32 %v2501, %v2512
  %v2578 = vadd.f32 %v2502, %v2516
  %v2579 = vadd.f32 %v2503, %v2512
  %v2580 = vadd.f32 %v2504, %v2516
  %v2581 = vadd.f32 %v2505, %v2512
  %v2582 = vadd.f32 %v2506, %v2516
  %v2583 = vrot.slane %v2519, 1
  %v2584 = vrot.slane %v2520, 1
  %v2585 = vrot.slane %v2521, 1
  %v2586 = vrot.slane %v2522, 1
  %v2587 = vrot.slane %v2523, 1
  %v2588 = vrot.slane %v2524, 1
  %v2589 = vrot.slane %v2525, 1
  %v2590 = vrot.slane %v2526, 1
  %v2591 = vrot.slane %v2527, 1
  %v2592 = vrot.slane %v2528, 1
  %v2593 = vrot.slane %v2529, 1
  %v2594 = vrot.slane %v2530, 1
  %v2595 = vrot.slane %v2531, 1
  %v2596 = vrot.slane %v2532, 1
  %v2597 = vrot.slane %v2533, 1
  %v2598 = vrot.slane %v2534, 1
  %v2599 = vrot.slane %v2535, 1
  %v2600 = vrot.slane %v2536, 1
  %v2601 = vrot.slane %v2537, 1
  %v2602 = vrot.slane %v2538, 1
  %v2603 = vrot.slane %v2539, 1
  %v2604 = vrot.slane %v2540, 1
  %v2605 = vrot.slane %v2541, 1
  %v2606 = vrot.slane %v2542, 1
  %v2607 = vrot.slane %v2543, 1
  %v2608 = vrot.slane %v2544, 1
  %v2609 = vrot.slane %v2545, 1
  %v2610 = vrot.slane %v2546, 1
  %v2611 = vrot.slane %v2547, 1
  %v2612 = vrot.slane %v2548, 1
  %v2613 = vrot.slane %v2549, 1
  %v2614 = vrot.slane %v2550, 1
  %v2615 = vrot.slane %v2551, 1
  %v2616 = vrot.slane %v2552, 1
  %v2617 = vrot.slane %v2553, 1
  %v2618 = vrot.slane %v2554, 1
  %v2619 = vrot.slane %v2555, 1
  %v2620 = vrot.slane %v2556, 1
  %v2621 = vrot.slane %v2557, 1
  %v2622 = vrot.slane %v2558, 1
  %v2623 = vrot.slane %v2559, 1
  %v2624 = vrot.slane %v2560, 1
  %v2625 = vrot.slane %v2561, 1
  %v2626 = vrot.slane %v2562, 1
  %v2627 = vrot.slane %v2563, 1
  %v2628 = vrot.slane %v2564, 1
  %v2629 = vrot.slane %v2565, 1
  %v2630 = vrot.slane %v2566, 1
  %v2631 = vrot.slane %v2567, 1
  %v2632 = vrot.slane %v2568, 1
  %v2633 = vrot.slane %v2569, 1
  %v2634 = vrot.slane %v2570, 1
  %v2635 = vrot.slane %v2571, 1
  %v2636 = vrot.slane %v2572, 1
  %v2637 = vrot.slane %v2573, 1
  %v2638 = vrot.slane %v2574, 1
  %v2639 = vrot.slane %v2575, 1
  %v2640 = vrot.slane %v2576, 1
  %v2641 = vrot.slane %v2577, 1
  %v2642 = vrot.slane %v2578, 1
  %v2643 = vrot.slane %v2579, 1
  %v2644 = vrot.slane %v2580, 1
  %v2645 = vrot.slane %v2581, 1
  %v2646 = vrot.slane %v2582, 1
  %v2647 = vsel %vm1701, %v2643, %v2645
  %v2648 = vsel %vm1701, %v2644, %v2646
  %v2649 = vsel %vm1701, %v2639, %v2641
  %v2650 = vsel %vm1701, %v2640, %v2642
  %v2651 = vsel %vm1701, %v2635, %v2637
  %v2652 = vsel %vm1701, %v2636, %v2638
  %v2653 = vsel %vm1701, %v2631, %v2633
  %v2654 = vsel %vm1701, %v2632, %v2634
  %v2655 = vsel %vm1701, %v2627, %v2629
  %v2656 = vsel %vm1701, %v2628, %v2630
  %v2657 = vsel %vm1701, %v2623, %v2625
  %v2658 = vsel %vm1701, %v2624, %v2626
  %v2659 = vsel %vm1701, %v2619, %v2621
  %v2660 = vsel %vm1701, %v2620, %v2622
  %v2661 = vsel %vm1701, %v2615, %v2617
  %v2662 = vsel %vm1701, %v2616, %v2618
  %v2663 = vsel %vm1701, %v2611, %v2613
  %v2664 = vsel %vm1701, %v2612, %v2614
  %v2665 = vsel %vm1701, %v2607, %v2609
  %v2666 = vsel %vm1701, %v2608, %v2610
  %v2667 = vsel %vm1701, %v2603, %v2605
  %v2668 = vsel %vm1701, %v2604, %v2606
  %v2669 = vsel %vm1701, %v2599, %v2601
  %v2670 = vsel %vm1701, %v2600, %v2602
  %v2671 = vsel %vm1701, %v2595, %v2597
  %v2672 = vsel %vm1701, %v2596, %v2598
  %v2673 = vsel %vm1701, %v2591, %v2593
  %v2674 = vsel %vm1701, %v2592, %v2594
  %v2675 = vsel %vm1701, %v2587, %v2589
  %v2676 = vsel %vm1701, %v2588, %v2590
  %v2677 = vsel %vm1701, %v2583, %v2585
  %v2678 = vsel %vm1701, %v2584, %v2586
  %v2679 = vmax.f32 %v2519, %v2677
  %v2680 = vmax.f32 %v2520, %v2678
  %v2681 = vmax.f32 %v2523, %v2675
  %v2682 = vmax.f32 %v2524, %v2676
  %v2683 = vmax.f32 %v2527, %v2673
  %v2684 = vmax.f32 %v2528, %v2674
  %v2685 = vmax.f32 %v2531, %v2671
  %v2686 = vmax.f32 %v2532, %v2672
  %v2687 = vmax.f32 %v2535, %v2669
  %v2688 = vmax.f32 %v2536, %v2670
  %v2689 = vmax.f32 %v2539, %v2667
  %v2690 = vmax.f32 %v2540, %v2668
  %v2691 = vmax.f32 %v2543, %v2665
  %v2692 = vmax.f32 %v2544, %v2666
  %v2693 = vmax.f32 %v2547, %v2663
  %v2694 = vmax.f32 %v2548, %v2664
  %v2695 = vmax.f32 %v2551, %v2661
  %v2696 = vmax.f32 %v2552, %v2662
  %v2697 = vmax.f32 %v2555, %v2659
  %v2698 = vmax.f32 %v2556, %v2660
  %v2699 = vmax.f32 %v2559, %v2657
  %v2700 = vmax.f32 %v2560, %v2658
  %v2701 = vmax.f32 %v2563, %v2655
  %v2702 = vmax.f32 %v2564, %v2656
  %v2703 = vmax.f32 %v2567, %v2653
  %v2704 = vmax.f32 %v2568, %v2654
  %v2705 = vmax.f32 %v2571, %v2651
  %v2706 = vmax.f32 %v2572, %v2652
  %v2707 = vmax.f32 %v2575, %v2649
  %v2708 = vmax.f32 %v2576, %v2650
  %v2709 = vmax.f32 %v2579, %v2647
  %v2710 = vmax.f32 %v2580, %v2648
  %2711 = vrot.lane.b32.xlu0 %v2679, 108
  %v2712 = vpop.permute.xlu0 %2711
  %2713 = vrot.lane.b32.xlu0 %v2681, 108
  %v2714 = vpop.permute.xlu0 %2713
  %2715 = vrot.lane.b32.xlu0 %v2683, 108
  %v2716 = vpop.permute.xlu0 %2715
  %2717 = vrot.lane.b32.xlu0 %v2685, 108
  %v2718 = vpop.permute.xlu0 %2717
  %2719 = vrot.lane.b32.xlu0 %v2687, 108
  %v2720 = vpop.permute.xlu0 %2719
  %2721 = vrot.lane.b32.xlu0 %v2689, 108
  %v2722 = vpop.permute.xlu0 %2721
  %2723 = vrot.lane.b32.xlu0 %v2691, 108
  %v2724 = vpop.permute.xlu0 %2723
  %2725 = vrot.lane.b32.xlu0 %v2693, 108
  %v2726 = vpop.permute.xlu0 %2725
  %2727 = vrot.lane.b32.xlu0 %v2695, 108
  %v2728 = vpop.permute.xlu0 %2727
  %2729 = vrot.lane.b32.xlu0 %v2697, 108
  %v2730 = vpop.permute.xlu0 %2729
  %2731 = vrot.lane.b32.xlu0 %v2699, 108
  %v2732 = vpop.permute.xlu0 %2731
  %2733 = vrot.lane.b32.xlu0 %v2701, 108
  %v2734 = vpop.permute.xlu0 %2733
  %2735 = vrot.lane.b32.xlu0 %v2703, 108
  %v2736 = vpop.permute.xlu0 %2735
  %2737 = vrot.lane.b32.xlu0 %v2705, 108
  %v2738 = vpop.permute.xlu0 %2737
  %2739 = vrot.lane.b32.xlu0 %v2707, 108
  %v2740 = vpop.permute.xlu0 %2739
  %2741 = vrot.lane.b32.xlu0 %v2709, 108
  %v2742 = vpop.permute.xlu0 %2741
  %2743 = vrot.lane.b32.xlu0 %v2680, 108
  %v2744 = vpop.permute.xlu0 %2743
  %2745 = vrot.lane.b32.xlu0 %v2682, 108
  %v2746 = vpop.permute.xlu0 %2745
  %2747 = vrot.lane.b32.xlu0 %v2684, 108
  %v2748 = vpop.permute.xlu0 %2747
  %2749 = vrot.lane.b32.xlu0 %v2686, 108
  %v2750 = vpop.permute.xlu0 %2749
  %2751 = vrot.lane.b32.xlu0 %v2688, 108
  %v2752 = vpop.permute.xlu0 %2751
  %2753 = vrot.lane.b32.xlu0 %v2690, 108
  %v2754 = vpop.permute.xlu0 %2753
  %2755 = vrot.lane.b32.xlu0 %v2692, 108
  %v2756 = vpop.permute.xlu0 %2755
  %2757 = vrot.lane.b32.xlu0 %v2694, 108
  %v2758 = vpop.permute.xlu0 %2757
  %2759 = vrot.lane.b32.xlu0 %v2696, 108
  %v2760 = vpop.permute.xlu0 %2759
  %2761 = vrot.lane.b32.xlu0 %v2698, 108
  %v2762 = vpop.permute.xlu0 %2761
  %2763 = vrot.lane.b32.xlu0 %v2700, 108
  %v2764 = vpop.permute.xlu0 %2763
  %2765 = vrot.lane.b32.xlu0 %v2702, 108
  %v2766 = vpop.permute.xlu0 %2765
  %2767 = vrot.lane.b32.xlu0 %v2704, 108
  %v2768 = vpop.permute.xlu0 %2767
  %2769 = vrot.lane.b32.xlu0 %v2706, 108
  %v2770 = vpop.permute.xlu0 %2769
  %2771 = vrot.lane.b32.xlu0 %v2708, 108
  %v2772 = vpop.permute.xlu0 %2771
  %2773 = vrot.lane.b32.xlu0 %v2710, 108
  %v2774 = vpop.permute.xlu0 %2773
  %v2775 = vlaneseq
  %v2776 = vand.u32 %v2775, 127
  %vm2777 = vcmp.lt.s32.totalorder %v2776, 108
  %v2778 = vsel %vm2777, %v2712, %v2744
  %v2779 = vsel %vm2777, %v2714, %v2746
  %v2780 = vsel %vm2777, %v2716, %v2748
  %v2781 = vsel %vm2777, %v2718, %v2750
  %v2782 = vsel %vm2777, %v2720, %v2752
  %v2783 = vsel %vm2777, %v2722, %v2754
  %v2784 = vsel %vm2777, %v2724, %v2756
  %v2785 = vsel %vm2777, %v2726, %v2758
  %v2786 = vsel %vm2777, %v2728, %v2760
  %v2787 = vsel %vm2777, %v2730, %v2762
  %v2788 = vsel %vm2777, %v2732, %v2764
  %v2789 = vsel %vm2777, %v2734, %v2766
  %v2790 = vsel %vm2777, %v2736, %v2768
  %v2791 = vsel %vm2777, %v2738, %v2770
  %v2792 = vsel %vm2777, %v2740, %v2772
  %v2793 = vsel %vm2777, %v2742, %v2774
  %v2794 = vsel %vm2777, %v2744, %v2712
  %v2795 = vsel %vm2777, %v2746, %v2714
  %v2796 = vsel %vm2777, %v2748, %v2716
  %v2797 = vsel %vm2777, %v2750, %v2718
  %v2798 = vsel %vm2777, %v2752, %v2720
  %v2799 = vsel %vm2777, %v2754, %v2722
  %v2800 = vsel %vm2777, %v2756, %v2724
  %v2801 = vsel %vm2777, %v2758, %v2726
  %v2802 = vsel %vm2777, %v2760, %v2728
  %v2803 = vsel %vm2777, %v2762, %v2730
  %v2804 = vsel %vm2777, %v2764, %v2732
  %v2805 = vsel %vm2777, %v2766, %v2734
  %v2806 = vsel %vm2777, %v2768, %v2736
  %v2807 = vsel %vm2777, %v2770, %v2738
  %v2808 = vsel %vm2777, %v2772, %v2740
  %v2809 = vsel %vm2777, %v2774, %v2742
  %v2810 = vmax.f32 %v2679, %v2778
  %v2811 = vmax.f32 %v2680, %v2794
  %v2812 = vmax.f32 %v2681, %v2779
  %v2813 = vmax.f32 %v2682, %v2795
  %v2814 = vmax.f32 %v2683, %v2780
  %v2815 = vmax.f32 %v2684, %v2796
  %v2816 = vmax.f32 %v2685, %v2781
  %v2817 = vmax.f32 %v2686, %v2797
  %v2818 = vmax.f32 %v2687, %v2782
  %v2819 = vmax.f32 %v2688, %v2798
  %v2820 = vmax.f32 %v2689, %v2783
  %v2821 = vmax.f32 %v2690, %v2799
  %v2822 = vmax.f32 %v2691, %v2784
  %v2823 = vmax.f32 %v2692, %v2800
  %v2824 = vmax.f32 %v2693, %v2785
  %v2825 = vmax.f32 %v2694, %v2801
  %v2826 = vmax.f32 %v2695, %v2786
  %v2827 = vmax.f32 %v2696, %v2802
  %v2828 = vmax.f32 %v2697, %v2787
  %v2829 = vmax.f32 %v2698, %v2803
  %v2830 = vmax.f32 %v2699, %v2788
  %v2831 = vmax.f32 %v2700, %v2804
  %v2832 = vmax.f32 %v2701, %v2789
  %v2833 = vmax.f32 %v2702, %v2805
  %v2834 = vmax.f32 %v2703, %v2790
  %v2835 = vmax.f32 %v2704, %v2806
  %v2836 = vmax.f32 %v2705, %v2791
  %v2837 = vmax.f32 %v2706, %v2807
  %v2838 = vmax.f32 %v2707, %v2792
  %v2839 = vmax.f32 %v2708, %v2808
  %v2840 = vmax.f32 %v2709, %v2793
  %v2841 = vmax.f32 %v2710, %v2809
  %v2842 = vmax.f32 %v2810, 0.0
  %v2843 = vmax.f32 %v2811, 0.0
  %v2844 = vmax.f32 %v2812, 0.0
  %v2845 = vmax.f32 %v2813, 0.0
  %v2846 = vmax.f32 %v2814, 0.0
  %v2847 = vmax.f32 %v2815, 0.0
  %v2848 = vmax.f32 %v2816, 0.0
  %v2849 = vmax.f32 %v2817, 0.0
  %v2850 = vmax.f32 %v2818, 0.0
  %v2851 = vmax.f32 %v2819, 0.0
  %v2852 = vmax.f32 %v2820, 0.0
  %v2853 = vmax.f32 %v2821, 0.0
  %v2854 = vmax.f32 %v2822, 0.0
  %v2855 = vmax.f32 %v2823, 0.0
  %v2856 = vmax.f32 %v2824, 0.0
  %v2857 = vmax.f32 %v2825, 0.0
  %v2858 = vmax.f32 %v2826, 0.0
  %v2859 = vmax.f32 %v2827, 0.0
  %v2860 = vmax.f32 %v2828, 0.0
  %v2861 = vmax.f32 %v2829, 0.0
  %v2862 = vmax.f32 %v2830, 0.0
  %v2863 = vmax.f32 %v2831, 0.0
  %v2864 = vmax.f32 %v2832, 0.0
  %v2865 = vmax.f32 %v2833, 0.0
  %v2866 = vmax.f32 %v2834, 0.0
  %v2867 = vmax.f32 %v2835, 0.0
  %v2868 = vmax.f32 %v2836, 0.0
  %v2869 = vmax.f32 %v2837, 0.0
  %v2870 = vmax.f32 %v2838, 0.0
  %v2871 = vmax.f32 %v2839, 0.0
  %v2872 = vmax.f32 %v2840, 0.0
  %v2873 = vmax.f32 %v2841, 0.0
  %v2906 = vrot.slane %v2844, 7
  %vm2907 = vcmask 1041409
  %v2908 = vsel %vm2907, %v2906, %v2842
  %v2909 = vrot.slane %v2846, 6
  %vm2910 = vcmask 1042434
  %v2911 = vsel %vm2910, %v2909, %v2908
  %v2912 = vrot.slane %v2848, 5
  %vm2913 = vcmask 1043459
  %v2914 = vsel %vm2913, %v2912, %v2911
  %v2915 = vrot.slane %v2850, 4
  %vm2916 = vcmask 1044484
  %v2917 = vsel %vm2916, %v2915, %v2914
  %v2918 = vrot.slane %v2852, 3
  %vm2919 = vcmask 1045509
  %v2920 = vsel %vm2919, %v2918, %v2917
  %v2921 = vrot.slane %v2854, 2
  %vm2922 = vcmask 1046534
  %v2923 = vsel %vm2922, %v2921, %v2920
  %v2924 = vrot.slane %v2856, 1
  %vm2925 = vcmask 1047559
  %v2926 = vsel %vm2925, %v2924, %v2923
  %v2927 = vrot.slane %v2845, 7
  %v2928 = vsel %vm2907, %v2927, %v2843
  %v2929 = vrot.slane %v2847, 6
  %v2930 = vsel %vm2910, %v2929, %v2928
  %v2931 = vrot.slane %v2849, 5
  %v2932 = vsel %vm2913, %v2931, %v2930
  %v2933 = vrot.slane %v2851, 4
  %v2934 = vsel %vm2916, %v2933, %v2932
  %v2935 = vrot.slane %v2853, 3
  %v2936 = vsel %vm2919, %v2935, %v2934
  %v2937 = vrot.slane %v2855, 2
  %v2938 = vsel %vm2922, %v2937, %v2936
  %v2939 = vrot.slane %v2857, 1
  %v2940 = vsel %vm2925, %v2939, %v2938
  %v2941 = vrot.slane %v2860, 7
  %v2942 = vsel %vm2907, %v2941, %v2858
  %v2943 = vrot.slane %v2862, 6
  %v2944 = vsel %vm2910, %v2943, %v2942
  %v2945 = vrot.slane %v2864, 5
  %v2946 = vsel %vm2913, %v2945, %v2944
  %v2947 = vrot.slane %v2866, 4
  %v2948 = vsel %vm2916, %v2947, %v2946
  %v2949 = vrot.slane %v2868, 3
  %v2950 = vsel %vm2919, %v2949, %v2948
  %v2951 = vrot.slane %v2870, 2
  %v2952 = vsel %vm2922, %v2951, %v2950
  %v2953 = vrot.slane %v2872, 1
  %v2954 = vsel %vm2925, %v2953, %v2952
  %v2955 = vrot.slane %v2861, 7
  %v2956 = vsel %vm2907, %v2955, %v2859
  %v2957 = vrot.slane %v2863, 6
  %v2958 = vsel %vm2910, %v2957, %v2956
  %v2959 = vrot.slane %v2865, 5
  %v2960 = vsel %vm2913, %v2959, %v2958
  %v2961 = vrot.slane %v2867, 4
  %v2962 = vsel %vm2916, %v2961, %v2960
  %v2963 = vrot.slane %v2869, 3
  %v2964 = vsel %vm2919, %v2963, %v2962
  %v2965 = vrot.slane %v2871, 2
  %v2966 = vsel %vm2922, %v2965, %v2964
  %v2967 = vrot.slane %v2873, 1
  %v2968 = vsel %vm2925, %v2967, %v2966
  %v2973 = vrot.slane %v2842, 2
  %v2974 = vrot.slane %v2844, 1
  %v2975 = vsel %vm2907, %v2974, %v2973
  %v2976 = vsel %vm2910, %v2846, %v2975
  %v2977 = vrot.slane %v2848, 7
  %v2978 = vsel %vm2913, %v2977, %v2976
  %v2979 = vrot.slane %v2850, 6
  %v2980 = vsel %vm2916, %v2979, %v2978
  %v2981 = vrot.slane %v2852, 5
  %v2982 = vsel %vm2919, %v2981, %v2980
  %v2983 = vrot.slane %v2854, 4
  %v2984 = vsel %vm2922, %v2983, %v2982
  %v2985 = vrot.slane %v2856, 3
  %v2986 = vsel %vm2925, %v2985, %v2984
  %v2987 = vrot.slane %v2843, 2
  %v2988 = vrot.slane %v2845, 1
  %v2989 = vsel %vm2907, %v2988, %v2987
  %v2990 = vsel %vm2910, %v2847, %v2989
  %v2991 = vrot.slane %v2849, 7
  %v2992 = vsel %vm2913, %v2991, %v2990
  %v2993 = vrot.slane %v2851, 6
  %v2994 = vsel %vm2916, %v2993, %v2992
  %v2995 = vrot.slane %v2853, 5
  %v2996 = vsel %vm2919, %v2995, %v2994
  %v2997 = vrot.slane %v2855, 4
  %v2998 = vsel %vm2922, %v2997, %v2996
  %v2999 = vrot.slane %v2857, 3
  %v3000 = vsel %vm2925, %v2999, %v2998
  %v3001 = vrot.slane %v2858, 2
  %v3002 = vrot.slane %v2860, 1
  %v3003 = vsel %vm2907, %v3002, %v3001
  %v3004 = vsel %vm2910, %v2862, %v3003
  %v3005 = vrot.slane %v2864, 7
  %v3006 = vsel %vm2913, %v3005, %v3004
  %v3007 = vrot.slane %v2866, 6
  %v3008 = vsel %vm2916, %v3007, %v3006
  %v3009 = vrot.slane %v2868, 5
  %v3010 = vsel %vm2919, %v3009, %v3008
  %v3011 = vrot.slane %v2870, 4
  %v3012 = vsel %vm2922, %v3011, %v3010
  %v3013 = vrot.slane %v2872, 3
  %v3014 = vsel %vm2925, %v3013, %v3012
  %v3015 = vrot.slane %v2859, 2
  %v3016 = vrot.slane %v2861, 1
  %v3017 = vsel %vm2907, %v3016, %v3015
  %v3018 = vsel %vm2910, %v2863, %v3017
  %v3019 = vrot.slane %v2865, 7
  %v3020 = vsel %vm2913, %v3019, %v3018
  %v3021 = vrot.slane %v2867, 6
  %v3022 = vsel %vm2916, %v3021, %v3020
  %v3023 = vrot.slane %v2869, 5
  %v3024 = vsel %vm2919, %v3023, %v3022
  %v3025 = vrot.slane %v2871, 4
  %v3026 = vsel %vm2922, %v3025, %v3024
  %v3027 = vrot.slane %v2873, 3
  %v3028 = vsel %vm2925, %v3027, %v3026
  %v3033 = vrot.slane %v2842, 4
  %v3034 = vrot.slane %v2844, 3
  %v3035 = vsel %vm2907, %v3034, %v3033
  %v3036 = vrot.slane %v2846, 2
  %v3037 = vsel %vm2910, %v3036, %v3035
  %v3038 = vrot.slane %v2848, 1
  %v3039 = vsel %vm2913, %v3038, %v3037
  %v3040 = vsel %vm2916, %v2850, %v3039
  %v3041 = vrot.slane %v2852, 7
  %v3042 = vsel %vm2919, %v3041, %v3040
  %v3043 = vrot.slane %v2854, 6
  %v3044 = vsel %vm2922, %v3043, %v3042
  %v3045 = vrot.slane %v2856, 5
  %v3046 = vsel %vm2925, %v3045, %v3044
  %v3047 = vrot.slane %v2843, 4
  %v3048 = vrot.slane %v2845, 3
  %v3049 = vsel %vm2907, %v3048, %v3047
  %v3050 = vrot.slane %v2847, 2
  %v3051 = vsel %vm2910, %v3050, %v3049
  %v3052 = vrot.slane %v2849, 1
  %v3053 = vsel %vm2913, %v3052, %v3051
  %v3054 = vsel %vm2916, %v2851, %v3053
  %v3055 = vrot.slane %v2853, 7
  %v3056 = vsel %vm2919, %v3055, %v3054
  %v3057 = vrot.slane %v2855, 6
  %v3058 = vsel %vm2922, %v3057, %v3056
  %v3059 = vrot.slane %v2857, 5
  %v3060 = vsel %vm2925, %v3059, %v3058
  %v3061 = vrot.slane %v2858, 4
  %v3062 = vrot.slane %v2860, 3
  %v3063 = vsel %vm2907, %v3062, %v3061
  %v3064 = vrot.slane %v2862, 2
  %v3065 = vsel %vm2910, %v3064, %v3063
  %v3066 = vrot.slane %v2864, 1
  %v3067 = vsel %vm2913, %v3066, %v3065
  %v3068 = vsel %vm2916, %v2866, %v3067
  %v3069 = vrot.slane %v2868, 7
  %v3070 = vsel %vm2919, %v3069, %v3068
  %v3071 = vrot.slane %v2870, 6
  %v3072 = vsel %vm2922, %v3071, %v3070
  %v3073 = vrot.slane %v2872, 5
  %v3074 = vsel %vm2925, %v3073, %v3072
  %v3075 = vrot.slane %v2859, 4
  %v3076 = vrot.slane %v2861, 3
  %v3077 = vsel %vm2907, %v3076, %v3075
  %v3078 = vrot.slane %v2863, 2
  %v3079 = vsel %vm2910, %v3078, %v3077
  %v3080 = vrot.slane %v2865, 1
  %v3081 = vsel %vm2913, %v3080, %v3079
  %v3082 = vsel %vm2916, %v2867, %v3081
  %v3083 = vrot.slane %v2869, 7
  %v3084 = vsel %vm2919, %v3083, %v3082
  %v3085 = vrot.slane %v2871, 6
  %v3086 = vsel %vm2922, %v3085, %v3084
  %v3087 = vrot.slane %v2873, 5
  %v3088 = vsel %vm2925, %v3087, %v3086
  %v3093 = vrot.slane %v2842, 6
  %v3094 = vrot.slane %v2844, 5
  %v3095 = vsel %vm2907, %v3094, %v3093
  %v3096 = vrot.slane %v2846, 4
  %v3097 = vsel %vm2910, %v3096, %v3095
  %v3098 = vrot.slane %v2848, 3
  %v3099 = vsel %vm2913, %v3098, %v3097
  %v3100 = vrot.slane %v2850, 2
  %v3101 = vsel %vm2916, %v3100, %v3099
  %v3102 = vrot.slane %v2852, 1
  %v3103 = vsel %vm2919, %v3102, %v3101
  %v3104 = vsel %vm2922, %v2854, %v3103
  %v3105 = vrot.slane %v2856, 7
  %v3106 = vsel %vm2925, %v3105, %v3104
  %v3107 = vrot.slane %v2843, 6
  %v3108 = vrot.slane %v2845, 5
  %v3109 = vsel %vm2907, %v3108, %v3107
  %v3110 = vrot.slane %v2847, 4
  %v3111 = vsel %vm2910, %v3110, %v3109
  %v3112 = vrot.slane %v2849, 3
  %v3113 = vsel %vm2913, %v3112, %v3111
  %v3114 = vrot.slane %v2851, 2
  %v3115 = vsel %vm2916, %v3114, %v3113
  %v3116 = vrot.slane %v2853, 1
  %v3117 = vsel %vm2919, %v3116, %v3115
  %v3118 = vsel %vm2922, %v2855, %v3117
  %v3119 = vrot.slane %v2857, 7
  %v3120 = vsel %vm2925, %v3119, %v3118
  %v3121 = vrot.slane %v2858, 6
  %v3122 = vrot.slane %v2860, 5
  %v3123 = vsel %vm2907, %v3122, %v3121
  %v3124 = vrot.slane %v2862, 4
  %v3125 = vsel %vm2910, %v3124, %v3123
  %v3126 = vrot.slane %v2864, 3
  %v3127 = vsel %vm2913, %v3126, %v3125
  %v3128 = vrot.slane %v2866, 2
  %v3129 = vsel %vm2916, %v3128, %v3127
  %v3130 = vrot.slane %v2868, 1
  %v3131 = vsel %vm2919, %v3130, %v3129
  %v3132 = vsel %vm2922, %v2870, %v3131
  %v3133 = vrot.slane %v2872, 7
  %v3134 = vsel %vm2925, %v3133, %v3132
  %v3135 = vrot.slane %v2859, 6
  %v3136 = vrot.slane %v2861, 5
  %v3137 = vsel %vm2907, %v3136, %v3135
  %v3138 = vrot.slane %v2863, 4
  %v3139 = vsel %vm2910, %v3138, %v3137
  %v3140 = vrot.slane %v2865, 3
  %v3141 = vsel %vm2913, %v3140, %v3139
  %v3142 = vrot.slane %v2867, 2
  %v3143 = vsel %vm2916, %v3142, %v3141
  %v3144 = vrot.slane %v2869, 1
  %v3145 = vsel %vm2919, %v3144, %v3143
  %v3146 = vsel %vm2922, %v2871, %v3145
  %v3147 = vrot.slane %v2873, 7
  %v3148 = vsel %vm2925, %v3147, %v3146
  %v3153 = vld [vmem:[%s5] sm:$0xff]
  %v3154 = vld [vmem:[%s5 + $0x8] sm:$0xff]
  %v3155 = vld [vmem:[%s5 + $0x10] sm:$0xff]
  %v3156 = vld [vmem:[%s5 + $0x18] sm:$0xff]
  %v3157 = vld [vmem:[%s5 + $0x20] sm:$0xff]
  %v3158 = vld [vmem:[%s5 + $0x28] sm:$0xff]
  %v3159 = vld [vmem:[%s5 + $0x30] sm:$0xff]
  %v3160 = vld [vmem:[%s5 + $0x38] sm:$0xff]
  %v3161 = vld [vmem:[%s5 + $0x40] sm:$0xff]
  %v3162 = vld [vmem:[%s5 + $0x48] sm:$0xff]
  %v3163 = vld [vmem:[%s5 + $0x50] sm:$0xff]
  %v3164 = vld [vmem:[%s5 + $0x58] sm:$0xff]
  %v3165 = vld [vmem:[%s5 + $0x60] sm:$0xff]
  %v3166 = vld [vmem:[%s5 + $0x68] sm:$0xff]
  %v3167 = vld [vmem:[%s5 + $0x70] sm:$0xff]
  %v3168 = vld [vmem:[%s5 + $0x78] sm:$0xff]
  %v3169 = vld [vmem:[%s5 + $0x80] sm:$0xff]
  %v3170 = vld [vmem:[%s5 + $0x88] sm:$0xff]
  %v3171 = vld [vmem:[%s5 + $0x90] sm:$0xff]
  %v3172 = vld [vmem:[%s5 + $0x98] sm:$0xff]
  %v3173 = vld [vmem:[%s5 + $0xa0] sm:$0xff]
  %v3174 = vld [vmem:[%s5 + $0xa8] sm:$0xff]
  %v3175 = vld [vmem:[%s5 + $0xb0] sm:$0xff]
  %v3176 = vld [vmem:[%s5 + $0xb8] sm:$0xff]
  %v3177 = vld [vmem:[%s5 + $0xc0] sm:$0xff]
  %v3178 = vld [vmem:[%s5 + $0xc8] sm:$0xff]
  %v3179 = vld [vmem:[%s5 + $0xd0] sm:$0xff]
  %v3180 = vld [vmem:[%s5 + $0xd8] sm:$0xff]
  %v3181 = vld [vmem:[%s5 + $0xe0] sm:$0xff]
  %v3182 = vld [vmem:[%s5 + $0xe8] sm:$0xff]
  %v3183 = vld [vmem:[%s5 + $0xf0] sm:$0xff]
  %v3184 = vld [vmem:[%s5 + $0xf8] sm:$0xff]
  %v3185 = vld [vmem:[%s5 + $0x100] sm:$0xff]
  %v3186 = vld [vmem:[%s5 + $0x108] sm:$0xff]
  %v3187 = vld [vmem:[%s5 + $0x110] sm:$0xff]
  %v3188 = vld [vmem:[%s5 + $0x118] sm:$0xff]
  %v3189 = vld [vmem:[%s5 + $0x120] sm:$0xff]
  %v3190 = vld [vmem:[%s5 + $0x128] sm:$0xff]
  %v3191 = vld [vmem:[%s5 + $0x130] sm:$0xff]
  %v3192 = vld [vmem:[%s5 + $0x138] sm:$0xff]
  %v3193 = vld [vmem:[%s5 + $0x140] sm:$0xff]
  %v3194 = vld [vmem:[%s5 + $0x148] sm:$0xff]
  %v3195 = vld [vmem:[%s5 + $0x150] sm:$0xff]
  %v3196 = vld [vmem:[%s5 + $0x158] sm:$0xff]
  %v3197 = vld [vmem:[%s5 + $0x160] sm:$0xff]
  %v3198 = vld [vmem:[%s5 + $0x168] sm:$0xff]
  %v3199 = vld [vmem:[%s5 + $0x170] sm:$0xff]
  %v3200 = vld [vmem:[%s5 + $0x178] sm:$0xff]
  %v3201 = vld [vmem:[%s5 + $0x180] sm:$0xff]
  %v3202 = vld [vmem:[%s5 + $0x188] sm:$0xff]
  %v3203 = vld [vmem:[%s5 + $0x190] sm:$0xff]
  %v3204 = vld [vmem:[%s5 + $0x198] sm:$0xff]
  %v3205 = vld [vmem:[%s5 + $0x1a0] sm:$0xff]
  %v3206 = vld [vmem:[%s5 + $0x1a8] sm:$0xff]
  %v3207 = vld [vmem:[%s5 + $0x1b0] sm:$0xff]
  %v3208 = vld [vmem:[%s5 + $0x1b8] sm:$0xff]
  %v3209 = vld [vmem:[%s5 + $0x1c0] sm:$0xff]
  %v3210 = vld [vmem:[%s5 + $0x1c8] sm:$0xff]
  %v3211 = vld [vmem:[%s5 + $0x1d0] sm:$0xff]
  %v3212 = vld [vmem:[%s5 + $0x1d8] sm:$0xff]
  %v3213 = vld [vmem:[%s5 + $0x1e0] sm:$0xff]
  %v3214 = vld [vmem:[%s5 + $0x1e8] sm:$0xff]
  %v3215 = vld [vmem:[%s5 + $0x1f0] sm:$0xff]
  %v3216 = vld [vmem:[%s5 + $0x1f8] sm:$0xff]
  %v3217 = vld [vmem:[%s5 + $0x200] sm:$0xff]
  %v3218 = vld [vmem:[%s5 + $0x208] sm:$0xff]
  %v3219 = vld [vmem:[%s5 + $0x210] sm:$0xff]
  %v3220 = vld [vmem:[%s5 + $0x218] sm:$0xff]
  %v3221 = vld [vmem:[%s5 + $0x220] sm:$0xff]
  %v3222 = vld [vmem:[%s5 + $0x228] sm:$0xff]
  %v3223 = vld [vmem:[%s5 + $0x230] sm:$0xff]
  %v3224 = vld [vmem:[%s5 + $0x238] sm:$0xff]
  %v3225 = vld [vmem:[%s5 + $0x240] sm:$0xff]
  %v3226 = vld [vmem:[%s5 + $0x248] sm:$0xff]
  %v3227 = vld [vmem:[%s5 + $0x250] sm:$0xff]
  %v3228 = vld [vmem:[%s5 + $0x258] sm:$0xff]
  %v3229 = vld [vmem:[%s5 + $0x260] sm:$0xff]
  %v3230 = vld [vmem:[%s5 + $0x268] sm:$0xff]
  %v3231 = vld [vmem:[%s5 + $0x270] sm:$0xff]
  %v3232 = vld [vmem:[%s5 + $0x278] sm:$0xff]
  %v3233 = vld [vmem:[%s5 + $0x280] sm:$0xff]
  %v3234 = vld [vmem:[%s5 + $0x288] sm:$0xff]
  %v3235 = vld [vmem:[%s5 + $0x290] sm:$0xff]
  %v3236 = vld [vmem:[%s5 + $0x298] sm:$0xff]
  %v3237 = vld [vmem:[%s5 + $0x2a0] sm:$0xff]
  %v3238 = vld [vmem:[%s5 + $0x2a8] sm:$0xff]
  %v3239 = vld [vmem:[%s5 + $0x2b0] sm:$0xff]
  %v3240 = vld [vmem:[%s5 + $0x2b8] sm:$0xff]
  %v3241 = vld [vmem:[%s5 + $0x2c0] sm:$0xff]
  %v3242 = vld [vmem:[%s5 + $0x2c8] sm:$0xff]
  %v3243 = vld [vmem:[%s5 + $0x2d0] sm:$0xff]
  %v3244 = vld [vmem:[%s5 + $0x2d8] sm:$0xff]
  %v3245 = vld [vmem:[%s5 + $0x2e0] sm:$0xff]
  %v3246 = vld [vmem:[%s5 + $0x2e8] sm:$0xff]
  %v3247 = vld [vmem:[%s5 + $0x2f0] sm:$0xff]
  %v3248 = vld [vmem:[%s5 + $0x2f8] sm:$0xff]
  %v3249 = vld [vmem:[%s5 + $0x300] sm:$0xff]
  %v3250 = vld [vmem:[%s5 + $0x308] sm:$0xff]
  %v3251 = vld [vmem:[%s5 + $0x310] sm:$0xff]
  %v3252 = vld [vmem:[%s5 + $0x318] sm:$0xff]
  %v3253 = vld [vmem:[%s5 + $0x320] sm:$0xff]
  %v3254 = vld [vmem:[%s5 + $0x328] sm:$0xff]
  %v3255 = vld [vmem:[%s5 + $0x330] sm:$0xff]
  %v3256 = vld [vmem:[%s5 + $0x338] sm:$0xff]
  %v3257 = vld [vmem:[%s5 + $0x340] sm:$0xff]
  %v3258 = vld [vmem:[%s5 + $0x348] sm:$0xff]
  %v3259 = vld [vmem:[%s5 + $0x350] sm:$0xff]
  %v3260 = vld [vmem:[%s5 + $0x358] sm:$0xff]
  %v3261 = vld [vmem:[%s5 + $0x360] sm:$0xff]
  %v3262 = vld [vmem:[%s5 + $0x368] sm:$0xff]
  %v3263 = vld [vmem:[%s5 + $0x370] sm:$0xff]
  %v3264 = vld [vmem:[%s5 + $0x378] sm:$0xff]
  %v3265 = vld [vmem:[%s5 + $0x380] sm:$0xff]
  %v3266 = vld [vmem:[%s5 + $0x388] sm:$0xff]
  %v3267 = vld [vmem:[%s5 + $0x390] sm:$0xff]
  %v3268 = vld [vmem:[%s5 + $0x398] sm:$0xff]
  %v3269 = vld [vmem:[%s5 + $0x3a0] sm:$0xff]
  %v3270 = vld [vmem:[%s5 + $0x3a8] sm:$0xff]
  %v3271 = vld [vmem:[%s5 + $0x3b0] sm:$0xff]
  %v3272 = vld [vmem:[%s5 + $0x3b8] sm:$0xff]
  %v3273 = vld [vmem:[%s5 + $0x3c0] sm:$0xff]
  %v3274 = vld [vmem:[%s5 + $0x3c8] sm:$0xff]
  %v3275 = vld [vmem:[%s5 + $0x3d0] sm:$0xff]
  %v3276 = vld [vmem:[%s5 + $0x3d8] sm:$0xff]
  %v3277 = vld [vmem:[%s5 + $0x3e0] sm:$0xff]
  %v3278 = vld [vmem:[%s5 + $0x3e8] sm:$0xff]
  %v3279 = vld [vmem:[%s5 + $0x3f0] sm:$0xff]
  %v3280 = vld [vmem:[%s5 + $0x3f8] sm:$0xff]
  %v3281 = vld [vmem:[%s6] sm:$0x1]
  %v3283 = vlaneseq
  %v3284 = vshrl.u32 %v3283, 7
  %v3285 = vsub.s32 0, %v3284
  %v3286 = vrot.slane %v3281, %v3285
  %3288 = vmatprep.subr.mxu0 0.0
  %3289 = vmatpush1.msra.mxu0 %v3153
  %3290 = vmatprep.subr.mxu0 0.0
  %3291 = vmatpush1.msra.mxu0 %v3154
  %3292 = vmatprep.subr.mxu0 0.0
  %3293 = vmatpush1.msra.mxu0 %v3155
  %3294 = vmatprep.subr.mxu0 0.0
  %3295 = vmatpush1.msra.mxu0 %v3156
  %3296 = vmatprep.subr.mxu0 0.0
  %3297 = vmatpush1.msra.mxu0 %v3157
  %3298 = vmatprep.subr.mxu0 0.0
  %3299 = vmatpush1.msra.mxu0 %v3158
  %3300 = vmatprep.subr.mxu0 0.0
  %3301 = vmatpush1.msra.mxu0 %v3159
  %3302 = vmatprep.subr.mxu0 0.0
  %3303 = vmatpush1.msra.mxu0 %v3160
  %3304 = vmatprep.subr.mxu0 0.0
  %3305 = vmatpush1.msra.mxu0 %v3161
  %3306 = vmatprep.subr.mxu0 0.0
  %3307 = vmatpush1.msra.mxu0 %v3162
  %3308 = vmatprep.subr.mxu0 0.0
  %3309 = vmatpush1.msra.mxu0 %v3163
  %3310 = vmatprep.subr.mxu0 0.0
  %3311 = vmatpush1.msra.mxu0 %v3164
  %3312 = vmatprep.subr.mxu0 0.0
  %3313 = vmatpush1.msra.mxu0 %v3165
  %3314 = vmatprep.subr.mxu0 0.0
  %3315 = vmatpush1.msra.mxu0 %v3166
  %3316 = vmatprep.subr.mxu0 0.0
  %3317 = vmatpush1.msra.mxu0 %v3167
  %3318 = vmatprep.subr.mxu0 0.0
  %3319 = vmatpush1.msra.mxu0 %v3168
  %3320 = vmatprep.subr.mxu0 0.0
  %3321 = vmatpush1.msra.mxu0 %v3169
  %3322 = vmatprep.subr.mxu0 0.0
  %3323 = vmatpush1.msra.mxu0 %v3170
  %3324 = vmatprep.subr.mxu0 0.0
  %3325 = vmatpush1.msra.mxu0 %v3171
  %3326 = vmatprep.subr.mxu0 0.0
  %3327 = vmatpush1.msra.mxu0 %v3172
  %3328 = vmatprep.subr.mxu0 0.0
  %3329 = vmatpush1.msra.mxu0 %v3173
  %3330 = vmatprep.subr.mxu0 0.0
  %3331 = vmatpush1.msra.mxu0 %v3174
  %3332 = vmatprep.subr.mxu0 0.0
  %3333 = vmatpush1.msra.mxu0 %v3175
  %3334 = vmatprep.subr.mxu0 0.0
  %3335 = vmatpush1.msra.mxu0 %v3176
  %3336 = vmatprep.subr.mxu0 0.0
  %3337 = vmatpush1.msra.mxu0 %v3177
  %3338 = vmatprep.subr.mxu0 0.0
  %3339 = vmatpush1.msra.mxu0 %v3178
  %3340 = vmatprep.subr.mxu0 0.0
  %3341 = vmatpush1.msra.mxu0 %v3179
  %3342 = vmatprep.subr.mxu0 0.0
  %3343 = vmatpush1.msra.mxu0 %v3180
  %3344 = vmatprep.subr.mxu0 0.0
  %3345 = vmatpush1.msra.mxu0 %v3181
  %3346 = vmatprep.subr.mxu0 0.0
  %3347 = vmatpush1.msra.mxu0 %v3182
  %3348 = vmatprep.subr.mxu0 0.0
  %3349 = vmatpush1.msra.mxu0 %v3183
  %3350 = vmatprep.subr.mxu0 0.0
  %3351 = vmatpush1.msra.mxu0 %v3184
  %3352 = vmatprep.mubr.f32.mxu0 %v2940
  %3353 = vmatmul.mubr.f32.gmra.mrb[0].mxu0 %v2926
  %v3354 = vpop.f32.mrb[0].mxu0
  %v3355 = vadd.f32 %v3286, %v3354
  %v3356 = vpop.f32.mrb[0].mxu0
  %3357 = vmatprep.mubr.f32.mxu0 %v2968
  %3358 = vmatmul.mubr.f32.gmra.mrb[0].mxu0 %v2954
  %v3359 = vpop.f32.mrb[0].mxu0
  %v3360 = vadd.f32 %v3286, %v3359
  %v3361 = vpop.f32.mrb[0].mxu0
  %3362 = vdwg.mxu0
  %3363 = vmatprep.subr.mxu0 0.0
  %3364 = vmatpush1.msra.mxu0 %v3185
  %3365 = vmatprep.subr.mxu0 0.0
  %3366 = vmatpush1.msra.mxu0 %v3186
  %3367 = vmatprep.subr.mxu0 0.0
  %3368 = vmatpush1.msra.mxu0 %v3187
  %3369 = vmatprep.subr.mxu0 0.0
  %3370 = vmatpush1.msra.mxu0 %v3188
  %3371 = vmatprep.subr.mxu0 0.0
  %3372 = vmatpush1.msra.mxu0 %v3189
  %3373 = vmatprep.subr.mxu0 0.0
  %3374 = vmatpush1.msra.mxu0 %v3190
  %3375 = vmatprep.subr.mxu0 0.0
  %3376 = vmatpush1.msra.mxu0 %v3191
  %3377 = vmatprep.subr.mxu0 0.0
  %3378 = vmatpush1.msra.mxu0 %v3192
  %3379 = vmatprep.subr.mxu0 0.0
  %3380 = vmatpush1.msra.mxu0 %v3193
  %3381 = vmatprep.subr.mxu0 0.0
  %3382 = vmatpush1.msra.mxu0 %v3194
  %3383 = vmatprep.subr.mxu0 0.0
  %3384 = vmatpush1.msra.mxu0 %v3195
  %3385 = vmatprep.subr.mxu0 0.0
  %3386 = vmatpush1.msra.mxu0 %v3196
  %3387 = vmatprep.subr.mxu0 0.0
  %3388 = vmatpush1.msra.mxu0 %v3197
  %3389 = vmatprep.subr.mxu0 0.0
  %3390 = vmatpush1.msra.mxu0 %v3198
  %3391 = vmatprep.subr.mxu0 0.0
  %3392 = vmatpush1.msra.mxu0 %v3199
  %3393 = vmatprep.subr.mxu0 0.0
  %3394 = vmatpush1.msra.mxu0 %v3200
  %3395 = vmatprep.subr.mxu0 0.0
  %3396 = vmatpush1.msra.mxu0 %v3201
  %3397 = vmatprep.subr.mxu0 0.0
  %3398 = vmatpush1.msra.mxu0 %v3202
  %3399 = vmatprep.subr.mxu0 0.0
  %3400 = vmatpush1.msra.mxu0 %v3203
  %3401 = vmatprep.subr.mxu0 0.0
  %3402 = vmatpush1.msra.mxu0 %v3204
  %3403 = vmatprep.subr.mxu0 0.0
  %3404 = vmatpush1.msra.mxu0 %v3205
  %3405 = vmatprep.subr.mxu0 0.0
  %3406 = vmatpush1.msra.mxu0 %v3206
  %3407 = vmatprep.subr.mxu0 0.0
  %3408 = vmatpush1.msra.mxu0 %v3207
  %3409 = vmatprep.subr.mxu0 0.0
  %3410 = vmatpush1.msra.mxu0 %v3208
  %3411 = vmatprep.subr.mxu0 0.0
  %3412 = vmatpush1.msra.mxu0 %v3209
  %3413 = vmatprep.subr.mxu0 0.0
  %3414 = vmatpush1.msra.mxu0 %v3210
  %3415 = vmatprep.subr.mxu0 0.0
  %3416 = vmatpush1.msra.mxu0 %v3211
  %3417 = vmatprep.subr.mxu0 0.0
  %3418 = vmatpush1.msra.mxu0 %v3212
  %3419 = vmatprep.subr.mxu0 0.0
  %3420 = vmatpush1.msra.mxu0 %v3213
  %3421 = vmatprep.subr.mxu0 0.0
  %3422 = vmatpush1.msra.mxu0 %v3214
  %3423 = vmatprep.subr.mxu0 0.0
  %3424 = vmatpush1.msra.mxu0 %v3215
  %3425 = vmatprep.subr.mxu0 0.0
  %3426 = vmatpush1.msra.mxu0 %v3216
  %3427 = vmatprep.mubr.f32.mxu0 %v3000
  %3428 = vmatmul.mubr.f32.gmra.mrb[0].mxu0 %v2986
  %v3429 = vpop.f32.mrb[0].mxu0
  %v3430 = vadd.f32 %v3355, %v3429
  %v3431 = vpop.f32.mrb[0].mxu0
  %3432 = vmatprep.mubr.f32.mxu0 %v3028
  %3433 = vmatmul.mubr.f32.gmra.mrb[0].mxu0 %v3014
  %v3434 = vpop.f32.mrb[0].mxu0
  %v3435 = vadd.f32 %v3360, %v3434
  %v3436 = vpop.f32.mrb[0].mxu0
  %3437 = vdwg.mxu0
  %3438 = vmatprep.subr.mxu0 0.0
  %3439 = vmatpush1.msra.mxu0 %v3217
  %3440 = vmatprep.subr.mxu0 0.0
  %3441 = vmatpush1.msra.mxu0 %v3218
  %3442 = vmatprep.subr.mxu0 0.0
  %3443 = vmatpush1.msra.mxu0 %v3219
  %3444 = vmatprep.subr.mxu0 0.0
  %3445 = vmatpush1.msra.mxu0 %v3220
  %3446 = vmatprep.subr.mxu0 0.0
  %3447 = vmatpush1.msra.mxu0 %v3221
  %3448 = vmatprep.subr.mxu0 0.0
  %3449 = vmatpush1.msra.mxu0 %v3222
  %3450 = vmatprep.subr.mxu0 0.0
  %3451 = vmatpush1.msra.mxu0 %v3223
  %3452 = vmatprep.subr.mxu0 0.0
  %3453 = vmatpush1.msra.mxu0 %v3224
  %3454 = vmatprep.subr.mxu0 0.0
  %3455 = vmatpush1.msra.mxu0 %v3225
  %3456 = vmatprep.subr.mxu0 0.0
  %3457 = vmatpush1.msra.mxu0 %v3226
  %3458 = vmatprep.subr.mxu0 0.0
  %3459 = vmatpush1.msra.mxu0 %v3227
  %3460 = vmatprep.subr.mxu0 0.0
  %3461 = vmatpush1.msra.mxu0 %v3228
  %3462 = vmatprep.subr.mxu0 0.0
  %3463 = vmatpush1.msra.mxu0 %v3229
  %3464 = vmatprep.subr.mxu0 0.0
  %3465 = vmatpush1.msra.mxu0 %v3230
  %3466 = vmatprep.subr.mxu0 0.0
  %3467 = vmatpush1.msra.mxu0 %v3231
  %3468 = vmatprep.subr.mxu0 0.0
  %3469 = vmatpush1.msra.mxu0 %v3232
  %3470 = vmatprep.subr.mxu0 0.0
  %3471 = vmatpush1.msra.mxu0 %v3233
  %3472 = vmatprep.subr.mxu0 0.0
  %3473 = vmatpush1.msra.mxu0 %v3234
  %3474 = vmatprep.subr.mxu0 0.0
  %3475 = vmatpush1.msra.mxu0 %v3235
  %3476 = vmatprep.subr.mxu0 0.0
  %3477 = vmatpush1.msra.mxu0 %v3236
  %3478 = vmatprep.subr.mxu0 0.0
  %3479 = vmatpush1.msra.mxu0 %v3237
  %3480 = vmatprep.subr.mxu0 0.0
  %3481 = vmatpush1.msra.mxu0 %v3238
  %3482 = vmatprep.subr.mxu0 0.0
  %3483 = vmatpush1.msra.mxu0 %v3239
  %3484 = vmatprep.subr.mxu0 0.0
  %3485 = vmatpush1.msra.mxu0 %v3240
  %3486 = vmatprep.subr.mxu0 0.0
  %3487 = vmatpush1.msra.mxu0 %v3241
  %3488 = vmatprep.subr.mxu0 0.0
  %3489 = vmatpush1.msra.mxu0 %v3242
  %3490 = vmatprep.subr.mxu0 0.0
  %3491 = vmatpush1.msra.mxu0 %v3243
  %3492 = vmatprep.subr.mxu0 0.0
  %3493 = vmatpush1.msra.mxu0 %v3244
  %3494 = vmatprep.subr.mxu0 0.0
  %3495 = vmatpush1.msra.mxu0 %v3245
  %3496 = vmatprep.subr.mxu0 0.0
  %3497 = vmatpush1.msra.mxu0 %v3246
  %3498 = vmatprep.subr.mxu0 0.0
  %3499 = vmatpush1.msra.mxu0 %v3247
  %3500 = vmatprep.subr.mxu0 0.0
  %3501 = vmatpush1.msra.mxu0 %v3248
  %3502 = vmatprep.mubr.f32.mxu0 %v3060
  %3503 = vmatmul.mubr.f32.gmra.mrb[0].mxu0 %v3046
  %v3504 = vpop.f32.mrb[0].mxu0
  %v3505 = vadd.f32 %v3430, %v3504
  %v3506 = vpop.f32.mrb[0].mxu0
  %3507 = vmatprep.mubr.f32.mxu0 %v3088
  %3508 = vmatmul.mubr.f32.gmra.mrb[0].mxu0 %v3074
  %v3509 = vpop.f32.mrb[0].mxu0
  %v3510 = vadd.f32 %v3435, %v3509
  %v3511 = vpop.f32.mrb[0].mxu0
  %3512 = vdwg.mxu0
  %3513 = vmatprep.subr.mxu0 0.0
  %3514 = vmatpush1.msra.mxu0 %v3249
  %3515 = vmatprep.subr.mxu0 0.0
  %3516 = vmatpush1.msra.mxu0 %v3250
  %3517 = vmatprep.subr.mxu0 0.0
  %3518 = vmatpush1.msra.mxu0 %v3251
  %3519 = vmatprep.subr.mxu0 0.0
  %3520 = vmatpush1.msra.mxu0 %v3252
  %3521 = vmatprep.subr.mxu0 0.0
  %3522 = vmatpush1.msra.mxu0 %v3253
  %3523 = vmatprep.subr.mxu0 0.0
  %3524 = vmatpush1.msra.mxu0 %v3254
  %3525 = vmatprep.subr.mxu0 0.0
  %3526 = vmatpush1.msra.mxu0 %v3255
  %3527 = vmatprep.subr.mxu0 0.0
  %3528 = vmatpush1.msra.mxu0 %v3256
  %3529 = vmatprep.subr.mxu0 0.0
  %3530 = vmatpush1.msra.mxu0 %v3257
  %3531 = vmatprep.subr.mxu0 0.0
  %3532 = vmatpush1.msra.mxu0 %v3258
  %3533 = vmatprep.subr.mxu0 0.0
  %3534 = vmatpush1.msra.mxu0 %v3259
  %3535 = vmatprep.subr.mxu0 0.0
  %3536 = vmatpush1.msra.mxu0 %v3260
  %3537 = vmatprep.subr.mxu0 0.0
  %3538 = vmatpush1.msra.mxu0 %v3261
  %3539 = vmatprep.subr.mxu0 0.0
  %3540 = vmatpush1.msra.mxu0 %v3262
  %3541 = vmatprep.subr.mxu0 0.0
  %3542 = vmatpush1.msra.mxu0 %v3263
  %3543 = vmatprep.subr.mxu0 0.0
  %3544 = vmatpush1.msra.mxu0 %v3264
  %3545 = vmatprep.subr.mxu0 0.0
  %3546 = vmatpush1.msra.mxu0 %v3265
  %3547 = vmatprep.subr.mxu0 0.0
  %3548 = vmatpush1.msra.mxu0 %v3266
  %3549 = vmatprep.subr.mxu0 0.0
  %3550 = vmatpush1.msra.mxu0 %v3267
  %3551 = vmatprep.subr.mxu0 0.0
  %3552 = vmatpush1.msra.mxu0 %v3268
  %3553 = vmatprep.subr.mxu0 0.0
  %3554 = vmatpush1.msra.mxu0 %v3269
  %3555 = vmatprep.subr.mxu0 0.0
  %3556 = vmatpush1.msra.mxu0 %v3270
  %3557 = vmatprep.subr.mxu0 0.0
  %3558 = vmatpush1.msra.mxu0 %v3271
  %3559 = vmatprep.subr.mxu0 0.0
  %3560 = vmatpush1.msra.mxu0 %v3272
  %3561 = vmatprep.subr.mxu0 0.0
  %3562 = vmatpush1.msra.mxu0 %v3273
  %3563 = vmatprep.subr.mxu0 0.0
  %3564 = vmatpush1.msra.mxu0 %v3274
  %3565 = vmatprep.subr.mxu0 0.0
  %3566 = vmatpush1.msra.mxu0 %v3275
  %3567 = vmatprep.subr.mxu0 0.0
  %3568 = vmatpush1.msra.mxu0 %v3276
  %3569 = vmatprep.subr.mxu0 0.0
  %3570 = vmatpush1.msra.mxu0 %v3277
  %3571 = vmatprep.subr.mxu0 0.0
  %3572 = vmatpush1.msra.mxu0 %v3278
  %3573 = vmatprep.subr.mxu0 0.0
  %3574 = vmatpush1.msra.mxu0 %v3279
  %3575 = vmatprep.subr.mxu0 0.0
  %3576 = vmatpush1.msra.mxu0 %v3280
  %3577 = vmatprep.mubr.f32.mxu0 %v3120
  %3578 = vmatmul.mubr.f32.gmra.mrb[0].mxu0 %v3106
  %v3579 = vpop.f32.mrb[0].mxu0
  %v3580 = vadd.f32 %v3505, %v3579
  %v3581 = vpop.f32.mrb[0].mxu0
  %3582 = vmatprep.mubr.f32.mxu0 %v3148
  %3583 = vmatmul.mubr.f32.gmra.mrb[0].mxu0 %v3134
  %v3584 = vpop.f32.mrb[0].mxu0
  %v3585 = vadd.f32 %v3510, %v3584
  %v3586 = vpop.f32.mrb[0].mxu0
  %3587 = vdwg.mxu0
  %v3588 = vmax.f32 %v3580, 0.0
  %v3589 = vmax.f32 %v3585, 0.0
  %v3590 = vld [vmem:[%s7] sm:$0xff]
  %v3591 = vld [vmem:[%s7 + $0x8] sm:$0xff]
  %v3592 = vld [vmem:[%s7 + $0x10] sm:$0xff]
  %v3593 = vld [vmem:[%s7 + $0x18] sm:$0xff]
  %v3594 = vld [vmem:[%s7 + $0x20] sm:$0xff]
  %v3595 = vld [vmem:[%s7 + $0x28] sm:$0xff]
  %v3596 = vld [vmem:[%s7 + $0x30] sm:$0xff]
  %v3597 = vld [vmem:[%s7 + $0x38] sm:$0xff]
  %v3598 = vld [vmem:[%s7 + $0x40] sm:$0xff]
  %v3599 = vld [vmem:[%s7 + $0x48] sm:$0xff]
  %v3600 = vld [vmem:[%s7 + $0x50] sm:$0xff]
  %v3601 = vld [vmem:[%s7 + $0x58] sm:$0xff]
  %v3602 = vld [vmem:[%s7 + $0x60] sm:$0xff]
  %v3603 = vld [vmem:[%s7 + $0x68] sm:$0xff]
  %v3604 = vld [vmem:[%s7 + $0x70] sm:$0xff]
  %v3605 = vld [vmem:[%s7 + $0x78] sm:$0xff]
  %v3606 = vld [vmem:[%s8] sm:$0x1]
  %v3608 = vlaneseq
  %v3609 = vshrl.u32 %v3608, 7
  %v3610 = vsub.s32 0, %v3609
  %v3611 = vrot.slane %v3606, %v3610
  %3613 = vmatprep.subr.mxu0 0.0
  %3614 = vmatpush1.msra.mxu0 %v3590
  %3615 = vmatprep.subr.mxu0 0.0
  %3616 = vmatpush1.msra.mxu0 %v3591
  %3617 = vmatprep.subr.mxu0 0.0
  %3618 = vmatpush1.msra.mxu0 %v3592
  %3619 = vmatprep.subr.mxu0 0.0
  %3620 = vmatpush1.msra.mxu0 %v3593
  %3621 = vmatprep.subr.mxu0 0.0
  %3622 = vmatpush1.msra.mxu0 %v3594
  %3623 = vmatprep.subr.mxu0 0.0
  %3624 = vmatpush1.msra.mxu0 %v3595
  %3625 = vmatprep.subr.mxu0 0.0
  %3626 = vmatpush1.msra.mxu0 %v3596
  %3627 = vmatprep.subr.mxu0 0.0
  %3628 = vmatpush1.msra.mxu0 %v3597
  %3629 = vmatprep.subr.mxu0 0.0
  %3630 = vmatpush1.msra.mxu0 %v3598
  %3631 = vmatprep.subr.mxu0 0.0
  %3632 = vmatpush1.msra.mxu0 %v3599
  %3633 = vmatprep.subr.mxu0 0.0
  %3634 = vmatpush1.msra.mxu0 %v3600
  %3635 = vmatprep.subr.mxu0 0.0
  %3636 = vmatpush1.msra.mxu0 %v3601
  %3637 = vmatprep.subr.mxu0 0.0
  %3638 = vmatpush1.msra.mxu0 %v3602
  %3639 = vmatprep.subr.mxu0 0.0
  %3640 = vmatpush1.msra.mxu0 %v3603
  %3641 = vmatprep.subr.mxu0 0.0
  %3642 = vmatpush1.msra.mxu0 %v3604
  %3643 = vmatprep.subr.mxu0 0.0
  %3644 = vmatpush1.msra.mxu0 %v3605
  %3645 = vmatprep.subr.mxu0 0.0
  %3646 = vmatpush1.msra.mxu0 0.0
  %3647 = vmatprep.subr.mxu0 0.0
  %3648 = vmatpush1.msra.mxu0 0.0
  %3649 = vmatprep.subr.mxu0 0.0
  %3650 = vmatpush1.msra.mxu0 0.0
  %3651 = vmatprep.subr.mxu0 0.0
  %3652 = vmatpush1.msra.mxu0 0.0
  %3653 = vmatprep.subr.mxu0 0.0
  %3654 = vmatpush1.msra.mxu0 0.0
  %3655 = vmatprep.subr.mxu0 0.0
  %3656 = vmatpush1.msra.mxu0 0.0
  %3657 = vmatprep.subr.mxu0 0.0
  %3658 = vmatpush1.msra.mxu0 0.0
  %3659 = vmatprep.subr.mxu0 0.0
  %3660 = vmatpush1.msra.mxu0 0.0
  %3661 = vmatprep.subr.mxu0 0.0
  %3662 = vmatpush1.msra.mxu0 0.0
  %3663 = vmatprep.subr.mxu0 0.0
  %3664 = vmatpush1.msra.mxu0 0.0
  %3665 = vmatprep.subr.mxu0 0.0
  %3666 = vmatpush1.msra.mxu0 0.0
  %3667 = vmatprep.subr.mxu0 0.0
  %3668 = vmatpush1.msra.mxu0 0.0
  %3669 = vmatprep.subr.mxu0 0.0
  %3670 = vmatpush1.msra.mxu0 0.0
  %3671 = vmatprep.subr.mxu0 0.0
  %3672 = vmatpush1.msra.mxu0 0.0
  %3673 = vmatprep.subr.mxu0 0.0
  %3674 = vmatpush1.msra.mxu0 0.0
  %3675 = vmatprep.subr.mxu0 0.0
  %3676 = vmatpush1.msra.mxu0 0.0
  %3677 = vmatprep.mubr.f32.mxu0 0.0
  %3678 = vmatmul.mubr.f32.gmra.mrb[0].mxu0 %v3588
  %v3679 = vpop.f32.mrb[0].mxu0
  %v3680 = vadd.f32 %v3611, %v3679
  %v3681 = vpop.f32.mrb[0].mxu0
  %3682 = vmatprep.mubr.f32.mxu0 0.0
  %3683 = vmatmul.mubr.f32.gmra.mrb[0].mxu0 %v3589
  %v3684 = vpop.f32.mrb[0].mxu0
  %v3685 = vadd.f32 %v3611, %v3684
  %v3686 = vpop.f32.mrb[0].mxu0
  %3687 = vdwg.mxu0
  %3688 = vmax.xlane.f32.xlu0 %v3680
  %v3689 = vpop.xlane.xlu0 %3688
  %3690 = vmax.xlane.f32.xlu0 %v3685
  %v3691 = vpop.xlane.xlu0 %3690
  %v3692 = vsub.f32 %v3680, %v3689
  %v3693 = vsub.f32 %v3685, %v3691
  %v3694 = vmul.f32 %v3692, 1.442695
  %v3695 = vpow.pop %v3694
  %v3696 = vmul.f32 %v3693, 1.442695
  %v3697 = vpow.pop %v3696
  %3698 = vadd.xlane.f32.xlu0 %v3695
  %v3699 = vpop.xlane.xlu0 %3698
  %3700 = vadd.xlane.f32.xlu0 %v3697
  %v3701 = vpop.xlane.xlu0 %3700
  %v3702 = vlog2.pop %v3699
  %v3703 = vmul.f32 %v3702, 0.6931472
  %v3704 = vlog2.pop %v3701
  %v3705 = vmul.f32 %v3704, 0.6931472
  %v3706 = vsub.f32 %v3692, %v3703
  %v3707 = vsub.f32 %v3693, %v3705
  %3708 = vst [vmem:[%s9] sm:$0xff] %v3706
  %3709 = vst [vmem:[%s9 + $0x8] sm:$0xff] %v3707
  // Predicated region
  $region38: #{mnist_net3_forward.1} parent=0 // pred_check
    _
  $region39: #{mnist_net3_forward.1} parent=0 // pred_check_branch
    %3711 = sbr.rel (0) target = $region41
  $region40: #{mnist_net3_forward.1} parent=0 // pred_region
    _
  $region41: #{mnist_net3_forward.1} parent=0 // pred_fallthru
    _
  // Predicated region
  $region42: #{mnist_net3_forward.1} parent=0 // pred_check
    _
  $region43: #{mnist_net3_forward.1} parent=0 // pred_check_branch
    %3713 = sbr.rel (0) target = $region45
  $region44: #{mnist_net3_forward.1} parent=0 // pred_region
    _
  $region45: #{mnist_net3_forward.1} parent=0 // pred_fallthru
    _

</llo_original>
